<compile_context>
chip_gen: v7x
topology: tpu7x:2x2x1
jax: 0.10.0
libtpu: 0.0.40
codegen_flags: <defaults>
</compile_context>

<pallas_src>
import jax
import jax.numpy as jnp
from jax.experimental import pallas as pl
from jax.experimental.pallas import tpu as pltpu

# ---------------------------------------------------------------------------
# Mini-BERT configuration (scaled down; T=50 matches the hard-coded pad length)
# ---------------------------------------------------------------------------
T = 50            # sequence length produced by the PyTorch forward
T_PAD = 64        # padded sequence length used inside the kernel (8-aligned)
H = 64            # hidden size
NH = 4            # attention heads
HD = H // NH      # head dim
FF = 4 * H        # FFN intermediate size
VOCAB = 128       # synthetic vocab
N_TYPES = 2       # token-type (segment) vocab
N_LAYERS = 2      # encoder layers
LN_EPS = 1e-12
MASK_BIAS = -10000.0                      # HF-BERT style additive mask
ATTN_SCALE = 1.0 / float(HD) ** 0.5


# ---------------------------------------------------------------------------
# In-kernel helpers (f32 elementwise math -- portable across v5e/v6e/v7x)
# ---------------------------------------------------------------------------
def _layernorm(y, gamma, beta):
    mu = jnp.mean(y, axis=-1, keepdims=True)
    var = jnp.mean((y - mu) ** 2, axis=-1, keepdims=True)
    return (y - mu) * jax.lax.rsqrt(var + LN_EPS) * gamma + beta


def _gelu_tanh(x):
    # TODO(synk): HF BertIntermediate defaults to exact erf GELU; tanh approx
    # is used here (tanh has a guaranteed EUP lowering in Mosaic).
    c = 0.7978845608028654  # sqrt(2/pi)
    return 0.5 * x * (1.0 + jnp.tanh(c * (x + 0.044715 * x * x * x)))


# ---------------------------------------------------------------------------
# Fused per-batch encoder kernel: embedding LN + N_LAYERS x (MHA + FFN).
# One grid step == one batch element's (T_PAD, H) row block; weights resident.
# ---------------------------------------------------------------------------
def bert_block_kernel(emb_ref, bias_ref,
                      eg_ref, eb_ref,
                      a_ref, ab_ref, vn_ref, vb_ref, bo_ref, ag_ref, abeta_ref,
                      w1_ref, b1_ref, w2_ref, b2_ref, fg_ref, fbeta_ref,
                      o_ref):
    # Embedding LayerNorm for this batch's block.
    x = _layernorm(emb_ref[0].astype(jnp.float32), eg_ref[...], eb_ref[...])  # (T_PAD, H)
    bias_row = bias_ref[0]                                                    # (1, T_PAD)

    for l in range(N_LAYERS):            # static unroll; weights stay resident
        x16 = x.astype(jnp.bfloat16)

        # ---------------- multi-head self-attention (folded weights) --------
        # tmp_h = x @ (scale*Wq_h Wk_h^T) + scale*Wk_h bq_h   (head-concat lanes)
        # v_h   = x @ (Wv_h Wo_h)         + bv_h Wo_h         (head-concat lanes)
        # -> one wide (64,64)@(64,256) bf16 matmul each; bias terms are
        #    broadcast rows (no elementwise reduce, no row-sum==1 assumption).
        tmp = jnp.dot(x16, a_ref[l],
                      preferred_element_type=jnp.float32) + ab_ref[l]   # (T, NH*H)
        vv = jnp.dot(x16, vn_ref[l],
                     preferred_element_type=jnp.float32) + vb_ref[l]    # (T, NH*H)
        tmp16 = tmp.astype(jnp.bfloat16)
        v16 = vv.astype(jnp.bfloat16)

        # Per-head score / softmax / context on 64x64 tiles: keeps live f32
        # intermediates to ~16 KB per head (no spills), 2-D matmuls only.
        ctx_sum = None
        for h in range(NH):
            tmp_h = tmp16[:, h * H:(h + 1) * H]                         # (T, H) bf16
            v_h = v16[:, h * H:(h + 1) * H]                             # (T, H) bf16
            # s_h[t, s] = tmp_h[t] . x[s]   (scale + key-bias already folded)
            s_h = jax.lax.dot_general(
                tmp_h, x16, (((1,), (1,)), ((), ())),
                preferred_element_type=jnp.float32)                     # (T, T)
            s_h = s_h + bias_row                                        # mask bias
            s_h = s_h - jnp.max(s_h, axis=-1, keepdims=True)
            p_h = jnp.exp(s_h)
            r_h = pl.reciprocal(jnp.sum(p_h, axis=-1, keepdims=True),
                                approx=True)
            pn16 = (p_h * r_h).astype(jnp.bfloat16)
            ctx_h = jnp.dot(pn16, v_h,
                            preferred_element_type=jnp.float32)          # (T, H)
            ctx_sum = ctx_h if ctx_sum is None else ctx_sum + ctx_h

        x = _layernorm(x + ctx_sum + bo_ref[l], ag_ref[l], abeta_ref[l])

        # ------------------------------- FFN --------------------------------
        h1 = jnp.dot(x.astype(jnp.bfloat16), w1_ref[l],
                     preferred_element_type=jnp.float32) + b1_ref[l]
        h1 = _gelu_tanh(h1)
        ffn = jnp.dot(h1.astype(jnp.bfloat16), w2_ref[l],
                      preferred_element_type=jnp.float32) + b2_ref[l]
        x = _layernorm(x + ffn, fg_ref[l], fbeta_ref[l])

    o_ref[0] = x.astype(o_ref.dtype)


WEIGHT_KEYS = ("emb_ln_g", "emb_ln_b",
               "attn_a", "attn_ab", "attn_vn", "attn_vb", "attn_bo",
               "attn_ln_g", "attn_ln_b",
               "w1", "b1", "w2", "b2", "ffn_ln_g", "ffn_ln_b")


def run_encoder(prep, emb, bias):
    b = emb.shape[0]
    weights = [prep[k] for k in WEIGHT_KEYS]

    def per_batch(arr):                     # one row block per grid step
        nd = arr.ndim
        return pl.BlockSpec((1,) + arr.shape[1:],
                            lambda i: (i,) + (0,) * (nd - 1))

    def resident(arr):                      # constant block index -> no re-DMA
        nd = arr.ndim
        return pl.BlockSpec(arr.shape, lambda i: (0,) * nd)

    return pl.pallas_call(
        bert_block_kernel,
        out_shape=jax.ShapeDtypeStruct((b, T_PAD, H), jnp.float32),
        grid=(b,),
        in_specs=[per_batch(emb), per_batch(bias)] + [resident(w) for w in weights],
        out_specs=pl.BlockSpec((1, T_PAD, H), lambda i: (i, 0, 0)),
        # Weights are ~0.4 MB resident; at real BERT-base sizes one would tile
        # the layer / FF axes instead of growing this (v7x has only 64 MiB VMEM).
        compiler_params=pltpu.CompilerParams(
            dimension_semantics=("parallel",),     # batch blocks -> 2 TCs on v7x
            vmem_limit_bytes=32 * 1024 * 1024),
    )(emb, bias, *weights)


# ---------------------------------------------------------------------------
# Deterministic parameter init (stand-in for BertModel.from_pretrained).
# Non-zero biases so the folded key-/value-bias paths are actually exercised.
# ---------------------------------------------------------------------------
def init_params(key):
    std = 0.02
    keys = iter(jax.random.split(key, 8 + 16 * N_LAYERS))

    def nrm(shape, scale=std):
        return jax.random.normal(next(keys), shape, jnp.float32) * scale

    params = {
        "word_emb": nrm((VOCAB, H)),
        "pos_emb": nrm((T, H)),
        "type_emb": nrm((N_TYPES, H)),
        "emb_ln_g": 1.0 + nrm((1, H), 0.05),
        "emb_ln_b": nrm((1, H), 0.05),
        "layers": [],
    }
    for _ in range(N_LAYERS):
        lp = {
            "wq": nrm((H, H)), "bq": nrm((1, H)),
            "wk": nrm((H, H)), "bk": nrm((1, H)),
            "wv": nrm((H, H)), "bv": nrm((1, H)),
            "wo": nrm((H, H)), "bo": nrm((1, H)),
            "attn_ln_g": 1.0 + nrm((1, H), 0.05), "attn_ln_b": nrm((1, H), 0.05),
            "w1": nrm((H, FF)), "b1": nrm((1, FF)),
            "w2": nrm((FF, H)), "b2": nrm((1, H)),
            "ffn_ln_g": 1.0 + nrm((1, H), 0.05), "ffn_ln_b": nrm((1, H), 0.05),
        }
        params["layers"].append(lp)
    return params


# ---------------------------------------------------------------------------
# One-time weight folding into the head-concatenated form the kernel uses.
# No batch replication: shapes are independent of B.
# ---------------------------------------------------------------------------
def prepare_params(params):
    a_l, ab_l, vn_l, vb_l, bo_l, ag_l, abt_l = [], [], [], [], [], [], []
    w1_l, b1_l, w2_l, b2_l, fg_l, fb_l = [], [], [], [], [], []
    for lp in params["layers"]:
        wq = lp["wq"].reshape(H, NH, HD)
        wk = lp["wk"].reshape(H, NH, HD)
        wv = lp["wv"].reshape(H, NH, HD)
        wo = lp["wo"].reshape(NH, HD, H)
        bq = lp["bq"].reshape(NH, HD)
        bv = lp["bv"].reshape(NH, HD)

        # Head-concatenated along the output (lane) axis: column h*H + e.
        a = ATTN_SCALE * jnp.einsum("dhk,ehk->dhe", wq, wk).reshape(H, NH * H)
        ab = ATTN_SCALE * jnp.einsum("ehk,hk->he", wk, bq).reshape(1, NH * H)
        vn = jnp.einsum("dhk,hke->dhe", wv, wo).reshape(H, NH * H)
        vb = jnp.einsum("hk,hke->he", bv, wo).reshape(1, NH * H)

        a_l.append(a.astype(jnp.bfloat16)); ab_l.append(ab)
        vn_l.append(vn.astype(jnp.bfloat16)); vb_l.append(vb)
        bo_l.append(lp["bo"])
        ag_l.append(lp["attn_ln_g"]); abt_l.append(lp["attn_ln_b"])
        w1_l.append(lp["w1"].astype(jnp.bfloat16)); b1_l.append(lp["b1"])
        w2_l.append(lp["w2"].astype(jnp.bfloat16)); b2_l.append(lp["b2"])
        fg_l.append(lp["ffn_ln_g"]); fb_l.append(lp["ffn_ln_b"])

    return {
        "word_emb": params["word_emb"],
        "pos_emb": params["pos_emb"],
        "type_emb": params["type_emb"],
        "emb_ln_g": params["emb_ln_g"],
        "emb_ln_b": params["emb_ln_b"],
        "attn_a": jnp.stack(a_l),        # (L, H, NH*H) bf16
        "attn_ab": jnp.stack(ab_l),      # (L, 1, NH*H) f32  (key-bias row)
        "attn_vn": jnp.stack(vn_l),      # (L, H, NH*H) bf16
        "attn_vb": jnp.stack(vb_l),      # (L, 1, NH*H) f32  (value-bias row)
        "attn_bo": jnp.stack(bo_l),      # (L, 1, H)
        "attn_ln_g": jnp.stack(ag_l),
        "attn_ln_b": jnp.stack(abt_l),
        "w1": jnp.stack(w1_l),           # (L, H, FF) bf16
        "b1": jnp.stack(b1_l),           # (L, 1, FF)
        "w2": jnp.stack(w2_l),           # (L, FF, H) bf16
        "b2": jnp.stack(b2_l),           # (L, 1, H)
        "ffn_ln_g": jnp.stack(fg_l),
        "ffn_ln_b": jnp.stack(fb_l),
    }


# ---------------------------------------------------------------------------
# Forward pass:  (token_ids, seg_ids, attn_mask)  ->  (hidden_reps, attn_mask)
# ---------------------------------------------------------------------------
@jax.jit
def vanilla_bert_forward(prep, token_ids, seg_ids, attn_mask):
    # Embedding lookup is glue JAX (gather); the encoder runs in one Pallas kernel.
    emb = (prep["word_emb"][token_ids]
           + prep["pos_emb"][None, :, :]
           + prep["type_emb"][seg_ids])                     # (B, T, H)
    emb = jnp.pad(emb, ((0, 0), (0, T_PAD - T), (0, 0)))    # pad seq 50 -> 64

    mask = jnp.pad(attn_mask.astype(jnp.float32), ((0, 0), (0, T_PAD - T)))
    bias = ((1.0 - mask) * MASK_BIAS)[:, None, :]           # (B, 1, T_PAD)

    hidden = run_encoder(prep, emb, bias)                   # (B, T_PAD, H)
    hidden_reps = hidden[:, :T, :]
    return hidden_reps, attn_mask                           # same contract as PyTorch


# ---------------------------------------------------------------------------
# Pure-JAX reference (standard un-fused MHA math) for correctness checking.
# ---------------------------------------------------------------------------
def reference_forward(params, token_ids, seg_ids, attn_mask):
    def ln(y, gamma, beta):
        mu = y.mean(-1, keepdims=True)
        var = ((y - mu) ** 2).mean(-1, keepdims=True)
        return (y - mu) * jax.lax.rsqrt(var + LN_EPS) * gamma + beta

    emb = (params["word_emb"][token_ids] + params["pos_emb"][None]
           + params["type_emb"][seg_ids])
    x = ln(emb, params["emb_ln_g"], params["emb_ln_b"])
    bias = (1.0 - attn_mask.astype(jnp.float32))[:, None, None, :] * MASK_BIAS
    for lp in params["layers"]:
        q = x @ lp["wq"] + lp["bq"]
        k = x @ lp["wk"] + lp["bk"]
        v = x @ lp["wv"] + lp["bv"]
        b_, t_, _ = x.shape

        def split(z):
            return z.reshape(b_, t_, NH, HD).transpose(0, 2, 1, 3)

        s = jnp.einsum("bhtd,bhsd->bhts", split(q), split(k)) * ATTN_SCALE + bias
        p = jax.nn.softmax(s, axis=-1)
        c = jnp.einsum("bhts,bhsd->bhtd", p, split(v)) \
               .transpose(0, 2, 1, 3).reshape(b_, t_, H)
        x = ln(x + c @ lp["wo"] + lp["bo"], lp["attn_ln_g"], lp["attn_ln_b"])
        h1 = _gelu_tanh(x @ lp["w1"] + lp["b1"])
        x = ln(x + h1 @ lp["w2"] + lp["b2"], lp["ffn_ln_g"], lp["ffn_ln_b"])
    return x


# ---------------------------------------------------------------------------
# Main
# ---------------------------------------------------------------------------
if __name__ == "__main__":
    key = jax.random.PRNGKey(0)
    pkey, tkey = jax.random.split(key)
    params = init_params(pkey)

    # Synthetic "words": two sentences of different lengths, padded to T=50
    # (mirrors the python padding / mask construction in the PyTorch forward).
    B = 2
    lengths = [7, 13]
    tok = jax.random.randint(tkey, (B, T), 1, VOCAB, dtype=jnp.int32)
    pos = jnp.arange(T)[None, :]
    len_arr = jnp.asarray(lengths)[:, None]
    attn_mask = (pos < len_arr).astype(jnp.int32)     # 1 for tokens, 0 for [PAD]
    token_ids = jnp.where(attn_mask == 1, tok, 0)     # 0 == [PAD] id
    seg_ids = jnp.zeros((B, T), jnp.int32)            # all segment 0

    prep = prepare_params(params)                     # one-time weight folding
    hidden_reps, out_mask = vanilla_bert_forward(prep, token_ids, seg_ids, attn_mask)
    jax.block_until_ready((hidden_reps, out_mask))

    assert hidden_reps.shape == (B, T, H)
    assert out_mask.shape == (B, T)
    assert bool(jnp.all(jnp.isfinite(hidden_reps)))

    # Correctness vs. un-fused pure-JAX reference (bf16 matmul operands in the
    # kernel -> loose tolerance).
    ref = reference_forward(params, token_ids, seg_ids, attn_mask)
    max_err = float(jnp.max(jnp.abs(hidden_reps - ref)))
    assert max_err < 7.5e-2, f"mismatch vs reference: {max_err}"

    print("KERNEL_OK")
</pallas_src>

<mosaic_0001>
module attributes {stable_mosaic.version = 11 : i64} {
  func.func @bert_block_kernel(%arg0: i32, %arg1: memref<1x64x64xf32, #tpu.memory_space<vmem>>, %arg2: memref<1x1x64xf32, #tpu.memory_space<vmem>>, %arg3: memref<1x64xf32, #tpu.memory_space<vmem>>, %arg4: memref<1x64xf32, #tpu.memory_space<vmem>>, %arg5: memref<2x64x256xbf16, #tpu.memory_space<vmem>>, %arg6: memref<2x1x256xf32, #tpu.memory_space<vmem>>, %arg7: memref<2x64x256xbf16, #tpu.memory_space<vmem>>, %arg8: memref<2x1x256xf32, #tpu.memory_space<vmem>>, %arg9: memref<2x1x64xf32, #tpu.memory_space<vmem>>, %arg10: memref<2x1x64xf32, #tpu.memory_space<vmem>>, %arg11: memref<2x1x64xf32, #tpu.memory_space<vmem>>, %arg12: memref<2x64x256xbf16, #tpu.memory_space<vmem>>, %arg13: memref<2x1x256xf32, #tpu.memory_space<vmem>>, %arg14: memref<2x256x64xbf16, #tpu.memory_space<vmem>>, %arg15: memref<2x1x64xf32, #tpu.memory_space<vmem>>, %arg16: memref<2x1x64xf32, #tpu.memory_space<vmem>>, %arg17: memref<2x1x64xf32, #tpu.memory_space<vmem>>, %arg18: memref<1x64x64xf32, #tpu.memory_space<vmem>>) attributes {dimension_semantics = [#tpu.dimension_semantics<parallel>], iteration_bounds = array<i64: 2>, scalar_prefetch = 0 : i64, scratch_operands = 0 : i64, tpu.core_type = #tpu.core_type<tc>, window_params = [{transform_indices = @transform_0, window_bounds = array<i64: 1, 64, 64>}, {transform_indices = @transform_1, window_bounds = array<i64: 1, 1, 64>}, {pipeline_mode = #tpu.pipeline_mode<synchronous>, transform_indices = @transform_2, window_bounds = array<i64: 1, 64>}, {pipeline_mode = #tpu.pipeline_mode<synchronous>, transform_indices = @transform_3, window_bounds = array<i64: 1, 64>}, {pipeline_mode = #tpu.pipeline_mode<synchronous>, transform_indices = @transform_4, window_bounds = array<i64: 2, 64, 256>}, {pipeline_mode = #tpu.pipeline_mode<synchronous>, transform_indices = @transform_5, window_bounds = array<i64: 2, 1, 256>}, {pipeline_mode = #tpu.pipeline_mode<synchronous>, transform_indices = @transform_6, window_bounds = array<i64: 2, 64, 256>}, {pipeline_mode = #tpu.pipeline_mode<synchronous>, transform_indices = @transform_7, window_bounds = array<i64: 2, 1, 256>}, {pipeline_mode = #tpu.pipeline_mode<synchronous>, transform_indices = @transform_8, window_bounds = array<i64: 2, 1, 64>}, {pipeline_mode = #tpu.pipeline_mode<synchronous>, transform_indices = @transform_9, window_bounds = array<i64: 2, 1, 64>}, {pipeline_mode = #tpu.pipeline_mode<synchronous>, transform_indices = @transform_10, window_bounds = array<i64: 2, 1, 64>}, {pipeline_mode = #tpu.pipeline_mode<synchronous>, transform_indices = @transform_11, window_bounds = array<i64: 2, 64, 256>}, {pipeline_mode = #tpu.pipeline_mode<synchronous>, transform_indices = @transform_12, window_bounds = array<i64: 2, 1, 256>}, {pipeline_mode = #tpu.pipeline_mode<synchronous>, transform_indices = @transform_13, window_bounds = array<i64: 2, 256, 64>}, {pipeline_mode = #tpu.pipeline_mode<synchronous>, transform_indices = @transform_14, window_bounds = array<i64: 2, 1, 64>}, {pipeline_mode = #tpu.pipeline_mode<synchronous>, transform_indices = @transform_15, window_bounds = array<i64: 2, 1, 64>}, {pipeline_mode = #tpu.pipeline_mode<synchronous>, transform_indices = @transform_16, window_bounds = array<i64: 2, 1, 64>}, {transform_indices = @transform_17, window_bounds = array<i64: 1, 64, 64>}]} {
    %c0 = arith.constant 0 : index
    %c0_0 = arith.constant 0 : index
    %c0_1 = arith.constant 0 : index
    %0 = vector.load %arg1[%c0, %c0_0, %c0_1] : memref<1x64x64xf32, #tpu.memory_space<vmem>>, vector<1x64x64xf32>
    %1 = vector.shape_cast %0 : vector<1x64x64xf32> to vector<64x64xf32>
    %c0_2 = arith.constant 0 : index
    %c0_3 = arith.constant 0 : index
    %2 = vector.load %arg3[%c0_2, %c0_3] : memref<1x64xf32, #tpu.memory_space<vmem>>, vector<1x64xf32>
    %c0_4 = arith.constant 0 : index
    %c0_5 = arith.constant 0 : index
    %3 = vector.load %arg4[%c0_4, %c0_5] : memref<1x64xf32, #tpu.memory_space<vmem>>, vector<1x64xf32>
    %cst = arith.constant dense<0.000000e+00> : vector<64xf32>
    %4 = vector.multi_reduction <add>, %1, %cst [1] : vector<64x64xf32> to vector<64xf32>
    %5 = vector.shape_cast %4 : vector<64xf32> to vector<64x1xf32>
    %cst_6 = arith.constant 6.400000e+01 : f32
    %6 = vector.broadcast %cst_6 : f32 to vector<64x1xf32>
    %7 = arith.divf %5, %6 : vector<64x1xf32>
    %8 = vector.broadcast %7 : vector<64x1xf32> to vector<64x64xf32>
    %9 = arith.subf %1, %8 : vector<64x64xf32>
    %10 = arith.mulf %9, %9 : vector<64x64xf32>
    %cst_7 = arith.constant dense<0.000000e+00> : vector<64xf32>
    %11 = vector.multi_reduction <add>, %10, %cst_7 [1] : vector<64x64xf32> to vector<64xf32>
    %12 = vector.shape_cast %11 : vector<64xf32> to vector<64x1xf32>
    %cst_8 = arith.constant 6.400000e+01 : f32
    %13 = vector.broadcast %cst_8 : f32 to vector<64x1xf32>
    %14 = arith.divf %12, %13 : vector<64x1xf32>
    %15 = vector.broadcast %7 : vector<64x1xf32> to vector<64x64xf32>
    %16 = arith.subf %1, %15 : vector<64x64xf32>
    %cst_9 = arith.constant 9.99999996E-13 : f32
    %17 = vector.broadcast %cst_9 : f32 to vector<64x1xf32>
    %18 = arith.addf %14, %17 : vector<64x1xf32>
    %19 = math.rsqrt %18 : vector<64x1xf32>
    %20 = vector.broadcast %19 : vector<64x1xf32> to vector<64x64xf32>
    %21 = arith.mulf %16, %20 : vector<64x64xf32>
    %22 = vector.broadcast %2 : vector<1x64xf32> to vector<64x64xf32>
    %23 = arith.mulf %21, %22 : vector<64x64xf32>
    %24 = vector.broadcast %3 : vector<1x64xf32> to vector<64x64xf32>
    %25 = arith.addf %23, %24 : vector<64x64xf32>
    %c0_10 = arith.constant 0 : index
    %c0_11 = arith.constant 0 : index
    %c0_12 = arith.constant 0 : index
    %26 = vector.load %arg2[%c0_10, %c0_11, %c0_12] : memref<1x1x64xf32, #tpu.memory_space<vmem>>, vector<1x1x64xf32>
    %27 = vector.shape_cast %26 : vector<1x1x64xf32> to vector<1x64xf32>
    %28 = arith.truncf %25 : vector<64x64xf32> to vector<64x64xbf16>
    %c0_13 = arith.constant 0 : index
    %c0_14 = arith.constant 0 : index
    %c0_15 = arith.constant 0 : index
    %29 = vector.load %arg5[%c0_13, %c0_14, %c0_15] : memref<2x64x256xbf16, #tpu.memory_space<vmem>>, vector<1x64x256xbf16>
    %30 = vector.shape_cast %29 : vector<1x64x256xbf16> to vector<64x256xbf16>
    %cst_16 = arith.constant dense<0.000000e+00> : vector<64x256xf32>
    %31 = tpu.matmul %28, %30, %cst_16 {dimension_numbers = #tpu.dot_dimension_numbers<[1], [0], [0], [1], [0, 0, 1, 1], [], []>} : vector<64x64xbf16>, vector<64x256xbf16>, vector<64x256xf32> -> vector<64x256xf32>
    %c0_17 = arith.constant 0 : index
    %c0_18 = arith.constant 0 : index
    %c0_19 = arith.constant 0 : index
    %32 = vector.load %arg6[%c0_17, %c0_18, %c0_19] : memref<2x1x256xf32, #tpu.memory_space<vmem>>, vector<1x1x256xf32>
    %33 = vector.shape_cast %32 : vector<1x1x256xf32> to vector<1x256xf32>
    %34 = vector.broadcast %33 : vector<1x256xf32> to vector<64x256xf32>
    %35 = arith.addf %31, %34 : vector<64x256xf32>
    %c0_20 = arith.constant 0 : index
    %c0_21 = arith.constant 0 : index
    %c0_22 = arith.constant 0 : index
    %36 = vector.load %arg7[%c0_20, %c0_21, %c0_22] : memref<2x64x256xbf16, #tpu.memory_space<vmem>>, vector<1x64x256xbf16>
    %37 = vector.shape_cast %36 : vector<1x64x256xbf16> to vector<64x256xbf16>
    %cst_23 = arith.constant dense<0.000000e+00> : vector<64x256xf32>
    %38 = tpu.matmul %28, %37, %cst_23 {dimension_numbers = #tpu.dot_dimension_numbers<[1], [0], [0], [1], [0, 0, 1, 1], [], []>} : vector<64x64xbf16>, vector<64x256xbf16>, vector<64x256xf32> -> vector<64x256xf32>
    %c0_24 = arith.constant 0 : index
    %c0_25 = arith.constant 0 : index
    %c0_26 = arith.constant 0 : index
    %39 = vector.load %arg8[%c0_24, %c0_25, %c0_26] : memref<2x1x256xf32, #tpu.memory_space<vmem>>, vector<1x1x256xf32>
    %40 = vector.shape_cast %39 : vector<1x1x256xf32> to vector<1x256xf32>
    %41 = vector.broadcast %40 : vector<1x256xf32> to vector<64x256xf32>
    %42 = arith.addf %38, %41 : vector<64x256xf32>
    %43 = arith.truncf %35 : vector<64x256xf32> to vector<64x256xbf16>
    %44 = arith.truncf %42 : vector<64x256xf32> to vector<64x256xbf16>
    %45 = vector.extract_strided_slice %43 {offsets = [0, 0], sizes = [64, 64], strides = [1, 1]} : vector<64x256xbf16> to vector<64x64xbf16>
    %46 = vector.extract_strided_slice %44 {offsets = [0, 0], sizes = [64, 64], strides = [1, 1]} : vector<64x256xbf16> to vector<64x64xbf16>
    %cst_27 = arith.constant dense<0.000000e+00> : vector<64x64xf32>
    %47 = tpu.matmul %45, %28, %cst_27 {dimension_numbers = #tpu.dot_dimension_numbers<[1], [1], [0], [0], [0, 0, 1, 0], [], []>} : vector<64x64xbf16>, vector<64x64xbf16>, vector<64x64xf32> -> vector<64x64xf32>
    %48 = vector.broadcast %27 : vector<1x64xf32> to vector<64x64xf32>
    %49 = arith.addf %47, %48 : vector<64x64xf32>
    %cst_28 = arith.constant dense<0xFF800000> : vector<64xf32>
    %50 = vector.multi_reduction <maximumf>, %49, %cst_28 [1] : vector<64x64xf32> to vector<64xf32>
    %51 = vector.shape_cast %50 : vector<64xf32> to vector<64x1xf32>
    %52 = vector.broadcast %51 : vector<64x1xf32> to vector<64x64xf32>
    %53 = arith.subf %49, %52 : vector<64x64xf32>
    %54 = math.exp %53 : vector<64x64xf32>
    %cst_29 = arith.constant dense<0.000000e+00> : vector<64xf32>
    %55 = vector.multi_reduction <add>, %54, %cst_29 [1] : vector<64x64xf32> to vector<64xf32>
    %56 = vector.shape_cast %55 : vector<64xf32> to vector<64x1xf32>
    %57 = tpu.reciprocal %56 {approx = true} : vector<64x1xf32> -> vector<64x1xf32>
    %58 = vector.broadcast %57 : vector<64x1xf32> to vector<64x64xf32>
    %59 = arith.mulf %54, %58 : vector<64x64xf32>
    %60 = arith.truncf %59 : vector<64x64xf32> to vector<64x64xbf16>
    %cst_30 = arith.constant dense<0.000000e+00> : vector<64x64xf32>
    %61 = tpu.matmul %60, %46, %cst_30 {dimension_numbers = #tpu.dot_dimension_numbers<[1], [0], [0], [1], [0, 0, 1, 1], [], []>} : vector<64x64xbf16>, vector<64x64xbf16>, vector<64x64xf32> -> vector<64x64xf32>
    %62 = vector.extract_strided_slice %43 {offsets = [0, 64], sizes = [64, 64], strides = [1, 1]} : vector<64x256xbf16> to vector<64x64xbf16>
    %63 = vector.extract_strided_slice %44 {offsets = [0, 64], sizes = [64, 64], strides = [1, 1]} : vector<64x256xbf16> to vector<64x64xbf16>
    %cst_31 = arith.constant dense<0.000000e+00> : vector<64x64xf32>
    %64 = tpu.matmul %62, %28, %cst_31 {dimension_numbers = #tpu.dot_dimension_numbers<[1], [1], [0], [0], [0, 0, 1, 0], [], []>} : vector<64x64xbf16>, vector<64x64xbf16>, vector<64x64xf32> -> vector<64x64xf32>
    %65 = vector.broadcast %27 : vector<1x64xf32> to vector<64x64xf32>
    %66 = arith.addf %64, %65 : vector<64x64xf32>
    %cst_32 = arith.constant dense<0xFF800000> : vector<64xf32>
    %67 = vector.multi_reduction <maximumf>, %66, %cst_32 [1] : vector<64x64xf32> to vector<64xf32>
    %68 = vector.shape_cast %67 : vector<64xf32> to vector<64x1xf32>
    %69 = vector.broadcast %68 : vector<64x1xf32> to vector<64x64xf32>
    %70 = arith.subf %66, %69 : vector<64x64xf32>
    %71 = math.exp %70 : vector<64x64xf32>
    %cst_33 = arith.constant dense<0.000000e+00> : vector<64xf32>
    %72 = vector.multi_reduction <add>, %71, %cst_33 [1] : vector<64x64xf32> to vector<64xf32>
    %73 = vector.shape_cast %72 : vector<64xf32> to vector<64x1xf32>
    %74 = tpu.reciprocal %73 {approx = true} : vector<64x1xf32> -> vector<64x1xf32>
    %75 = vector.broadcast %74 : vector<64x1xf32> to vector<64x64xf32>
    %76 = arith.mulf %71, %75 : vector<64x64xf32>
    %77 = arith.truncf %76 : vector<64x64xf32> to vector<64x64xbf16>
    %cst_34 = arith.constant dense<0.000000e+00> : vector<64x64xf32>
    %78 = tpu.matmul %77, %63, %cst_34 {dimension_numbers = #tpu.dot_dimension_numbers<[1], [0], [0], [1], [0, 0, 1, 1], [], []>} : vector<64x64xbf16>, vector<64x64xbf16>, vector<64x64xf32> -> vector<64x64xf32>
    %79 = arith.addf %61, %78 : vector<64x64xf32>
    %80 = vector.extract_strided_slice %43 {offsets = [0, 128], sizes = [64, 64], strides = [1, 1]} : vector<64x256xbf16> to vector<64x64xbf16>
    %81 = vector.extract_strided_slice %44 {offsets = [0, 128], sizes = [64, 64], strides = [1, 1]} : vector<64x256xbf16> to vector<64x64xbf16>
    %cst_35 = arith.constant dense<0.000000e+00> : vector<64x64xf32>
    %82 = tpu.matmul %80, %28, %cst_35 {dimension_numbers = #tpu.dot_dimension_numbers<[1], [1], [0], [0], [0, 0, 1, 0], [], []>} : vector<64x64xbf16>, vector<64x64xbf16>, vector<64x64xf32> -> vector<64x64xf32>
    %83 = vector.broadcast %27 : vector<1x64xf32> to vector<64x64xf32>
    %84 = arith.addf %82, %83 : vector<64x64xf32>
    %cst_36 = arith.constant dense<0xFF800000> : vector<64xf32>
    %85 = vector.multi_reduction <maximumf>, %84, %cst_36 [1] : vector<64x64xf32> to vector<64xf32>
    %86 = vector.shape_cast %85 : vector<64xf32> to vector<64x1xf32>
    %87 = vector.broadcast %86 : vector<64x1xf32> to vector<64x64xf32>
    %88 = arith.subf %84, %87 : vector<64x64xf32>
    %89 = math.exp %88 : vector<64x64xf32>
    %cst_37 = arith.constant dense<0.000000e+00> : vector<64xf32>
    %90 = vector.multi_reduction <add>, %89, %cst_37 [1] : vector<64x64xf32> to vector<64xf32>
    %91 = vector.shape_cast %90 : vector<64xf32> to vector<64x1xf32>
    %92 = tpu.reciprocal %91 {approx = true} : vector<64x1xf32> -> vector<64x1xf32>
    %93 = vector.broadcast %92 : vector<64x1xf32> to vector<64x64xf32>
    %94 = arith.mulf %89, %93 : vector<64x64xf32>
    %95 = arith.truncf %94 : vector<64x64xf32> to vector<64x64xbf16>
    %cst_38 = arith.constant dense<0.000000e+00> : vector<64x64xf32>
    %96 = tpu.matmul %95, %81, %cst_38 {dimension_numbers = #tpu.dot_dimension_numbers<[1], [0], [0], [1], [0, 0, 1, 1], [], []>} : vector<64x64xbf16>, vector<64x64xbf16>, vector<64x64xf32> -> vector<64x64xf32>
    %97 = arith.addf %79, %96 : vector<64x64xf32>
    %98 = vector.extract_strided_slice %43 {offsets = [0, 192], sizes = [64, 64], strides = [1, 1]} : vector<64x256xbf16> to vector<64x64xbf16>
    %99 = vector.extract_strided_slice %44 {offsets = [0, 192], sizes = [64, 64], strides = [1, 1]} : vector<64x256xbf16> to vector<64x64xbf16>
    %cst_39 = arith.constant dense<0.000000e+00> : vector<64x64xf32>
    %100 = tpu.matmul %98, %28, %cst_39 {dimension_numbers = #tpu.dot_dimension_numbers<[1], [1], [0], [0], [0, 0, 1, 0], [], []>} : vector<64x64xbf16>, vector<64x64xbf16>, vector<64x64xf32> -> vector<64x64xf32>
    %101 = vector.broadcast %27 : vector<1x64xf32> to vector<64x64xf32>
    %102 = arith.addf %100, %101 : vector<64x64xf32>
    %cst_40 = arith.constant dense<0xFF800000> : vector<64xf32>
    %103 = vector.multi_reduction <maximumf>, %102, %cst_40 [1] : vector<64x64xf32> to vector<64xf32>
    %104 = vector.shape_cast %103 : vector<64xf32> to vector<64x1xf32>
    %105 = vector.broadcast %104 : vector<64x1xf32> to vector<64x64xf32>
    %106 = arith.subf %102, %105 : vector<64x64xf32>
    %107 = math.exp %106 : vector<64x64xf32>
    %cst_41 = arith.constant dense<0.000000e+00> : vector<64xf32>
    %108 = vector.multi_reduction <add>, %107, %cst_41 [1] : vector<64x64xf32> to vector<64xf32>
    %109 = vector.shape_cast %108 : vector<64xf32> to vector<64x1xf32>
    %110 = tpu.reciprocal %109 {approx = true} : vector<64x1xf32> -> vector<64x1xf32>
    %111 = vector.broadcast %110 : vector<64x1xf32> to vector<64x64xf32>
    %112 = arith.mulf %107, %111 : vector<64x64xf32>
    %113 = arith.truncf %112 : vector<64x64xf32> to vector<64x64xbf16>
    %cst_42 = arith.constant dense<0.000000e+00> : vector<64x64xf32>
    %114 = tpu.matmul %113, %99, %cst_42 {dimension_numbers = #tpu.dot_dimension_numbers<[1], [0], [0], [1], [0, 0, 1, 1], [], []>} : vector<64x64xbf16>, vector<64x64xbf16>, vector<64x64xf32> -> vector<64x64xf32>
    %115 = arith.addf %97, %114 : vector<64x64xf32>
    %116 = arith.addf %25, %115 : vector<64x64xf32>
    %c0_43 = arith.constant 0 : index
    %c0_44 = arith.constant 0 : index
    %c0_45 = arith.constant 0 : index
    %117 = vector.load %arg9[%c0_43, %c0_44, %c0_45] : memref<2x1x64xf32, #tpu.memory_space<vmem>>, vector<1x1x64xf32>
    %118 = vector.shape_cast %117 : vector<1x1x64xf32> to vector<1x64xf32>
    %119 = vector.broadcast %118 : vector<1x64xf32> to vector<64x64xf32>
    %120 = arith.addf %116, %119 : vector<64x64xf32>
    %c0_46 = arith.constant 0 : index
    %c0_47 = arith.constant 0 : index
    %c0_48 = arith.constant 0 : index
    %121 = vector.load %arg10[%c0_46, %c0_47, %c0_48] : memref<2x1x64xf32, #tpu.memory_space<vmem>>, vector<1x1x64xf32>
    %122 = vector.shape_cast %121 : vector<1x1x64xf32> to vector<1x64xf32>
    %c0_49 = arith.constant 0 : index
    %c0_50 = arith.constant 0 : index
    %c0_51 = arith.constant 0 : index
    %123 = vector.load %arg11[%c0_49, %c0_50, %c0_51] : memref<2x1x64xf32, #tpu.memory_space<vmem>>, vector<1x1x64xf32>
    %124 = vector.shape_cast %123 : vector<1x1x64xf32> to vector<1x64xf32>
    %cst_52 = arith.constant dense<0.000000e+00> : vector<64xf32>
    %125 = vector.multi_reduction <add>, %120, %cst_52 [1] : vector<64x64xf32> to vector<64xf32>
    %126 = vector.shape_cast %125 : vector<64xf32> to vector<64x1xf32>
    %cst_53 = arith.constant 6.400000e+01 : f32
    %127 = vector.broadcast %cst_53 : f32 to vector<64x1xf32>
    %128 = arith.divf %126, %127 : vector<64x1xf32>
    %129 = vector.broadcast %128 : vector<64x1xf32> to vector<64x64xf32>
    %130 = arith.subf %120, %129 : vector<64x64xf32>
    %131 = arith.mulf %130, %130 : vector<64x64xf32>
    %cst_54 = arith.constant dense<0.000000e+00> : vector<64xf32>
    %132 = vector.multi_reduction <add>, %131, %cst_54 [1] : vector<64x64xf32> to vector<64xf32>
    %133 = vector.shape_cast %132 : vector<64xf32> to vector<64x1xf32>
    %cst_55 = arith.constant 6.400000e+01 : f32
    %134 = vector.broadcast %cst_55 : f32 to vector<64x1xf32>
    %135 = arith.divf %133, %134 : vector<64x1xf32>
    %136 = vector.broadcast %128 : vector<64x1xf32> to vector<64x64xf32>
    %137 = arith.subf %120, %136 : vector<64x64xf32>
    %cst_56 = arith.constant 9.99999996E-13 : f32
    %138 = vector.broadcast %cst_56 : f32 to vector<64x1xf32>
    %139 = arith.addf %135, %138 : vector<64x1xf32>
    %140 = math.rsqrt %139 : vector<64x1xf32>
    %141 = vector.broadcast %140 : vector<64x1xf32> to vector<64x64xf32>
    %142 = arith.mulf %137, %141 : vector<64x64xf32>
    %143 = vector.broadcast %122 : vector<1x64xf32> to vector<64x64xf32>
    %144 = arith.mulf %142, %143 : vector<64x64xf32>
    %145 = vector.broadcast %124 : vector<1x64xf32> to vector<64x64xf32>
    %146 = arith.addf %144, %145 : vector<64x64xf32>
    %147 = arith.truncf %146 : vector<64x64xf32> to vector<64x64xbf16>
    %c0_57 = arith.constant 0 : index
    %c0_58 = arith.constant 0 : index
    %c0_59 = arith.constant 0 : index
    %148 = vector.load %arg12[%c0_57, %c0_58, %c0_59] : memref<2x64x256xbf16, #tpu.memory_space<vmem>>, vector<1x64x256xbf16>
    %149 = vector.shape_cast %148 : vector<1x64x256xbf16> to vector<64x256xbf16>
    %cst_60 = arith.constant dense<0.000000e+00> : vector<64x256xf32>
    %150 = tpu.matmul %147, %149, %cst_60 {dimension_numbers = #tpu.dot_dimension_numbers<[1], [0], [0], [1], [0, 0, 1, 1], [], []>} : vector<64x64xbf16>, vector<64x256xbf16>, vector<64x256xf32> -> vector<64x256xf32>
    %c0_61 = arith.constant 0 : index
    %c0_62 = arith.constant 0 : index
    %c0_63 = arith.constant 0 : index
    %151 = vector.load %arg13[%c0_61, %c0_62, %c0_63] : memref<2x1x256xf32, #tpu.memory_space<vmem>>, vector<1x1x256xf32>
    %152 = vector.shape_cast %151 : vector<1x1x256xf32> to vector<1x256xf32>
    %153 = vector.broadcast %152 : vector<1x256xf32> to vector<64x256xf32>
    %154 = arith.addf %150, %153 : vector<64x256xf32>
    %cst_64 = arith.constant 5.000000e-01 : f32
    %155 = vector.broadcast %cst_64 : f32 to vector<64x256xf32>
    %156 = arith.mulf %155, %154 : vector<64x256xf32>
    %cst_65 = arith.constant 4.471500e-02 : f32
    %157 = vector.broadcast %cst_65 : f32 to vector<64x256xf32>
    %158 = arith.mulf %157, %154 : vector<64x256xf32>
    %159 = arith.mulf %158, %154 : vector<64x256xf32>
    %160 = arith.mulf %159, %154 : vector<64x256xf32>
    %161 = arith.addf %154, %160 : vector<64x256xf32>
    %cst_66 = arith.constant 0.797884583 : f32
    %162 = vector.broadcast %cst_66 : f32 to vector<64x256xf32>
    %163 = arith.mulf %162, %161 : vector<64x256xf32>
    %164 = math.tanh %163 : vector<64x256xf32>
    %cst_67 = arith.constant 1.000000e+00 : f32
    %165 = vector.broadcast %cst_67 : f32 to vector<64x256xf32>
    %166 = arith.addf %165, %164 : vector<64x256xf32>
    %167 = arith.mulf %156, %166 : vector<64x256xf32>
    %168 = arith.truncf %167 : vector<64x256xf32> to vector<64x256xbf16>
    %c0_68 = arith.constant 0 : index
    %c0_69 = arith.constant 0 : index
    %c0_70 = arith.constant 0 : index
    %169 = vector.load %arg14[%c0_68, %c0_69, %c0_70] : memref<2x256x64xbf16, #tpu.memory_space<vmem>>, vector<1x256x64xbf16>
    %170 = vector.shape_cast %169 : vector<1x256x64xbf16> to vector<256x64xbf16>
    %cst_71 = arith.constant dense<0.000000e+00> : vector<64x64xf32>
    %171 = tpu.matmul %168, %170, %cst_71 {dimension_numbers = #tpu.dot_dimension_numbers<[1], [0], [0], [1], [0, 0, 1, 1], [], []>} : vector<64x256xbf16>, vector<256x64xbf16>, vector<64x64xf32> -> vector<64x64xf32>
    %c0_72 = arith.constant 0 : index
    %c0_73 = arith.constant 0 : index
    %c0_74 = arith.constant 0 : index
    %172 = vector.load %arg15[%c0_72, %c0_73, %c0_74] : memref<2x1x64xf32, #tpu.memory_space<vmem>>, vector<1x1x64xf32>
    %173 = vector.shape_cast %172 : vector<1x1x64xf32> to vector<1x64xf32>
    %174 = vector.broadcast %173 : vector<1x64xf32> to vector<64x64xf32>
    %175 = arith.addf %171, %174 : vector<64x64xf32>
    %176 = arith.addf %146, %175 : vector<64x64xf32>
    %c0_75 = arith.constant 0 : index
    %c0_76 = arith.constant 0 : index
    %c0_77 = arith.constant 0 : index
    %177 = vector.load %arg16[%c0_75, %c0_76, %c0_77] : memref<2x1x64xf32, #tpu.memory_space<vmem>>, vector<1x1x64xf32>
    %178 = vector.shape_cast %177 : vector<1x1x64xf32> to vector<1x64xf32>
    %c0_78 = arith.constant 0 : index
    %c0_79 = arith.constant 0 : index
    %c0_80 = arith.constant 0 : index
    %179 = vector.load %arg17[%c0_78, %c0_79, %c0_80] : memref<2x1x64xf32, #tpu.memory_space<vmem>>, vector<1x1x64xf32>
    %180 = vector.shape_cast %179 : vector<1x1x64xf32> to vector<1x64xf32>
    %cst_81 = arith.constant dense<0.000000e+00> : vector<64xf32>
    %181 = vector.multi_reduction <add>, %176, %cst_81 [1] : vector<64x64xf32> to vector<64xf32>
    %182 = vector.shape_cast %181 : vector<64xf32> to vector<64x1xf32>
    %cst_82 = arith.constant 6.400000e+01 : f32
    %183 = vector.broadcast %cst_82 : f32 to vector<64x1xf32>
    %184 = arith.divf %182, %183 : vector<64x1xf32>
    %185 = vector.broadcast %184 : vector<64x1xf32> to vector<64x64xf32>
    %186 = arith.subf %176, %185 : vector<64x64xf32>
    %187 = arith.mulf %186, %186 : vector<64x64xf32>
    %cst_83 = arith.constant dense<0.000000e+00> : vector<64xf32>
    %188 = vector.multi_reduction <add>, %187, %cst_83 [1] : vector<64x64xf32> to vector<64xf32>
    %189 = vector.shape_cast %188 : vector<64xf32> to vector<64x1xf32>
    %cst_84 = arith.constant 6.400000e+01 : f32
    %190 = vector.broadcast %cst_84 : f32 to vector<64x1xf32>
    %191 = arith.divf %189, %190 : vector<64x1xf32>
    %192 = vector.broadcast %184 : vector<64x1xf32> to vector<64x64xf32>
    %193 = arith.subf %176, %192 : vector<64x64xf32>
    %cst_85 = arith.constant 9.99999996E-13 : f32
    %194 = vector.broadcast %cst_85 : f32 to vector<64x1xf32>
    %195 = arith.addf %191, %194 : vector<64x1xf32>
    %196 = math.rsqrt %195 : vector<64x1xf32>
    %197 = vector.broadcast %196 : vector<64x1xf32> to vector<64x64xf32>
    %198 = arith.mulf %193, %197 : vector<64x64xf32>
    %199 = vector.broadcast %178 : vector<1x64xf32> to vector<64x64xf32>
    %200 = arith.mulf %198, %199 : vector<64x64xf32>
    %201 = vector.broadcast %180 : vector<1x64xf32> to vector<64x64xf32>
    %202 = arith.addf %200, %201 : vector<64x64xf32>
    %203 = arith.truncf %202 : vector<64x64xf32> to vector<64x64xbf16>
    %c1 = arith.constant 1 : index
    %c0_86 = arith.constant 0 : index
    %c0_87 = arith.constant 0 : index
    %204 = vector.load %arg5[%c1, %c0_86, %c0_87] : memref<2x64x256xbf16, #tpu.memory_space<vmem>>, vector<1x64x256xbf16>
    %205 = vector.shape_cast %204 : vector<1x64x256xbf16> to vector<64x256xbf16>
    %cst_88 = arith.constant dense<0.000000e+00> : vector<64x256xf32>
    %206 = tpu.matmul %203, %205, %cst_88 {dimension_numbers = #tpu.dot_dimension_numbers<[1], [0], [0], [1], [0, 0, 1, 1], [], []>} : vector<64x64xbf16>, vector<64x256xbf16>, vector<64x256xf32> -> vector<64x256xf32>
    %c1_89 = arith.constant 1 : index
    %c0_90 = arith.constant 0 : index
    %c0_91 = arith.constant 0 : index
    %207 = vector.load %arg6[%c1_89, %c0_90, %c0_91] : memref<2x1x256xf32, #tpu.memory_space<vmem>>, vector<1x1x256xf32>
    %208 = vector.shape_cast %207 : vector<1x1x256xf32> to vector<1x256xf32>
    %209 = vector.broadcast %208 : vector<1x256xf32> to vector<64x256xf32>
    %210 = arith.addf %206, %209 : vector<64x256xf32>
    %c1_92 = arith.constant 1 : index
    %c0_93 = arith.constant 0 : index
    %c0_94 = arith.constant 0 : index
    %211 = vector.load %arg7[%c1_92, %c0_93, %c0_94] : memref<2x64x256xbf16, #tpu.memory_space<vmem>>, vector<1x64x256xbf16>
    %212 = vector.shape_cast %211 : vector<1x64x256xbf16> to vector<64x256xbf16>
    %cst_95 = arith.constant dense<0.000000e+00> : vector<64x256xf32>
    %213 = tpu.matmul %203, %212, %cst_95 {dimension_numbers = #tpu.dot_dimension_numbers<[1], [0], [0], [1], [0, 0, 1, 1], [], []>} : vector<64x64xbf16>, vector<64x256xbf16>, vector<64x256xf32> -> vector<64x256xf32>
    %c1_96 = arith.constant 1 : index
    %c0_97 = arith.constant 0 : index
    %c0_98 = arith.constant 0 : index
    %214 = vector.load %arg8[%c1_96, %c0_97, %c0_98] : memref<2x1x256xf32, #tpu.memory_space<vmem>>, vector<1x1x256xf32>
    %215 = vector.shape_cast %214 : vector<1x1x256xf32> to vector<1x256xf32>
    %216 = vector.broadcast %215 : vector<1x256xf32> to vector<64x256xf32>
    %217 = arith.addf %213, %216 : vector<64x256xf32>
    %218 = arith.truncf %210 : vector<64x256xf32> to vector<64x256xbf16>
    %219 = arith.truncf %217 : vector<64x256xf32> to vector<64x256xbf16>
    %220 = vector.extract_strided_slice %218 {offsets = [0, 0], sizes = [64, 64], strides = [1, 1]} : vector<64x256xbf16> to vector<64x64xbf16>
    %221 = vector.extract_strided_slice %219 {offsets = [0, 0], sizes = [64, 64], strides = [1, 1]} : vector<64x256xbf16> to vector<64x64xbf16>
    %cst_99 = arith.constant dense<0.000000e+00> : vector<64x64xf32>
    %222 = tpu.matmul %220, %203, %cst_99 {dimension_numbers = #tpu.dot_dimension_numbers<[1], [1], [0], [0], [0, 0, 1, 0], [], []>} : vector<64x64xbf16>, vector<64x64xbf16>, vector<64x64xf32> -> vector<64x64xf32>
    %223 = vector.broadcast %27 : vector<1x64xf32> to vector<64x64xf32>
    %224 = arith.addf %222, %223 : vector<64x64xf32>
    %cst_100 = arith.constant dense<0xFF800000> : vector<64xf32>
    %225 = vector.multi_reduction <maximumf>, %224, %cst_100 [1] : vector<64x64xf32> to vector<64xf32>
    %226 = vector.shape_cast %225 : vector<64xf32> to vector<64x1xf32>
    %227 = vector.broadcast %226 : vector<64x1xf32> to vector<64x64xf32>
    %228 = arith.subf %224, %227 : vector<64x64xf32>
    %229 = math.exp %228 : vector<64x64xf32>
    %cst_101 = arith.constant dense<0.000000e+00> : vector<64xf32>
    %230 = vector.multi_reduction <add>, %229, %cst_101 [1] : vector<64x64xf32> to vector<64xf32>
    %231 = vector.shape_cast %230 : vector<64xf32> to vector<64x1xf32>
    %232 = tpu.reciprocal %231 {approx = true} : vector<64x1xf32> -> vector<64x1xf32>
    %233 = vector.broadcast %232 : vector<64x1xf32> to vector<64x64xf32>
    %234 = arith.mulf %229, %233 : vector<64x64xf32>
    %235 = arith.truncf %234 : vector<64x64xf32> to vector<64x64xbf16>
    %cst_102 = arith.constant dense<0.000000e+00> : vector<64x64xf32>
    %236 = tpu.matmul %235, %221, %cst_102 {dimension_numbers = #tpu.dot_dimension_numbers<[1], [0], [0], [1], [0, 0, 1, 1], [], []>} : vector<64x64xbf16>, vector<64x64xbf16>, vector<64x64xf32> -> vector<64x64xf32>
    %237 = vector.extract_strided_slice %218 {offsets = [0, 64], sizes = [64, 64], strides = [1, 1]} : vector<64x256xbf16> to vector<64x64xbf16>
    %238 = vector.extract_strided_slice %219 {offsets = [0, 64], sizes = [64, 64], strides = [1, 1]} : vector<64x256xbf16> to vector<64x64xbf16>
    %cst_103 = arith.constant dense<0.000000e+00> : vector<64x64xf32>
    %239 = tpu.matmul %237, %203, %cst_103 {dimension_numbers = #tpu.dot_dimension_numbers<[1], [1], [0], [0], [0, 0, 1, 0], [], []>} : vector<64x64xbf16>, vector<64x64xbf16>, vector<64x64xf32> -> vector<64x64xf32>
    %240 = vector.broadcast %27 : vector<1x64xf32> to vector<64x64xf32>
    %241 = arith.addf %239, %240 : vector<64x64xf32>
    %cst_104 = arith.constant dense<0xFF800000> : vector<64xf32>
    %242 = vector.multi_reduction <maximumf>, %241, %cst_104 [1] : vector<64x64xf32> to vector<64xf32>
    %243 = vector.shape_cast %242 : vector<64xf32> to vector<64x1xf32>
    %244 = vector.broadcast %243 : vector<64x1xf32> to vector<64x64xf32>
    %245 = arith.subf %241, %244 : vector<64x64xf32>
    %246 = math.exp %245 : vector<64x64xf32>
    %cst_105 = arith.constant dense<0.000000e+00> : vector<64xf32>
    %247 = vector.multi_reduction <add>, %246, %cst_105 [1] : vector<64x64xf32> to vector<64xf32>
    %248 = vector.shape_cast %247 : vector<64xf32> to vector<64x1xf32>
    %249 = tpu.reciprocal %248 {approx = true} : vector<64x1xf32> -> vector<64x1xf32>
    %250 = vector.broadcast %249 : vector<64x1xf32> to vector<64x64xf32>
    %251 = arith.mulf %246, %250 : vector<64x64xf32>
    %252 = arith.truncf %251 : vector<64x64xf32> to vector<64x64xbf16>
    %cst_106 = arith.constant dense<0.000000e+00> : vector<64x64xf32>
    %253 = tpu.matmul %252, %238, %cst_106 {dimension_numbers = #tpu.dot_dimension_numbers<[1], [0], [0], [1], [0, 0, 1, 1], [], []>} : vector<64x64xbf16>, vector<64x64xbf16>, vector<64x64xf32> -> vector<64x64xf32>
    %254 = arith.addf %236, %253 : vector<64x64xf32>
    %255 = vector.extract_strided_slice %218 {offsets = [0, 128], sizes = [64, 64], strides = [1, 1]} : vector<64x256xbf16> to vector<64x64xbf16>
    %256 = vector.extract_strided_slice %219 {offsets = [0, 128], sizes = [64, 64], strides = [1, 1]} : vector<64x256xbf16> to vector<64x64xbf16>
    %cst_107 = arith.constant dense<0.000000e+00> : vector<64x64xf32>
    %257 = tpu.matmul %255, %203, %cst_107 {dimension_numbers = #tpu.dot_dimension_numbers<[1], [1], [0], [0], [0, 0, 1, 0], [], []>} : vector<64x64xbf16>, vector<64x64xbf16>, vector<64x64xf32> -> vector<64x64xf32>
    %258 = vector.broadcast %27 : vector<1x64xf32> to vector<64x64xf32>
    %259 = arith.addf %257, %258 : vector<64x64xf32>
    %cst_108 = arith.constant dense<0xFF800000> : vector<64xf32>
    %260 = vector.multi_reduction <maximumf>, %259, %cst_108 [1] : vector<64x64xf32> to vector<64xf32>
    %261 = vector.shape_cast %260 : vector<64xf32> to vector<64x1xf32>
    %262 = vector.broadcast %261 : vector<64x1xf32> to vector<64x64xf32>
    %263 = arith.subf %259, %262 : vector<64x64xf32>
    %264 = math.exp %263 : vector<64x64xf32>
    %cst_109 = arith.constant dense<0.000000e+00> : vector<64xf32>
    %265 = vector.multi_reduction <add>, %264, %cst_109 [1] : vector<64x64xf32> to vector<64xf32>
    %266 = vector.shape_cast %265 : vector<64xf32> to vector<64x1xf32>
    %267 = tpu.reciprocal %266 {approx = true} : vector<64x1xf32> -> vector<64x1xf32>
    %268 = vector.broadcast %267 : vector<64x1xf32> to vector<64x64xf32>
    %269 = arith.mulf %264, %268 : vector<64x64xf32>
    %270 = arith.truncf %269 : vector<64x64xf32> to vector<64x64xbf16>
    %cst_110 = arith.constant dense<0.000000e+00> : vector<64x64xf32>
    %271 = tpu.matmul %270, %256, %cst_110 {dimension_numbers = #tpu.dot_dimension_numbers<[1], [0], [0], [1], [0, 0, 1, 1], [], []>} : vector<64x64xbf16>, vector<64x64xbf16>, vector<64x64xf32> -> vector<64x64xf32>
    %272 = arith.addf %254, %271 : vector<64x64xf32>
    %273 = vector.extract_strided_slice %218 {offsets = [0, 192], sizes = [64, 64], strides = [1, 1]} : vector<64x256xbf16> to vector<64x64xbf16>
    %274 = vector.extract_strided_slice %219 {offsets = [0, 192], sizes = [64, 64], strides = [1, 1]} : vector<64x256xbf16> to vector<64x64xbf16>
    %cst_111 = arith.constant dense<0.000000e+00> : vector<64x64xf32>
    %275 = tpu.matmul %273, %203, %cst_111 {dimension_numbers = #tpu.dot_dimension_numbers<[1], [1], [0], [0], [0, 0, 1, 0], [], []>} : vector<64x64xbf16>, vector<64x64xbf16>, vector<64x64xf32> -> vector<64x64xf32>
    %276 = vector.broadcast %27 : vector<1x64xf32> to vector<64x64xf32>
    %277 = arith.addf %275, %276 : vector<64x64xf32>
    %cst_112 = arith.constant dense<0xFF800000> : vector<64xf32>
    %278 = vector.multi_reduction <maximumf>, %277, %cst_112 [1] : vector<64x64xf32> to vector<64xf32>
    %279 = vector.shape_cast %278 : vector<64xf32> to vector<64x1xf32>
    %280 = vector.broadcast %279 : vector<64x1xf32> to vector<64x64xf32>
    %281 = arith.subf %277, %280 : vector<64x64xf32>
    %282 = math.exp %281 : vector<64x64xf32>
    %cst_113 = arith.constant dense<0.000000e+00> : vector<64xf32>
    %283 = vector.multi_reduction <add>, %282, %cst_113 [1] : vector<64x64xf32> to vector<64xf32>
    %284 = vector.shape_cast %283 : vector<64xf32> to vector<64x1xf32>
    %285 = tpu.reciprocal %284 {approx = true} : vector<64x1xf32> -> vector<64x1xf32>
    %286 = vector.broadcast %285 : vector<64x1xf32> to vector<64x64xf32>
    %287 = arith.mulf %282, %286 : vector<64x64xf32>
    %288 = arith.truncf %287 : vector<64x64xf32> to vector<64x64xbf16>
    %cst_114 = arith.constant dense<0.000000e+00> : vector<64x64xf32>
    %289 = tpu.matmul %288, %274, %cst_114 {dimension_numbers = #tpu.dot_dimension_numbers<[1], [0], [0], [1], [0, 0, 1, 1], [], []>} : vector<64x64xbf16>, vector<64x64xbf16>, vector<64x64xf32> -> vector<64x64xf32>
    %290 = arith.addf %272, %289 : vector<64x64xf32>
    %291 = arith.addf %202, %290 : vector<64x64xf32>
    %c1_115 = arith.constant 1 : index
    %c0_116 = arith.constant 0 : index
    %c0_117 = arith.constant 0 : index
    %292 = vector.load %arg9[%c1_115, %c0_116, %c0_117] : memref<2x1x64xf32, #tpu.memory_space<vmem>>, vector<1x1x64xf32>
    %293 = vector.shape_cast %292 : vector<1x1x64xf32> to vector<1x64xf32>
    %294 = vector.broadcast %293 : vector<1x64xf32> to vector<64x64xf32>
    %295 = arith.addf %291, %294 : vector<64x64xf32>
    %c1_118 = arith.constant 1 : index
    %c0_119 = arith.constant 0 : index
    %c0_120 = arith.constant 0 : index
    %296 = vector.load %arg10[%c1_118, %c0_119, %c0_120] : memref<2x1x64xf32, #tpu.memory_space<vmem>>, vector<1x1x64xf32>
    %297 = vector.shape_cast %296 : vector<1x1x64xf32> to vector<1x64xf32>
    %c1_121 = arith.constant 1 : index
    %c0_122 = arith.constant 0 : index
    %c0_123 = arith.constant 0 : index
    %298 = vector.load %arg11[%c1_121, %c0_122, %c0_123] : memref<2x1x64xf32, #tpu.memory_space<vmem>>, vector<1x1x64xf32>
    %299 = vector.shape_cast %298 : vector<1x1x64xf32> to vector<1x64xf32>
    %cst_124 = arith.constant dense<0.000000e+00> : vector<64xf32>
    %300 = vector.multi_reduction <add>, %295, %cst_124 [1] : vector<64x64xf32> to vector<64xf32>
    %301 = vector.shape_cast %300 : vector<64xf32> to vector<64x1xf32>
    %cst_125 = arith.constant 6.400000e+01 : f32
    %302 = vector.broadcast %cst_125 : f32 to vector<64x1xf32>
    %303 = arith.divf %301, %302 : vector<64x1xf32>
    %304 = vector.broadcast %303 : vector<64x1xf32> to vector<64x64xf32>
    %305 = arith.subf %295, %304 : vector<64x64xf32>
    %306 = arith.mulf %305, %305 : vector<64x64xf32>
    %cst_126 = arith.constant dense<0.000000e+00> : vector<64xf32>
    %307 = vector.multi_reduction <add>, %306, %cst_126 [1] : vector<64x64xf32> to vector<64xf32>
    %308 = vector.shape_cast %307 : vector<64xf32> to vector<64x1xf32>
    %cst_127 = arith.constant 6.400000e+01 : f32
    %309 = vector.broadcast %cst_127 : f32 to vector<64x1xf32>
    %310 = arith.divf %308, %309 : vector<64x1xf32>
    %311 = vector.broadcast %303 : vector<64x1xf32> to vector<64x64xf32>
    %312 = arith.subf %295, %311 : vector<64x64xf32>
    %cst_128 = arith.constant 9.99999996E-13 : f32
    %313 = vector.broadcast %cst_128 : f32 to vector<64x1xf32>
    %314 = arith.addf %310, %313 : vector<64x1xf32>
    %315 = math.rsqrt %314 : vector<64x1xf32>
    %316 = vector.broadcast %315 : vector<64x1xf32> to vector<64x64xf32>
    %317 = arith.mulf %312, %316 : vector<64x64xf32>
    %318 = vector.broadcast %297 : vector<1x64xf32> to vector<64x64xf32>
    %319 = arith.mulf %317, %318 : vector<64x64xf32>
    %320 = vector.broadcast %299 : vector<1x64xf32> to vector<64x64xf32>
    %321 = arith.addf %319, %320 : vector<64x64xf32>
    %322 = arith.truncf %321 : vector<64x64xf32> to vector<64x64xbf16>
    %c1_129 = arith.constant 1 : index
    %c0_130 = arith.constant 0 : index
    %c0_131 = arith.constant 0 : index
    %323 = vector.load %arg12[%c1_129, %c0_130, %c0_131] : memref<2x64x256xbf16, #tpu.memory_space<vmem>>, vector<1x64x256xbf16>
    %324 = vector.shape_cast %323 : vector<1x64x256xbf16> to vector<64x256xbf16>
    %cst_132 = arith.constant dense<0.000000e+00> : vector<64x256xf32>
    %325 = tpu.matmul %322, %324, %cst_132 {dimension_numbers = #tpu.dot_dimension_numbers<[1], [0], [0], [1], [0, 0, 1, 1], [], []>} : vector<64x64xbf16>, vector<64x256xbf16>, vector<64x256xf32> -> vector<64x256xf32>
    %c1_133 = arith.constant 1 : index
    %c0_134 = arith.constant 0 : index
    %c0_135 = arith.constant 0 : index
    %326 = vector.load %arg13[%c1_133, %c0_134, %c0_135] : memref<2x1x256xf32, #tpu.memory_space<vmem>>, vector<1x1x256xf32>
    %327 = vector.shape_cast %326 : vector<1x1x256xf32> to vector<1x256xf32>
    %328 = vector.broadcast %327 : vector<1x256xf32> to vector<64x256xf32>
    %329 = arith.addf %325, %328 : vector<64x256xf32>
    %cst_136 = arith.constant 5.000000e-01 : f32
    %330 = vector.broadcast %cst_136 : f32 to vector<64x256xf32>
    %331 = arith.mulf %330, %329 : vector<64x256xf32>
    %cst_137 = arith.constant 4.471500e-02 : f32
    %332 = vector.broadcast %cst_137 : f32 to vector<64x256xf32>
    %333 = arith.mulf %332, %329 : vector<64x256xf32>
    %334 = arith.mulf %333, %329 : vector<64x256xf32>
    %335 = arith.mulf %334, %329 : vector<64x256xf32>
    %336 = arith.addf %329, %335 : vector<64x256xf32>
    %cst_138 = arith.constant 0.797884583 : f32
    %337 = vector.broadcast %cst_138 : f32 to vector<64x256xf32>
    %338 = arith.mulf %337, %336 : vector<64x256xf32>
    %339 = math.tanh %338 : vector<64x256xf32>
    %cst_139 = arith.constant 1.000000e+00 : f32
    %340 = vector.broadcast %cst_139 : f32 to vector<64x256xf32>
    %341 = arith.addf %340, %339 : vector<64x256xf32>
    %342 = arith.mulf %331, %341 : vector<64x256xf32>
    %343 = arith.truncf %342 : vector<64x256xf32> to vector<64x256xbf16>
    %c1_140 = arith.constant 1 : index
    %c0_141 = arith.constant 0 : index
    %c0_142 = arith.constant 0 : index
    %344 = vector.load %arg14[%c1_140, %c0_141, %c0_142] : memref<2x256x64xbf16, #tpu.memory_space<vmem>>, vector<1x256x64xbf16>
    %345 = vector.shape_cast %344 : vector<1x256x64xbf16> to vector<256x64xbf16>
    %cst_143 = arith.constant dense<0.000000e+00> : vector<64x64xf32>
    %346 = tpu.matmul %343, %345, %cst_143 {dimension_numbers = #tpu.dot_dimension_numbers<[1], [0], [0], [1], [0, 0, 1, 1], [], []>} : vector<64x256xbf16>, vector<256x64xbf16>, vector<64x64xf32> -> vector<64x64xf32>
    %c1_144 = arith.constant 1 : index
    %c0_145 = arith.constant 0 : index
    %c0_146 = arith.constant 0 : index
    %347 = vector.load %arg15[%c1_144, %c0_145, %c0_146] : memref<2x1x64xf32, #tpu.memory_space<vmem>>, vector<1x1x64xf32>
    %348 = vector.shape_cast %347 : vector<1x1x64xf32> to vector<1x64xf32>
    %349 = vector.broadcast %348 : vector<1x64xf32> to vector<64x64xf32>
    %350 = arith.addf %346, %349 : vector<64x64xf32>
    %351 = arith.addf %321, %350 : vector<64x64xf32>
    %c1_147 = arith.constant 1 : index
    %c0_148 = arith.constant 0 : index
    %c0_149 = arith.constant 0 : index
    %352 = vector.load %arg16[%c1_147, %c0_148, %c0_149] : memref<2x1x64xf32, #tpu.memory_space<vmem>>, vector<1x1x64xf32>
    %353 = vector.shape_cast %352 : vector<1x1x64xf32> to vector<1x64xf32>
    %c1_150 = arith.constant 1 : index
    %c0_151 = arith.constant 0 : index
    %c0_152 = arith.constant 0 : index
    %354 = vector.load %arg17[%c1_150, %c0_151, %c0_152] : memref<2x1x64xf32, #tpu.memory_space<vmem>>, vector<1x1x64xf32>
    %355 = vector.shape_cast %354 : vector<1x1x64xf32> to vector<1x64xf32>
    %cst_153 = arith.constant dense<0.000000e+00> : vector<64xf32>
    %356 = vector.multi_reduction <add>, %351, %cst_153 [1] : vector<64x64xf32> to vector<64xf32>
    %357 = vector.shape_cast %356 : vector<64xf32> to vector<64x1xf32>
    %cst_154 = arith.constant 6.400000e+01 : f32
    %358 = vector.broadcast %cst_154 : f32 to vector<64x1xf32>
    %359 = arith.divf %357, %358 : vector<64x1xf32>
    %360 = vector.broadcast %359 : vector<64x1xf32> to vector<64x64xf32>
    %361 = arith.subf %351, %360 : vector<64x64xf32>
    %362 = arith.mulf %361, %361 : vector<64x64xf32>
    %cst_155 = arith.constant dense<0.000000e+00> : vector<64xf32>
    %363 = vector.multi_reduction <add>, %362, %cst_155 [1] : vector<64x64xf32> to vector<64xf32>
    %364 = vector.shape_cast %363 : vector<64xf32> to vector<64x1xf32>
    %cst_156 = arith.constant 6.400000e+01 : f32
    %365 = vector.broadcast %cst_156 : f32 to vector<64x1xf32>
    %366 = arith.divf %364, %365 : vector<64x1xf32>
    %367 = vector.broadcast %359 : vector<64x1xf32> to vector<64x64xf32>
    %368 = arith.subf %351, %367 : vector<64x64xf32>
    %cst_157 = arith.constant 9.99999996E-13 : f32
    %369 = vector.broadcast %cst_157 : f32 to vector<64x1xf32>
    %370 = arith.addf %366, %369 : vector<64x1xf32>
    %371 = math.rsqrt %370 : vector<64x1xf32>
    %372 = vector.broadcast %371 : vector<64x1xf32> to vector<64x64xf32>
    %373 = arith.mulf %368, %372 : vector<64x64xf32>
    %374 = vector.broadcast %353 : vector<1x64xf32> to vector<64x64xf32>
    %375 = arith.mulf %373, %374 : vector<64x64xf32>
    %376 = vector.broadcast %355 : vector<1x64xf32> to vector<64x64xf32>
    %377 = arith.addf %375, %376 : vector<64x64xf32>
    %c0_158 = arith.constant 0 : index
    %c0_159 = arith.constant 0 : index
    %c0_160 = arith.constant 0 : index
    %378 = vector.load %arg18[%c0_158, %c0_159, %c0_160] : memref<1x64x64xf32, #tpu.memory_space<vmem>>, vector<1x64x64xf32>
    %379 = vector.shape_cast %378 : vector<1x64x64xf32> to vector<64x64xf32>
    %380 = vector.shape_cast %377 : vector<64x64xf32> to vector<1x64x64xf32>
    tpu.vector_store %arg18[%c0_158, %c0_159, %c0_160], %380 {strides = array<i32>} : memref<1x64x64xf32, #tpu.memory_space<vmem>>, vector<1x64x64xf32>,
    return
  }
  func.func @transform_0(%arg0: i32) -> (i32, i32, i32) {
    %c0_i32 = arith.constant 0 : i32
    %c0_i32_0 = arith.constant 0 : i32
    %c0_i32_1 = arith.constant 0 : i32
    return %arg0, %c0_i32, %c0_i32_0 : i32, i32, i32
  }
  func.func @transform_1(%arg0: i32) -> (i32, i32, i32) {
    %c0_i32 = arith.constant 0 : i32
    %c0_i32_0 = arith.constant 0 : i32
    %c0_i32_1 = arith.constant 0 : i32
    return %arg0, %c0_i32, %c0_i32_0 : i32, i32, i32
  }
  func.func @transform_2(%arg0: i32) -> (i32, i32) {
    %c0_i32 = arith.constant 0 : i32
    %c0_i32_0 = arith.constant 0 : i32
    %c0_i32_1 = arith.constant 0 : i32
    return %c0_i32, %c0_i32_0 : i32, i32
  }
  func.func @transform_3(%arg0: i32) -> (i32, i32) {
    %c0_i32 = arith.constant 0 : i32
    %c0_i32_0 = arith.constant 0 : i32
    %c0_i32_1 = arith.constant 0 : i32
    return %c0_i32, %c0_i32_0 : i32, i32
  }
  func.func @transform_4(%arg0: i32) -> (i32, i32, i32) {
    %c0_i32 = arith.constant 0 : i32
    %c0_i32_0 = arith.constant 0 : i32
    %c0_i32_1 = arith.constant 0 : i32
    %c0_i32_2 = arith.constant 0 : i32
    return %c0_i32, %c0_i32_0, %c0_i32_1 : i32, i32, i32
  }
  func.func @transform_5(%arg0: i32) -> (i32, i32, i32) {
    %c0_i32 = arith.constant 0 : i32
    %c0_i32_0 = arith.constant 0 : i32
    %c0_i32_1 = arith.constant 0 : i32
    %c0_i32_2 = arith.constant 0 : i32
    return %c0_i32, %c0_i32_0, %c0_i32_1 : i32, i32, i32
  }
  func.func @transform_6(%arg0: i32) -> (i32, i32, i32) {
    %c0_i32 = arith.constant 0 : i32
    %c0_i32_0 = arith.constant 0 : i32
    %c0_i32_1 = arith.constant 0 : i32
    %c0_i32_2 = arith.constant 0 : i32
    return %c0_i32, %c0_i32_0, %c0_i32_1 : i32, i32, i32
  }
  func.func @transform_7(%arg0: i32) -> (i32, i32, i32) {
    %c0_i32 = arith.constant 0 : i32
    %c0_i32_0 = arith.constant 0 : i32
    %c0_i32_1 = arith.constant 0 : i32
    %c0_i32_2 = arith.constant 0 : i32
    return %c0_i32, %c0_i32_0, %c0_i32_1 : i32, i32, i32
  }
  func.func @transform_8(%arg0: i32) -> (i32, i32, i32) {
    %c0_i32 = arith.constant 0 : i32
    %c0_i32_0 = arith.constant 0 : i32
    %c0_i32_1 = arith.constant 0 : i32
    %c0_i32_2 = arith.constant 0 : i32
    return %c0_i32, %c0_i32_0, %c0_i32_1 : i32, i32, i32
  }
  func.func @transform_9(%arg0: i32) -> (i32, i32, i32) {
    %c0_i32 = arith.constant 0 : i32
    %c0_i32_0 = arith.constant 0 : i32
    %c0_i32_1 = arith.constant 0 : i32
    %c0_i32_2 = arith.constant 0 : i32
    return %c0_i32, %c0_i32_0, %c0_i32_1 : i32, i32, i32
  }
  func.func @transform_10(%arg0: i32) -> (i32, i32, i32) {
    %c0_i32 = arith.constant 0 : i32
    %c0_i32_0 = arith.constant 0 : i32
    %c0_i32_1 = arith.constant 0 : i32
    %c0_i32_2 = arith.constant 0 : i32
    return %c0_i32, %c0_i32_0, %c0_i32_1 : i32, i32, i32
  }
  func.func @transform_11(%arg0: i32) -> (i32, i32, i32) {
    %c0_i32 = arith.constant 0 : i32
    %c0_i32_0 = arith.constant 0 : i32
    %c0_i32_1 = arith.constant 0 : i32
    %c0_i32_2 = arith.constant 0 : i32
    return %c0_i32, %c0_i32_0, %c0_i32_1 : i32, i32, i32
  }
  func.func @transform_12(%arg0: i32) -> (i32, i32, i32) {
    %c0_i32 = arith.constant 0 : i32
    %c0_i32_0 = arith.constant 0 : i32
    %c0_i32_1 = arith.constant 0 : i32
    %c0_i32_2 = arith.constant 0 : i32
    return %c0_i32, %c0_i32_0, %c0_i32_1 : i32, i32, i32
  }
  func.func @transform_13(%arg0: i32) -> (i32, i32, i32) {
    %c0_i32 = arith.constant 0 : i32
    %c0_i32_0 = arith.constant 0 : i32
    %c0_i32_1 = arith.constant 0 : i32
    %c0_i32_2 = arith.constant 0 : i32
    return %c0_i32, %c0_i32_0, %c0_i32_1 : i32, i32, i32
  }
  func.func @transform_14(%arg0: i32) -> (i32, i32, i32) {
    %c0_i32 = arith.constant 0 : i32
    %c0_i32_0 = arith.constant 0 : i32
    %c0_i32_1 = arith.constant 0 : i32
    %c0_i32_2 = arith.constant 0 : i32
    return %c0_i32, %c0_i32_0, %c0_i32_1 : i32, i32, i32
  }
  func.func @transform_15(%arg0: i32) -> (i32, i32, i32) {
    %c0_i32 = arith.constant 0 : i32
    %c0_i32_0 = arith.constant 0 : i32
    %c0_i32_1 = arith.constant 0 : i32
    %c0_i32_2 = arith.constant 0 : i32
    return %c0_i32, %c0_i32_0, %c0_i32_1 : i32, i32, i32
  }
  func.func @transform_16(%arg0: i32) -> (i32, i32, i32) {
    %c0_i32 = arith.constant 0 : i32
    %c0_i32_0 = arith.constant 0 : i32
    %c0_i32_1 = arith.constant 0 : i32
    %c0_i32_2 = arith.constant 0 : i32
    return %c0_i32, %c0_i32_0, %c0_i32_1 : i32, i32, i32
  }
  func.func @transform_17(%arg0: i32) -> (i32, i32, i32) {
    %c0_i32 = arith.constant 0 : i32
    %c0_i32_0 = arith.constant 0 : i32
    %c0_i32_1 = arith.constant 0 : i32
    return %arg0, %c0_i32, %c0_i32_0 : i32, i32, i32
  }
}

</mosaic_0001>

<llo_original>
// kernel: vanilla_bert_forward.1
$region0: #{vanilla_bert_forward.1}
  #allocation0 [shape = 'u32[]', space=smem, size = 0x4, offset = 0x4, fixed_abs, tag = 'smem constant byte address 0x4 - core index']
  #allocation1 [shape = 'u32[144,128]{1,0:T(1,128)}', space=vmem, size = 0x12000, scoped, tag = 'internal scratch']
  %s0 = inlined_call_operand.vmem [shape: f32[2,64,64], index: 0, kind: input, shape index: {}]
  %s1 = inlined_call_operand.vmem [shape: f32[2,1,64], index: 1, kind: input, shape index: {}]
  %s2 = inlined_call_operand.vmem [shape: f32[1,64], index: 2, kind: input, shape index: {}]
  %s3 = inlined_call_operand.vmem [shape: f32[1,64], index: 3, kind: input, shape index: {}]
  %s4 = inlined_call_operand.vmem [shape: bf16[2,64,256], index: 4, kind: input, shape index: {}]
  %s5 = inlined_call_operand.vmem [shape: f32[2,1,256], index: 5, kind: input, shape index: {}]
  %s6 = inlined_call_operand.vmem [shape: bf16[2,64,256], index: 6, kind: input, shape index: {}]
  %s7 = inlined_call_operand.vmem [shape: f32[2,1,256], index: 7, kind: input, shape index: {}]
  %s8 = inlined_call_operand.vmem [shape: f32[2,1,64], index: 8, kind: input, shape index: {}]
  %s9 = inlined_call_operand.vmem [shape: f32[2,1,64], index: 9, kind: input, shape index: {}]
  %s10 = inlined_call_operand.vmem [shape: f32[2,1,64], index: 10, kind: input, shape index: {}]
  %s11 = inlined_call_operand.vmem [shape: bf16[2,64,256], index: 11, kind: input, shape index: {}]
  %s12 = inlined_call_operand.vmem [shape: f32[2,1,256], index: 12, kind: input, shape index: {}]
  %s13 = inlined_call_operand.vmem [shape: bf16[2,256,64], index: 13, kind: input, shape index: {}]
  %s14 = inlined_call_operand.vmem [shape: f32[2,1,64], index: 14, kind: input, shape index: {}]
  %s15 = inlined_call_operand.vmem [shape: f32[2,1,64], index: 15, kind: input, shape index: {}]
  %s16 = inlined_call_operand.vmem [shape: f32[2,1,64], index: 16, kind: input, shape index: {}]
  %s17 = inlined_call_operand.vmem [shape: f32[2,64,64], index: 17, kind: output, shape index: {}]
  %s18 = sld [smem:[#allocation0]]
  $region101: #{vanilla_bert_forward.1} parent=0
    _
  %s20 = ssub.s32 1, %s18
  %s21 = scalar_select 0, %s20, %s18
  loop: start=0, step=1, limit=4
  $region2: #{vanilla_bert_forward.1} parent=0 // loop_pre_header
    _
  $region3: #{vanilla_bert_forward.1} parent=0 // loop_header
    %s23 = sphi 0, %s27
    %p24 = scmp.ge.s32.totalorder %s23, 4
    %s33 = sphi 0, %s35
    %s36 = sphi 0, %s33
    %s37 = sphi 0, %s36
    %s53 = sphi 0, %s37
    %s59 = sphi 0, %s61
    %s62 = sphi 0, %s59
    %s63 = sphi 0, %s62
    %s79 = sphi 0, %s63
    %s83 = sphi 0, %s83
    %s85 = sphi 0, %s83
    %s86 = sphi 0, %s85
    %s100 = sphi 0, %s86
    %s104 = sphi 0, %s104
    %s106 = sphi 0, %s104
    %s107 = sphi 0, %s106
    %s121 = sphi 0, %s107
    %s125 = sphi 0, %s125
    %s127 = sphi 0, %s125
    %s128 = sphi 0, %s127
    %s142 = sphi 0, %s128
    %s146 = sphi 0, %s146
    %s148 = sphi 0, %s146
    %s149 = sphi 0, %s148
    %s163 = sphi 0, %s149
    %s167 = sphi 0, %s167
    %s169 = sphi 0, %s167
    %s170 = sphi 0, %s169
    %s184 = sphi 0, %s170
    %s188 = sphi 0, %s188
    %s190 = sphi 0, %s188
    %s191 = sphi 0, %s190
    %s205 = sphi 0, %s191
    %s209 = sphi 0, %s209
    %s211 = sphi 0, %s209
    %s212 = sphi 0, %s211
    %s226 = sphi 0, %s212
    %s230 = sphi 0, %s230
    %s232 = sphi 0, %s230
    %s233 = sphi 0, %s232
    %s247 = sphi 0, %s233
    %s251 = sphi 0, %s251
    %s253 = sphi 0, %s251
    %s254 = sphi 0, %s253
    %s268 = sphi 0, %s254
    %s272 = sphi 0, %s272
    %s274 = sphi 0, %s272
    %s275 = sphi 0, %s274
    %s289 = sphi 0, %s275
    %s293 = sphi 0, %s293
    %s295 = sphi 0, %s293
    %s296 = sphi 0, %s295
    %s310 = sphi 0, %s296
    %s314 = sphi 0, %s314
    %s316 = sphi 0, %s314
    %s317 = sphi 0, %s316
    %s331 = sphi 0, %s317
    %s335 = sphi 0, %s335
    %s337 = sphi 0, %s335
    %s338 = sphi 0, %s337
    %s352 = sphi 0, %s338
    %s356 = sphi 0, %s356
    %s358 = sphi 0, %s356
    %s359 = sphi 0, %s358
    %s373 = sphi 0, %s359
    %s377 = sphi 0, %s377
    %s379 = sphi 0, %s377
    %s380 = sphi 0, %s379
    %s394 = sphi 0, %s380
    %s400 = sphi 0, %s402
    %s403 = sphi 0, %s400
    %s404 = sphi 0, %s403
    %s420 = sphi 0, %s404
  $region4: #{vanilla_bert_forward.1} parent=0 // loop_header_branch
    %26 = sbr.rel (%p24) target = $region8
  $region5: #{vanilla_bert_forward.1} parent=0 // loop_body
    %s28 = ssub.s32 %s23, 1
    %s29 = ssub.s32 %s23, 2
    %s30 = sadd.s32 %s23, 1
    %s31 = ssub.s32 %s23, %s30
    %p32 = scmp.eq.s32.totalorder %s31, 0
    %s34 = sadd.s32 %s33, 1
    %s35 = scalar_select %p32, %s33, %s34
    %p38 = pneg %p32
    %p39 = scmp.eq.s32.totalorder %s23, 1
    %p40 = por %p38, %p39
    %p41 = scmp.ne.s32.totalorder %s33, %s36
    %p42 = scmp.eq.s32.totalorder %s23, 0
    %p43 = por %p41, %p42
    %p44 = scmp.ne.s32.totalorder %s33, %s36
    %p45 = scmp.eq.s32.totalorder %s28, 1
    %p46 = por %p44, %p45
    %p47 = scmp.ne.s32.totalorder %s36, %s37
    %p48 = scmp.eq.s32.totalorder %s28, 0
    %p49 = por %p47, %p48
    %p50 = scmp.ne.s32.totalorder %s36, %s37
    %p51 = scmp.eq.s32.totalorder %s29, 1
    %p52 = por %p50, %p51
    %p54 = scmp.ne.s32.totalorder %s37, %s53
    %p55 = scmp.eq.s32.totalorder %s29, 0
    %p56 = por %p54, %p55
    %s57 = ssub.s32 %s23, %s30
    %p58 = scmp.eq.s32.totalorder %s57, 0
    %s60 = sadd.s32 %s59, 1
    %s61 = scalar_select %p58, %s59, %s60
    %p64 = pneg %p58
    %p65 = scmp.eq.s32.totalorder %s23, 1
    %p66 = por %p64, %p65
    %p67 = scmp.ne.s32.totalorder %s59, %s62
    %p68 = scmp.eq.s32.totalorder %s23, 0
    %p69 = por %p67, %p68
    %p70 = scmp.ne.s32.totalorder %s59, %s62
    %p71 = scmp.eq.s32.totalorder %s28, 1
    %p72 = por %p70, %p71
    %p73 = scmp.ne.s32.totalorder %s62, %s63
    %p74 = scmp.eq.s32.totalorder %s28, 0
    %p75 = por %p73, %p74
    %p76 = scmp.ne.s32.totalorder %s62, %s63
    %p77 = scmp.eq.s32.totalorder %s29, 1
    %p78 = por %p76, %p77
    %p80 = scmp.ne.s32.totalorder %s63, %s79
    %p81 = scmp.eq.s32.totalorder %s29, 0
    %p82 = por %p80, %p81
    %s84 = sadd.s32 %s83, 1
    %p87 = scmp.eq.s32.totalorder %s23, 1
    %p88 = scmp.ne.s32.totalorder %s83, %s85
    %p89 = scmp.eq.s32.totalorder %s23, 0
    %p90 = por %p88, %p89
    %p91 = scmp.ne.s32.totalorder %s83, %s85
    %p92 = scmp.eq.s32.totalorder %s28, 1
    %p93 = por %p91, %p92
    %p94 = scmp.ne.s32.totalorder %s85, %s86
    %p95 = scmp.eq.s32.totalorder %s28, 0
    %p96 = por %p94, %p95
    %p97 = scmp.ne.s32.totalorder %s85, %s86
    %p98 = scmp.eq.s32.totalorder %s29, 1
    %p99 = por %p97, %p98
    %p101 = scmp.ne.s32.totalorder %s86, %s100
    %p102 = scmp.eq.s32.totalorder %s29, 0
    %p103 = por %p101, %p102
    %s105 = sadd.s32 %s104, 1
    %p108 = scmp.eq.s32.totalorder %s23, 1
    %p109 = scmp.ne.s32.totalorder %s104, %s106
    %p110 = scmp.eq.s32.totalorder %s23, 0
    %p111 = por %p109, %p110
    %p112 = scmp.ne.s32.totalorder %s104, %s106
    %p113 = scmp.eq.s32.totalorder %s28, 1
    %p114 = por %p112, %p113
    %p115 = scmp.ne.s32.totalorder %s106, %s107
    %p116 = scmp.eq.s32.totalorder %s28, 0
    %p117 = por %p115, %p116
    %p118 = scmp.ne.s32.totalorder %s106, %s107
    %p119 = scmp.eq.s32.totalorder %s29, 1
    %p120 = por %p118, %p119
    %p122 = scmp.ne.s32.totalorder %s107, %s121
    %p123 = scmp.eq.s32.totalorder %s29, 0
    %p124 = por %p122, %p123
    %s126 = sadd.s32 %s125, 1
    %p129 = scmp.eq.s32.totalorder %s23, 1
    %p130 = scmp.ne.s32.totalorder %s125, %s127
    %p131 = scmp.eq.s32.totalorder %s23, 0
    %p132 = por %p130, %p131
    %p133 = scmp.ne.s32.totalorder %s125, %s127
    %p134 = scmp.eq.s32.totalorder %s28, 1
    %p135 = por %p133, %p134
    %p136 = scmp.ne.s32.totalorder %s127, %s128
    %p137 = scmp.eq.s32.totalorder %s28, 0
    %p138 = por %p136, %p137
    %p139 = scmp.ne.s32.totalorder %s127, %s128
    %p140 = scmp.eq.s32.totalorder %s29, 1
    %p141 = por %p139, %p140
    %p143 = scmp.ne.s32.totalorder %s128, %s142
    %p144 = scmp.eq.s32.totalorder %s29, 0
    %p145 = por %p143, %p144
    %s147 = sadd.s32 %s146, 1
    %p150 = scmp.eq.s32.totalorder %s23, 1
    %p151 = scmp.ne.s32.totalorder %s146, %s148
    %p152 = scmp.eq.s32.totalorder %s23, 0
    %p153 = por %p151, %p152
    %p154 = scmp.ne.s32.totalorder %s146, %s148
    %p155 = scmp.eq.s32.totalorder %s28, 1
    %p156 = por %p154, %p155
    %p157 = scmp.ne.s32.totalorder %s148, %s149
    %p158 = scmp.eq.s32.totalorder %s28, 0
    %p159 = por %p157, %p158
    %p160 = scmp.ne.s32.totalorder %s148, %s149
    %p161 = scmp.eq.s32.totalorder %s29, 1
    %p162 = por %p160, %p161
    %p164 = scmp.ne.s32.totalorder %s149, %s163
    %p165 = scmp.eq.s32.totalorder %s29, 0
    %p166 = por %p164, %p165
    %s168 = sadd.s32 %s167, 1
    %p171 = scmp.eq.s32.totalorder %s23, 1
    %p172 = scmp.ne.s32.totalorder %s167, %s169
    %p173 = scmp.eq.s32.totalorder %s23, 0
    %p174 = por %p172, %p173
    %p175 = scmp.ne.s32.totalorder %s167, %s169
    %p176 = scmp.eq.s32.totalorder %s28, 1
    %p177 = por %p175, %p176
    %p178 = scmp.ne.s32.totalorder %s169, %s170
    %p179 = scmp.eq.s32.totalorder %s28, 0
    %p180 = por %p178, %p179
    %p181 = scmp.ne.s32.totalorder %s169, %s170
    %p182 = scmp.eq.s32.totalorder %s29, 1
    %p183 = por %p181, %p182
    %p185 = scmp.ne.s32.totalorder %s170, %s184
    %p186 = scmp.eq.s32.totalorder %s29, 0
    %p187 = por %p185, %p186
    %s189 = sadd.s32 %s188, 1
    %p192 = scmp.eq.s32.totalorder %s23, 1
    %p193 = scmp.ne.s32.totalorder %s188, %s190
    %p194 = scmp.eq.s32.totalorder %s23, 0
    %p195 = por %p193, %p194
    %p196 = scmp.ne.s32.totalorder %s188, %s190
    %p197 = scmp.eq.s32.totalorder %s28, 1
    %p198 = por %p196, %p197
    %p199 = scmp.ne.s32.totalorder %s190, %s191
    %p200 = scmp.eq.s32.totalorder %s28, 0
    %p201 = por %p199, %p200
    %p202 = scmp.ne.s32.totalorder %s190, %s191
    %p203 = scmp.eq.s32.totalorder %s29, 1
    %p204 = por %p202, %p203
    %p206 = scmp.ne.s32.totalorder %s191, %s205
    %p207 = scmp.eq.s32.totalorder %s29, 0
    %p208 = por %p206, %p207
    %s210 = sadd.s32 %s209, 1
    %p213 = scmp.eq.s32.totalorder %s23, 1
    %p214 = scmp.ne.s32.totalorder %s209, %s211
    %p215 = scmp.eq.s32.totalorder %s23, 0
    %p216 = por %p214, %p215
    %p217 = scmp.ne.s32.totalorder %s209, %s211
    %p218 = scmp.eq.s32.totalorder %s28, 1
    %p219 = por %p217, %p218
    %p220 = scmp.ne.s32.totalorder %s211, %s212
    %p221 = scmp.eq.s32.totalorder %s28, 0
    %p222 = por %p220, %p221
    %p223 = scmp.ne.s32.totalorder %s211, %s212
    %p224 = scmp.eq.s32.totalorder %s29, 1
    %p225 = por %p223, %p224
    %p227 = scmp.ne.s32.totalorder %s212, %s226
    %p228 = scmp.eq.s32.totalorder %s29, 0
    %p229 = por %p227, %p228
    %s231 = sadd.s32 %s230, 1
    %p234 = scmp.eq.s32.totalorder %s23, 1
    %p235 = scmp.ne.s32.totalorder %s230, %s232
    %p236 = scmp.eq.s32.totalorder %s23, 0
    %p237 = por %p235, %p236
    %p238 = scmp.ne.s32.totalorder %s230, %s232
    %p239 = scmp.eq.s32.totalorder %s28, 1
    %p240 = por %p238, %p239
    %p241 = scmp.ne.s32.totalorder %s232, %s233
    %p242 = scmp.eq.s32.totalorder %s28, 0
    %p243 = por %p241, %p242
    %p244 = scmp.ne.s32.totalorder %s232, %s233
    %p245 = scmp.eq.s32.totalorder %s29, 1
    %p246 = por %p244, %p245
    %p248 = scmp.ne.s32.totalorder %s233, %s247
    %p249 = scmp.eq.s32.totalorder %s29, 0
    %p250 = por %p248, %p249
    %s252 = sadd.s32 %s251, 1
    %p255 = scmp.eq.s32.totalorder %s23, 1
    %p256 = scmp.ne.s32.totalorder %s251, %s253
    %p257 = scmp.eq.s32.totalorder %s23, 0
    %p258 = por %p256, %p257
    %p259 = scmp.ne.s32.totalorder %s251, %s253
    %p260 = scmp.eq.s32.totalorder %s28, 1
    %p261 = por %p259, %p260
    %p262 = scmp.ne.s32.totalorder %s253, %s254
    %p263 = scmp.eq.s32.totalorder %s28, 0
    %p264 = por %p262, %p263
    %p265 = scmp.ne.s32.totalorder %s253, %s254
    %p266 = scmp.eq.s32.totalorder %s29, 1
    %p267 = por %p265, %p266
    %p269 = scmp.ne.s32.totalorder %s254, %s268
    %p270 = scmp.eq.s32.totalorder %s29, 0
    %p271 = por %p269, %p270
    %s273 = sadd.s32 %s272, 1
    %p276 = scmp.eq.s32.totalorder %s23, 1
    %p277 = scmp.ne.s32.totalorder %s272, %s274
    %p278 = scmp.eq.s32.totalorder %s23, 0
    %p279 = por %p277, %p278
    %p280 = scmp.ne.s32.totalorder %s272, %s274
    %p281 = scmp.eq.s32.totalorder %s28, 1
    %p282 = por %p280, %p281
    %p283 = scmp.ne.s32.totalorder %s274, %s275
    %p284 = scmp.eq.s32.totalorder %s28, 0
    %p285 = por %p283, %p284
    %p286 = scmp.ne.s32.totalorder %s274, %s275
    %p287 = scmp.eq.s32.totalorder %s29, 1
    %p288 = por %p286, %p287
    %p290 = scmp.ne.s32.totalorder %s275, %s289
    %p291 = scmp.eq.s32.totalorder %s29, 0
    %p292 = por %p290, %p291
    %s294 = sadd.s32 %s293, 1
    %p297 = scmp.eq.s32.totalorder %s23, 1
    %p298 = scmp.ne.s32.totalorder %s293, %s295
    %p299 = scmp.eq.s32.totalorder %s23, 0
    %p300 = por %p298, %p299
    %p301 = scmp.ne.s32.totalorder %s293, %s295
    %p302 = scmp.eq.s32.totalorder %s28, 1
    %p303 = por %p301, %p302
    %p304 = scmp.ne.s32.totalorder %s295, %s296
    %p305 = scmp.eq.s32.totalorder %s28, 0
    %p306 = por %p304, %p305
    %p307 = scmp.ne.s32.totalorder %s295, %s296
    %p308 = scmp.eq.s32.totalorder %s29, 1
    %p309 = por %p307, %p308
    %p311 = scmp.ne.s32.totalorder %s296, %s310
    %p312 = scmp.eq.s32.totalorder %s29, 0
    %p313 = por %p311, %p312
    %s315 = sadd.s32 %s314, 1
    %p318 = scmp.eq.s32.totalorder %s23, 1
    %p319 = scmp.ne.s32.totalorder %s314, %s316
    %p320 = scmp.eq.s32.totalorder %s23, 0
    %p321 = por %p319, %p320
    %p322 = scmp.ne.s32.totalorder %s314, %s316
    %p323 = scmp.eq.s32.totalorder %s28, 1
    %p324 = por %p322, %p323
    %p325 = scmp.ne.s32.totalorder %s316, %s317
    %p326 = scmp.eq.s32.totalorder %s28, 0
    %p327 = por %p325, %p326
    %p328 = scmp.ne.s32.totalorder %s316, %s317
    %p329 = scmp.eq.s32.totalorder %s29, 1
    %p330 = por %p328, %p329
    %p332 = scmp.ne.s32.totalorder %s317, %s331
    %p333 = scmp.eq.s32.totalorder %s29, 0
    %p334 = por %p332, %p333
    %s336 = sadd.s32 %s335, 1
    %p339 = scmp.eq.s32.totalorder %s23, 1
    %p340 = scmp.ne.s32.totalorder %s335, %s337
    %p341 = scmp.eq.s32.totalorder %s23, 0
    %p342 = por %p340, %p341
    %p343 = scmp.ne.s32.totalorder %s335, %s337
    %p344 = scmp.eq.s32.totalorder %s28, 1
    %p345 = por %p343, %p344
    %p346 = scmp.ne.s32.totalorder %s337, %s338
    %p347 = scmp.eq.s32.totalorder %s28, 0
    %p348 = por %p346, %p347
    %p349 = scmp.ne.s32.totalorder %s337, %s338
    %p350 = scmp.eq.s32.totalorder %s29, 1
    %p351 = por %p349, %p350
    %p353 = scmp.ne.s32.totalorder %s338, %s352
    %p354 = scmp.eq.s32.totalorder %s29, 0
    %p355 = por %p353, %p354
    %s357 = sadd.s32 %s356, 1
    %p360 = scmp.eq.s32.totalorder %s23, 1
    %p361 = scmp.ne.s32.totalorder %s356, %s358
    %p362 = scmp.eq.s32.totalorder %s23, 0
    %p363 = por %p361, %p362
    %p364 = scmp.ne.s32.totalorder %s356, %s358
    %p365 = scmp.eq.s32.totalorder %s28, 1
    %p366 = por %p364, %p365
    %p367 = scmp.ne.s32.totalorder %s358, %s359
    %p368 = scmp.eq.s32.totalorder %s28, 0
    %p369 = por %p367, %p368
    %p370 = scmp.ne.s32.totalorder %s358, %s359
    %p371 = scmp.eq.s32.totalorder %s29, 1
    %p372 = por %p370, %p371
    %p374 = scmp.ne.s32.totalorder %s359, %s373
    %p375 = scmp.eq.s32.totalorder %s29, 0
    %p376 = por %p374, %p375
    %s378 = sadd.s32 %s377, 1
    %p381 = scmp.eq.s32.totalorder %s23, 1
    %p382 = scmp.ne.s32.totalorder %s377, %s379
    %p383 = scmp.eq.s32.totalorder %s23, 0
    %p384 = por %p382, %p383
    %p385 = scmp.ne.s32.totalorder %s377, %s379
    %p386 = scmp.eq.s32.totalorder %s28, 1
    %p387 = por %p385, %p386
    %p388 = scmp.ne.s32.totalorder %s379, %s380
    %p389 = scmp.eq.s32.totalorder %s28, 0
    %p390 = por %p388, %p389
    %p391 = scmp.ne.s32.totalorder %s379, %s380
    %p392 = scmp.eq.s32.totalorder %s29, 1
    %p393 = por %p391, %p392
    %p395 = scmp.ne.s32.totalorder %s380, %s394
    %p396 = scmp.eq.s32.totalorder %s29, 0
    %p397 = por %p395, %p396
    %s398 = ssub.s32 %s23, %s30
    %p399 = scmp.eq.s32.totalorder %s398, 0
    %s401 = sadd.s32 %s400, 1
    %s402 = scalar_select %p399, %s400, %s401
    %p405 = pneg %p399
    %p406 = scmp.eq.s32.totalorder %s23, 1
    %p407 = por %p405, %p406
    %p408 = scmp.ne.s32.totalorder %s400, %s403
    %p409 = scmp.eq.s32.totalorder %s23, 0
    %p410 = por %p408, %p409
    %p411 = scmp.ne.s32.totalorder %s400, %s403
    %p412 = scmp.eq.s32.totalorder %s28, 1
    %p413 = por %p411, %p412
    %p414 = scmp.ne.s32.totalorder %s403, %s404
    %p415 = scmp.eq.s32.totalorder %s28, 0
    %p416 = por %p414, %p415
    %p417 = scmp.ne.s32.totalorder %s403, %s404
    %p418 = scmp.eq.s32.totalorder %s29, 1
    %p419 = por %p417, %p418
    %p421 = scmp.ne.s32.totalorder %s404, %s420
    %p422 = scmp.eq.s32.totalorder %s29, 0
    %p423 = por %p421, %p422
    %p424 = scmp.le.s32.totalorder 1, %s23
    %p425 = scmp.lt.s32.totalorder %s23, 3
    %p426 = pnand %p424, %p425
    %p427 = pneg %p426
    // Predicated region
    $region9: #{vanilla_bert_forward.1} parent=5 // pred_check
      _
    $region10: #{vanilla_bert_forward.1} parent=5 // pred_check_branch
      %429 = sbr.rel (%p426) target = $region12
    $region11: #{vanilla_bert_forward.1} parent=5 // pred_region
      %s430 = ssub.s32 %s23, 1
      // Predicated region
      $region13: #{vanilla_bert_forward.1} parent=11 // pred_check
        %p431 = pneg %p96
      $region14: #{vanilla_bert_forward.1} parent=11 // pred_check_branch
        %433 = sbr.rel (%p431) target = $region16
      $region15: #{vanilla_bert_forward.1} parent=11 // pred_region
        _
      $region16: #{vanilla_bert_forward.1} parent=11 // pred_fallthru
        _
      // Predicated region
      $region17: #{vanilla_bert_forward.1} parent=11 // pred_check
        %p434 = pneg %p117
      $region18: #{vanilla_bert_forward.1} parent=11 // pred_check_branch
        %436 = sbr.rel (%p434) target = $region20
      $region19: #{vanilla_bert_forward.1} parent=11 // pred_region
        _
      $region20: #{vanilla_bert_forward.1} parent=11 // pred_fallthru
        _
      // Predicated region
      $region21: #{vanilla_bert_forward.1} parent=11 // pred_check
        %p437 = pneg %p138
      $region22: #{vanilla_bert_forward.1} parent=11 // pred_check_branch
        %439 = sbr.rel (%p437) target = $region24
      $region23: #{vanilla_bert_forward.1} parent=11 // pred_region
        _
      $region24: #{vanilla_bert_forward.1} parent=11 // pred_fallthru
        _
      // Predicated region
      $region25: #{vanilla_bert_forward.1} parent=11 // pred_check
        %p440 = pneg %p159
      $region26: #{vanilla_bert_forward.1} parent=11 // pred_check_branch
        %442 = sbr.rel (%p440) target = $region28
      $region27: #{vanilla_bert_forward.1} parent=11 // pred_region
        _
      $region28: #{vanilla_bert_forward.1} parent=11 // pred_fallthru
        _
      // Predicated region
      $region29: #{vanilla_bert_forward.1} parent=11 // pred_check
        %p443 = pneg %p180
      $region30: #{vanilla_bert_forward.1} parent=11 // pred_check_branch
        %445 = sbr.rel (%p443) target = $region32
      $region31: #{vanilla_bert_forward.1} parent=11 // pred_region
        _
      $region32: #{vanilla_bert_forward.1} parent=11 // pred_fallthru
        _
      // Predicated region
      $region33: #{vanilla_bert_forward.1} parent=11 // pred_check
        %p446 = pneg %p201
      $region34: #{vanilla_bert_forward.1} parent=11 // pred_check_branch
        %448 = sbr.rel (%p446) target = $region36
      $region35: #{vanilla_bert_forward.1} parent=11 // pred_region
        _
      $region36: #{vanilla_bert_forward.1} parent=11 // pred_fallthru
        _
      // Predicated region
      $region37: #{vanilla_bert_forward.1} parent=11 // pred_check
        %p449 = pneg %p222
      $region38: #{vanilla_bert_forward.1} parent=11 // pred_check_branch
        %451 = sbr.rel (%p449) target = $region40
      $region39: #{vanilla_bert_forward.1} parent=11 // pred_region
        _
      $region40: #{vanilla_bert_forward.1} parent=11 // pred_fallthru
        _
      // Predicated region
      $region41: #{vanilla_bert_forward.1} parent=11 // pred_check
        %p452 = pneg %p243
      $region42: #{vanilla_bert_forward.1} parent=11 // pred_check_branch
        %454 = sbr.rel (%p452) target = $region44
      $region43: #{vanilla_bert_forward.1} parent=11 // pred_region
        _
      $region44: #{vanilla_bert_forward.1} parent=11 // pred_fallthru
        _
      // Predicated region
      $region45: #{vanilla_bert_forward.1} parent=11 // pred_check
        %p455 = pneg %p264
      $region46: #{vanilla_bert_forward.1} parent=11 // pred_check_branch
        %457 = sbr.rel (%p455) target = $region48
      $region47: #{vanilla_bert_forward.1} parent=11 // pred_region
        _
      $region48: #{vanilla_bert_forward.1} parent=11 // pred_fallthru
        _
      // Predicated region
      $region49: #{vanilla_bert_forward.1} parent=11 // pred_check
        %p458 = pneg %p285
      $region50: #{vanilla_bert_forward.1} parent=11 // pred_check_branch
        %460 = sbr.rel (%p458) target = $region52
      $region51: #{vanilla_bert_forward.1} parent=11 // pred_region
        _
      $region52: #{vanilla_bert_forward.1} parent=11 // pred_fallthru
        _
      // Predicated region
      $region53: #{vanilla_bert_forward.1} parent=11 // pred_check
        %p461 = pneg %p306
      $region54: #{vanilla_bert_forward.1} parent=11 // pred_check_branch
        %463 = sbr.rel (%p461) target = $region56
      $region55: #{vanilla_bert_forward.1} parent=11 // pred_region
        _
      $region56: #{vanilla_bert_forward.1} parent=11 // pred_fallthru
        _
      // Predicated region
      $region57: #{vanilla_bert_forward.1} parent=11 // pred_check
        %p464 = pneg %p327
      $region58: #{vanilla_bert_forward.1} parent=11 // pred_check_branch
        %466 = sbr.rel (%p464) target = $region60
      $region59: #{vanilla_bert_forward.1} parent=11 // pred_region
        _
      $region60: #{vanilla_bert_forward.1} parent=11 // pred_fallthru
        _
      // Predicated region
      $region61: #{vanilla_bert_forward.1} parent=11 // pred_check
        %p467 = pneg %p348
      $region62: #{vanilla_bert_forward.1} parent=11 // pred_check_branch
        %469 = sbr.rel (%p467) target = $region64
      $region63: #{vanilla_bert_forward.1} parent=11 // pred_region
        _
      $region64: #{vanilla_bert_forward.1} parent=11 // pred_fallthru
        _
      // Predicated region
      $region65: #{vanilla_bert_forward.1} parent=11 // pred_check
        %p470 = pneg %p369
      $region66: #{vanilla_bert_forward.1} parent=11 // pred_check_branch
        %472 = sbr.rel (%p470) target = $region68
      $region67: #{vanilla_bert_forward.1} parent=11 // pred_region
        _
      $region68: #{vanilla_bert_forward.1} parent=11 // pred_fallthru
        _
      // Predicated region
      $region69: #{vanilla_bert_forward.1} parent=11 // pred_check
        %p473 = pneg %p390
      $region70: #{vanilla_bert_forward.1} parent=11 // pred_check_branch
        %475 = sbr.rel (%p473) target = $region72
      $region71: #{vanilla_bert_forward.1} parent=11 // pred_region
        _
      $region72: #{vanilla_bert_forward.1} parent=11 // pred_fallthru
        _
    $region12: #{vanilla_bert_forward.1} parent=5 // pred_fallthru
      _
    %p476 = scmp.lt.s32.totalorder %s23, 2
    // Predicated region
    $region73: #{vanilla_bert_forward.1} parent=5 // pred_check
      %p477 = pneg %p476
    $region74: #{vanilla_bert_forward.1} parent=5 // pred_check_branch
      %479 = sbr.rel (%p477) target = $region76
    $region75: #{vanilla_bert_forward.1} parent=5 // pred_region
      // Predicated region
      $region77: #{vanilla_bert_forward.1} parent=75 // pred_check
        %p480 = pneg %p43
      $region78: #{vanilla_bert_forward.1} parent=75 // pred_check_branch
        %482 = sbr.rel (%p480) target = $region80
      $region79: #{vanilla_bert_forward.1} parent=75 // pred_region
        %p483 = scmp.lt.s32.totalorder %s23, 1
        %s484 = scalar_select %p483, %s23, 1
        %s485 = smul.addr %s484, 8
        %s486 = smul.addr %s485, 8
        %s487 = scalar_lea.vmem %s0, %s486
      $region80: #{vanilla_bert_forward.1} parent=75 // pred_fallthru
        _
      // Predicated region
      $region81: #{vanilla_bert_forward.1} parent=75 // pred_check
        %p488 = pneg %p69
      $region82: #{vanilla_bert_forward.1} parent=75 // pred_check_branch
        %490 = sbr.rel (%p488) target = $region84
      $region83: #{vanilla_bert_forward.1} parent=75 // pred_region
        %p491 = scmp.lt.s32.totalorder %s23, 1
        %s492 = scalar_select %p491, %s23, 1
        %s493 = scalar_lea.vmem %s1, %s492
      $region84: #{vanilla_bert_forward.1} parent=75 // pred_fallthru
        _
    $region76: #{vanilla_bert_forward.1} parent=5 // pred_fallthru
      _
    %p494 = scmp.le.s32.totalorder 1, %s23
    %p495 = scmp.lt.s32.totalorder %s23, 3
    %p496 = pnand %p494, %p495
    %p497 = pneg %p496
    // Predicated region
    $region85: #{vanilla_bert_forward.1} parent=5 // pred_check
      _
    $region86: #{vanilla_bert_forward.1} parent=5 // pred_check_branch
      %499 = sbr.rel (%p496) target = $region88
    $region87: #{vanilla_bert_forward.1} parent=5 // pred_region
      %s500 = ssub.s32 %s23, 1
      %p501 = scmp.lt.s32.totalorder %s28, 1
      %s502 = scalar_select %p501, %s28, 1
      %s503 = smul.addr %s502, 8
      %s504 = smul.addr %s503, 8
      %s505 = scalar_lea.vmem %s0, %s504
      %p506 = pneg %p49
      %p507 = pneg %p46
      %p508 = scmp.lt.s32.totalorder %s28, 1
      %s509 = scalar_select %p508, %s28, 1
      %s510 = scalar_lea.vmem %s1, %s509
      %p511 = pneg %p75
      %p512 = pneg %p72
      %p513 = pneg %p96
      %p514 = pneg %p93
      %p515 = pneg %p117
      %p516 = pneg %p114
      %p517 = pneg %p138
      %p518 = pneg %p135
      %p519 = pneg %p159
      %p520 = pneg %p156
      %p521 = pneg %p180
      %p522 = pneg %p177
      %p523 = pneg %p201
      %p524 = pneg %p198
      %p525 = pneg %p222
      %p526 = pneg %p219
      %p527 = pneg %p243
      %p528 = pneg %p240
      %p529 = pneg %p264
      %p530 = pneg %p261
      %p531 = pneg %p285
      %p532 = pneg %p282
      %p533 = pneg %p306
      %p534 = pneg %p303
      %p535 = pneg %p327
      %p536 = pneg %p324
      %p537 = pneg %p348
      %p538 = pneg %p345
      %p539 = pneg %p369
      %p540 = pneg %p366
      %p541 = pneg %p390
      %p542 = pneg %p387
      %p543 = pneg %p416
      %p544 = pneg %p413
      %p545 = scmp.lt.s32.totalorder %s28, 1
      %s546 = scalar_select %p545, %s28, 1
      %s547 = smul.addr %s546, 8
      %s548 = smul.addr %s547, 8
      %s549 = scalar_lea.vmem %s17, %s548
      %p550 = scmp.lt.s32.totalorder %s28, 1
      %s551 = scalar_select %p550, %s28, 1
      %s552 = smul.addr %s551, 8
      %s553 = smul.addr %s552, 8
      %s554 = scalar_lea.vmem %s0, %s553
      %p555 = scmp.lt.s32.totalorder %s28, 1
      %s556 = scalar_select %p555, %s28, 1
      %s557 = scalar_lea.vmem %s1, %s556
      %p558 = scmp.lt.s32.totalorder %s28, 1
      %s559 = scalar_select %p558, %s28, 1
      %s560 = smul.addr %s559, 8
      %s561 = smul.addr %s560, 8
      %s562 = scalar_lea.vmem %s17, %s561
      %v564 = vld [vmem:[%s554] sm:$0xff]
      %v565 = vld [vmem:[%s554 + $0x8] sm:$0xff]
      %v566 = vld [vmem:[%s554 + $0x10] sm:$0xff]
      %v567 = vld [vmem:[%s554 + $0x18] sm:$0xff]
      %v568 = vld [vmem:[%s554 + $0x20] sm:$0xff]
      %v569 = vld [vmem:[%s554 + $0x28] sm:$0xff]
      %v570 = vld [vmem:[%s554 + $0x30] sm:$0xff]
      %v571 = vld [vmem:[%s554 + $0x38] sm:$0xff]
      %v572 = vld [vmem:[%s2] sm:$0x1]
      %v573 = vld [vmem:[%s3] sm:$0x1]
      %vm574 = vcmask 523264
      %v575 = vsel %vm574, %v564, 0.0
      %576 = vadd.xlane.f32.xlu0 %v575
      %v577 = vpop.xlane.xlu0 %576
      %v578 = vsel %vm574, %v565, 0.0
      %579 = vadd.xlane.f32.xlu0 %v578
      %v580 = vpop.xlane.xlu0 %579
      %v581 = vsel %vm574, %v566, 0.0
      %582 = vadd.xlane.f32.xlu0 %v581
      %v583 = vpop.xlane.xlu0 %582
      %v584 = vsel %vm574, %v567, 0.0
      %585 = vadd.xlane.f32.xlu0 %v584
      %v586 = vpop.xlane.xlu0 %585
      %v587 = vsel %vm574, %v568, 0.0
      %588 = vadd.xlane.f32.xlu0 %v587
      %v589 = vpop.xlane.xlu0 %588
      %v590 = vsel %vm574, %v569, 0.0
      %591 = vadd.xlane.f32.xlu0 %v590
      %v592 = vpop.xlane.xlu0 %591
      %v593 = vsel %vm574, %v570, 0.0
      %594 = vadd.xlane.f32.xlu0 %v593
      %v595 = vpop.xlane.xlu0 %594
      %v596 = vsel %vm574, %v571, 0.0
      %597 = vadd.xlane.f32.xlu0 %v596
      %v598 = vpop.xlane.xlu0 %597
      %v599 = vrcp.pop 64.0
      %v600 = vmul.f32 %v577, %v599
      %v601 = vmul.f32 %v580, %v599
      %v602 = vmul.f32 %v583, %v599
      %v603 = vmul.f32 %v586, %v599
      %v604 = vmul.f32 %v589, %v599
      %v605 = vmul.f32 %v592, %v599
      %v606 = vmul.f32 %v595, %v599
      %v607 = vmul.f32 %v598, %v599
      %v608 = vsub.f32 %v564, %v600
      %v609 = vsub.f32 %v565, %v601
      %v610 = vsub.f32 %v566, %v602
      %v611 = vsub.f32 %v567, %v603
      %v612 = vsub.f32 %v568, %v604
      %v613 = vsub.f32 %v569, %v605
      %v614 = vsub.f32 %v570, %v606
      %v615 = vsub.f32 %v571, %v607
      %v616 = vmul.f32 %v608, %v608
      %v617 = vmul.f32 %v609, %v609
      %v618 = vmul.f32 %v610, %v610
      %v619 = vmul.f32 %v611, %v611
      %v620 = vmul.f32 %v612, %v612
      %v621 = vmul.f32 %v613, %v613
      %v622 = vmul.f32 %v614, %v614
      %v623 = vmul.f32 %v615, %v615
      %v624 = vsel %vm574, %v616, 0.0
      %625 = vadd.xlane.f32.xlu0 %v624
      %v626 = vpop.xlane.xlu0 %625
      %v627 = vsel %vm574, %v617, 0.0
      %628 = vadd.xlane.f32.xlu0 %v627
      %v629 = vpop.xlane.xlu0 %628
      %v630 = vsel %vm574, %v618, 0.0
      %631 = vadd.xlane.f32.xlu0 %v630
      %v632 = vpop.xlane.xlu0 %631
      %v633 = vsel %vm574, %v619, 0.0
      %634 = vadd.xlane.f32.xlu0 %v633
      %v635 = vpop.xlane.xlu0 %634
      %v636 = vsel %vm574, %v620, 0.0
      %637 = vadd.xlane.f32.xlu0 %v636
      %v638 = vpop.xlane.xlu0 %637
      %v639 = vsel %vm574, %v621, 0.0
      %640 = vadd.xlane.f32.xlu0 %v639
      %v641 = vpop.xlane.xlu0 %640
      %v642 = vsel %vm574, %v622, 0.0
      %643 = vadd.xlane.f32.xlu0 %v642
      %v644 = vpop.xlane.xlu0 %643
      %v645 = vsel %vm574, %v623, 0.0
      %646 = vadd.xlane.f32.xlu0 %v645
      %v647 = vpop.xlane.xlu0 %646
      %v648 = vmul.f32 %v626, %v599
      %v649 = vmul.f32 %v629, %v599
      %v650 = vmul.f32 %v632, %v599
      %v651 = vmul.f32 %v635, %v599
      %v652 = vmul.f32 %v638, %v599
      %v653 = vmul.f32 %v641, %v599
      %v654 = vmul.f32 %v644, %v599
      %v655 = vmul.f32 %v647, %v599
      %v656 = vadd.f32 %v648, 1e-12
      %v657 = vadd.f32 %v649, 1e-12
      %v658 = vadd.f32 %v650, 1e-12
      %v659 = vadd.f32 %v651, 1e-12
      %v660 = vadd.f32 %v652, 1e-12
      %v661 = vadd.f32 %v653, 1e-12
      %v662 = vadd.f32 %v654, 1e-12
      %v663 = vadd.f32 %v655, 1e-12
      %v664 = vrsqrt.pop %v656
      %v665 = vrsqrt.pop %v657
      %v666 = vrsqrt.pop %v658
      %v667 = vrsqrt.pop %v659
      %v668 = vrsqrt.pop %v660
      %v669 = vrsqrt.pop %v661
      %v670 = vrsqrt.pop %v662
      %v671 = vrsqrt.pop %v663
      %v672 = vmul.f32 %v608, %v664
      %v673 = vmul.f32 %v609, %v665
      %v674 = vmul.f32 %v610, %v666
      %v675 = vmul.f32 %v611, %v667
      %v676 = vmul.f32 %v612, %v668
      %v677 = vmul.f32 %v613, %v669
      %v678 = vmul.f32 %v614, %v670
      %v679 = vmul.f32 %v615, %v671
      %v681 = vlaneseq
      %v682 = vshrl.u32 %v681, 7
      %v683 = vsub.s32 0, %v682
      %v684 = vrot.slane %v572, %v683
      %v686 = vmul.f32 %v672, %v684
      %v687 = vmul.f32 %v673, %v684
      %v688 = vmul.f32 %v674, %v684
      %v689 = vmul.f32 %v675, %v684
      %v690 = vmul.f32 %v676, %v684
      %v691 = vmul.f32 %v677, %v684
      %v692 = vmul.f32 %v678, %v684
      %v693 = vmul.f32 %v679, %v684
      %v695 = vlaneseq
      %v696 = vshrl.u32 %v695, 7
      %v697 = vsub.s32 0, %v696
      %v698 = vrot.slane %v573, %v697
      %v700 = vadd.f32 %v686, %v698
      %v701 = vadd.f32 %v687, %v698
      %v702 = vadd.f32 %v688, %v698
      %v703 = vadd.f32 %v689, %v698
      %v704 = vadd.f32 %v690, %v698
      %v705 = vadd.f32 %v691, %v698
      %v706 = vadd.f32 %v692, %v698
      %v707 = vadd.f32 %v693, %v698
      %v708 = vld [vmem:[%s557] sm:$0x1]
      %v709 = vpack.c.bf16 %v701, %v700
      %v710 = vpack.c.bf16 %v703, %v702
      %v711 = vpack.c.bf16 %v705, %v704
      %v712 = vpack.c.bf16 %v707, %v706
      %v713 = vld [vmem:[%s4] sm:$0xff]
      %v714 = vld [vmem:[%s4 + $0x8] sm:$0xff]
      %v715 = vld [vmem:[%s4 + $0x10] sm:$0xff]
      %v716 = vld [vmem:[%s4 + $0x18] sm:$0xff]
      %v717 = vld [vmem:[%s4 + $0x20] sm:$0xff]
      %v718 = vld [vmem:[%s4 + $0x28] sm:$0xff]
      %v719 = vld [vmem:[%s4 + $0x30] sm:$0xff]
      %v720 = vld [vmem:[%s4 + $0x38] sm:$0xff]
      %v721 = vld [vmem:[%s5] sm:$0x3]
      %v723 = vlaneseq
      %v724 = vshrl.u32 %v723, 7
      %v725 = vsub.s32 0, %v724
      %v726 = vrot.slane %v721, %v725
      %v727 = vlaneseq
      %v728 = vshrl.u32 %v727, 7
      %v729 = vsub.s32 1, %v728
      %v730 = vrot.slane %v721, %v729
      %v741 = vunpack.c.l.b16 %v713
      %v742 = vunpack.c.h.b16 %v713
      %v743 = vunpack.c.l.b16 %v714
      %v744 = vunpack.c.h.b16 %v714
      %v745 = vunpack.c.l.b16 %v715
      %v746 = vunpack.c.h.b16 %v715
      %v747 = vunpack.c.l.b16 %v716
      %v748 = vunpack.c.h.b16 %v716
      %v749 = vunpack.c.l.b16 %v717
      %v750 = vunpack.c.h.b16 %v717
      %v751 = vunpack.c.l.b16 %v718
      %v752 = vunpack.c.h.b16 %v718
      %v753 = vunpack.c.l.b16 %v719
      %v754 = vunpack.c.h.b16 %v719
      %v755 = vunpack.c.l.b16 %v720
      %v756 = vunpack.c.h.b16 %v720
      %v757 = vpack.c.b16 %v743, %v741
      %v758 = vpack.c.b16 %v744, %v742
      %v759 = vpack.c.b16 %v747, %v745
      %v760 = vpack.c.b16 %v748, %v746
      %v761 = vpack.c.b16 %v751, %v749
      %v762 = vpack.c.b16 %v752, %v750
      %v763 = vpack.c.b16 %v755, %v753
      %v764 = vpack.c.b16 %v756, %v754
      %v774 = vsel %vm574, %v709, 0
      %v777 = vsel %vm574, %v710, 0
      %v780 = vsel %vm574, %v711, 0
      %v783 = vsel %vm574, %v712, 0
      %785 = vmatprep.subr.bf16.mxu0 %v758
      %786 = vmatpush1.bf16.msra.mxu0 %v757
      %787 = vmatprep.subr.bf16.mxu0 %v760
      %788 = vmatpush1.bf16.msra.mxu0 %v759
      %789 = vmatprep.subr.bf16.mxu0 %v762
      %790 = vmatpush1.bf16.msra.mxu0 %v761
      %791 = vmatprep.subr.bf16.mxu0 %v764
      %792 = vmatpush1.bf16.msra.mxu0 %v763
      %793 = vmatprep.subr.bf16.mxu0 0
      %794 = vmatpush1.bf16.msra.mxu0 0
      %795 = vmatprep.subr.bf16.mxu0 0
      %796 = vmatpush1.bf16.msra.mxu0 0
      %797 = vmatprep.subr.bf16.mxu0 0
      %798 = vmatpush1.bf16.msra.mxu0 0
      %799 = vmatprep.subr.bf16.mxu0 0
      %800 = vmatpush1.bf16.msra.mxu0 0
      %801 = vmatprep.subr.bf16.mxu0 0
      %802 = vmatpush1.bf16.msra.mxu0 0
      %803 = vmatprep.subr.bf16.mxu0 0
      %804 = vmatpush1.bf16.msra.mxu0 0
      %805 = vmatprep.subr.bf16.mxu0 0
      %806 = vmatpush1.bf16.msra.mxu0 0
      %807 = vmatprep.subr.bf16.mxu0 0
      %808 = vmatpush1.bf16.msra.mxu0 0
      %809 = vmatprep.subr.bf16.mxu0 0
      %810 = vmatpush1.bf16.msra.mxu0 0
      %811 = vmatprep.subr.bf16.mxu0 0
      %812 = vmatpush1.bf16.msra.mxu0 0
      %813 = vmatprep.subr.bf16.mxu0 0
      %814 = vmatpush1.bf16.msra.mxu0 0
      %815 = vmatprep.subr.bf16.mxu0 0
      %816 = vmatpush1.bf16.msra.mxu0 0
      %817 = vmatprep.mubr.bf16.mxu0 0
      %818 = vmatmul.mubr.bf16.gmra.mrb[0].mxu0 %v774
      %v819 = vpop.f32.mrb[0].mxu0
      %v820 = vadd.f32 %v726, %v819
      %v821 = vpop.f32.mrb[0].mxu0
      %v822 = vadd.f32 %v730, %v821
      %v823 = vpop.f32.mrb[0].mxu0
      %v824 = vadd.f32 %v726, %v823
      %v825 = vpop.f32.mrb[0].mxu0
      %v826 = vadd.f32 %v730, %v825
      %827 = vmatprep.mubr.bf16.mxu0 0
      %828 = vmatmul.mubr.bf16.gmra.mrb[0].mxu0 %v777
      %v829 = vpop.f32.mrb[0].mxu0
      %v830 = vadd.f32 %v726, %v829
      %v831 = vpop.f32.mrb[0].mxu0
      %v832 = vadd.f32 %v730, %v831
      %v833 = vpop.f32.mrb[0].mxu0
      %v834 = vadd.f32 %v726, %v833
      %v835 = vpop.f32.mrb[0].mxu0
      %v836 = vadd.f32 %v730, %v835
      %837 = vmatprep.mubr.bf16.mxu0 0
      %838 = vmatmul.mubr.bf16.gmra.mrb[0].mxu0 %v780
      %v839 = vpop.f32.mrb[0].mxu0
      %v840 = vadd.f32 %v726, %v839
      %v841 = vpop.f32.mrb[0].mxu0
      %v842 = vadd.f32 %v730, %v841
      %v843 = vpop.f32.mrb[0].mxu0
      %v844 = vadd.f32 %v726, %v843
      %v845 = vpop.f32.mrb[0].mxu0
      %v846 = vadd.f32 %v730, %v845
      %847 = vmatprep.mubr.bf16.mxu0 0
      %848 = vmatmul.mubr.bf16.gmra.mrb[0].mxu0 %v783
      %v849 = vpop.f32.mrb[0].mxu0
      %v850 = vadd.f32 %v726, %v849
      %v851 = vpop.f32.mrb[0].mxu0
      %v852 = vadd.f32 %v730, %v851
      %v853 = vpop.f32.mrb[0].mxu0
      %v854 = vadd.f32 %v726, %v853
      %v855 = vpop.f32.mrb[0].mxu0
      %v856 = vadd.f32 %v730, %v855
      %857 = vdwg.mxu0
      %v858 = vld [vmem:[%s6] sm:$0xff]
      %v859 = vld [vmem:[%s6 + $0x8] sm:$0xff]
      %v860 = vld [vmem:[%s6 + $0x10] sm:$0xff]
      %v861 = vld [vmem:[%s6 + $0x18] sm:$0xff]
      %v862 = vld [vmem:[%s6 + $0x20] sm:$0xff]
      %v863 = vld [vmem:[%s6 + $0x28] sm:$0xff]
      %v864 = vld [vmem:[%s6 + $0x30] sm:$0xff]
      %v865 = vld [vmem:[%s6 + $0x38] sm:$0xff]
      %v866 = vld [vmem:[%s7] sm:$0x3]
      %v868 = vlaneseq
      %v869 = vshrl.u32 %v868, 7
      %v870 = vsub.s32 0, %v869
      %v871 = vrot.slane %v866, %v870
      %v872 = vlaneseq
      %v873 = vshrl.u32 %v872, 7
      %v874 = vsub.s32 1, %v873
      %v875 = vrot.slane %v866, %v874
      %v886 = vunpack.c.l.b16 %v858
      %v887 = vunpack.c.h.b16 %v858
      %v888 = vunpack.c.l.b16 %v859
      %v889 = vunpack.c.h.b16 %v859
      %v890 = vunpack.c.l.b16 %v860
      %v891 = vunpack.c.h.b16 %v860
      %v892 = vunpack.c.l.b16 %v861
      %v893 = vunpack.c.h.b16 %v861
      %v894 = vunpack.c.l.b16 %v862
      %v895 = vunpack.c.h.b16 %v862
      %v896 = vunpack.c.l.b16 %v863
      %v897 = vunpack.c.h.b16 %v863
      %v898 = vunpack.c.l.b16 %v864
      %v899 = vunpack.c.h.b16 %v864
      %v900 = vunpack.c.l.b16 %v865
      %v901 = vunpack.c.h.b16 %v865
      %v902 = vpack.c.b16 %v888, %v886
      %v903 = vpack.c.b16 %v889, %v887
      %v904 = vpack.c.b16 %v892, %v890
      %v905 = vpack.c.b16 %v893, %v891
      %v906 = vpack.c.b16 %v896, %v894
      %v907 = vpack.c.b16 %v897, %v895
      %v908 = vpack.c.b16 %v900, %v898
      %v909 = vpack.c.b16 %v901, %v899
      %918 = vmatprep.subr.bf16.mxu0 %v903
      %919 = vmatpush1.bf16.msra.mxu0 %v902
      %920 = vmatprep.subr.bf16.mxu0 %v905
      %921 = vmatpush1.bf16.msra.mxu0 %v904
      %922 = vmatprep.subr.bf16.mxu0 %v907
      %923 = vmatpush1.bf16.msra.mxu0 %v906
      %924 = vmatprep.subr.bf16.mxu0 %v909
      %925 = vmatpush1.bf16.msra.mxu0 %v908
      %926 = vmatprep.subr.bf16.mxu0 0
      %927 = vmatpush1.bf16.msra.mxu0 0
      %928 = vmatprep.subr.bf16.mxu0 0
      %929 = vmatpush1.bf16.msra.mxu0 0
      %930 = vmatprep.subr.bf16.mxu0 0
      %931 = vmatpush1.bf16.msra.mxu0 0
      %932 = vmatprep.subr.bf16.mxu0 0
      %933 = vmatpush1.bf16.msra.mxu0 0
      %934 = vmatprep.subr.bf16.mxu0 0
      %935 = vmatpush1.bf16.msra.mxu0 0
      %936 = vmatprep.subr.bf16.mxu0 0
      %937 = vmatpush1.bf16.msra.mxu0 0
      %938 = vmatprep.subr.bf16.mxu0 0
      %939 = vmatpush1.bf16.msra.mxu0 0
      %940 = vmatprep.subr.bf16.mxu0 0
      %941 = vmatpush1.bf16.msra.mxu0 0
      %942 = vmatprep.subr.bf16.mxu0 0
      %943 = vmatpush1.bf16.msra.mxu0 0
      %944 = vmatprep.subr.bf16.mxu0 0
      %945 = vmatpush1.bf16.msra.mxu0 0
      %946 = vmatprep.subr.bf16.mxu0 0
      %947 = vmatpush1.bf16.msra.mxu0 0
      %948 = vmatprep.subr.bf16.mxu0 0
      %949 = vmatpush1.bf16.msra.mxu0 0
      %950 = vmatprep.mubr.bf16.mxu0 0
      %951 = vmatmul.mubr.bf16.gmra.mrb[0].mxu0 %v774
      %v952 = vpop.f32.mrb[0].mxu0
      %v953 = vadd.f32 %v871, %v952
      %v954 = vpop.f32.mrb[0].mxu0
      %v955 = vadd.f32 %v875, %v954
      %v956 = vpop.f32.mrb[0].mxu0
      %v957 = vadd.f32 %v871, %v956
      %v958 = vpop.f32.mrb[0].mxu0
      %v959 = vadd.f32 %v875, %v958
      %960 = vmatprep.mubr.bf16.mxu0 0
      %961 = vmatmul.mubr.bf16.gmra.mrb[0].mxu0 %v777
      %v962 = vpop.f32.mrb[0].mxu0
      %v963 = vadd.f32 %v871, %v962
      %v964 = vpop.f32.mrb[0].mxu0
      %v965 = vadd.f32 %v875, %v964
      %v966 = vpop.f32.mrb[0].mxu0
      %v967 = vadd.f32 %v871, %v966
      %v968 = vpop.f32.mrb[0].mxu0
      %v969 = vadd.f32 %v875, %v968
      %970 = vmatprep.mubr.bf16.mxu0 0
      %971 = vmatmul.mubr.bf16.gmra.mrb[0].mxu0 %v780
      %v972 = vpop.f32.mrb[0].mxu0
      %v973 = vadd.f32 %v871, %v972
      %v974 = vpop.f32.mrb[0].mxu0
      %v975 = vadd.f32 %v875, %v974
      %v976 = vpop.f32.mrb[0].mxu0
      %v977 = vadd.f32 %v871, %v976
      %v978 = vpop.f32.mrb[0].mxu0
      %v979 = vadd.f32 %v875, %v978
      %980 = vmatprep.mubr.bf16.mxu0 0
      %981 = vmatmul.mubr.bf16.gmra.mrb[0].mxu0 %v783
      %v982 = vpop.f32.mrb[0].mxu0
      %v983 = vadd.f32 %v871, %v982
      %v984 = vpop.f32.mrb[0].mxu0
      %v985 = vadd.f32 %v875, %v984
      %v986 = vpop.f32.mrb[0].mxu0
      %v987 = vadd.f32 %v871, %v986
      %v988 = vpop.f32.mrb[0].mxu0
      %v989 = vadd.f32 %v875, %v988
      %990 = vdwg.mxu0
      %v991 = vpack.c.bf16 %v824, %v820
      %v992 = vpack.c.bf16 %v826, %v822
      %v993 = vpack.c.bf16 %v834, %v830
      %v994 = vpack.c.bf16 %v836, %v832
      %v995 = vpack.c.bf16 %v844, %v840
      %v996 = vpack.c.bf16 %v846, %v842
      %v997 = vpack.c.bf16 %v854, %v850
      %v998 = vpack.c.bf16 %v856, %v852
      %v999 = vpack.c.bf16 %v957, %v953
      %v1000 = vpack.c.bf16 %v959, %v955
      %v1001 = vpack.c.bf16 %v967, %v963
      %v1002 = vpack.c.bf16 %v969, %v965
      %v1003 = vpack.c.bf16 %v977, %v973
      %v1004 = vpack.c.bf16 %v979, %v975
      %v1005 = vpack.c.bf16 %v987, %v983
      %v1006 = vpack.c.bf16 %v989, %v985
      %v1008 = vlaneseq
      %v1009 = vshrl.u32 %v1008, 7
      %v1010 = vsub.s32 0, %v1009
      %v1011 = vrot.slane %v708, %v1010
      %v1014 = vsel %vm574, %v991, 0
      %v1017 = vsel %vm574, %v993, 0
      %v1020 = vsel %vm574, %v995, 0
      %v1023 = vsel %vm574, %v997, 0
      %1025 = vmatprep.subr.bf16.mxu0 0
      %1026 = vmatpush1.bf16.xpose.msra.mxu0 %v774
      %1027 = vmatprep.subr.bf16.mxu0 0
      %1028 = vmatpush1.bf16.xpose.msra.mxu0 %v777
      %1029 = vmatprep.subr.bf16.mxu0 0
      %1030 = vmatpush1.bf16.xpose.msra.mxu0 %v780
      %1031 = vmatprep.subr.bf16.mxu0 0
      %1032 = vmatpush1.bf16.xpose.msra.mxu0 %v783
      %1033 = vmatprep.subr.bf16.mxu0 0
      %1034 = vmatpush1.bf16.xpose.msra.mxu0 0
      %1035 = vmatprep.subr.bf16.mxu0 0
      %1036 = vmatpush1.bf16.xpose.msra.mxu0 0
      %1037 = vmatprep.subr.bf16.mxu0 0
      %1038 = vmatpush1.bf16.xpose.msra.mxu0 0
      %1039 = vmatprep.subr.bf16.mxu0 0
      %1040 = vmatpush1.bf16.xpose.msra.mxu0 0
      %1041 = vmatprep.subr.bf16.mxu0 0
      %1042 = vmatpush1.bf16.xpose.msra.mxu0 0
      %1043 = vmatprep.subr.bf16.mxu0 0
      %1044 = vmatpush1.bf16.xpose.msra.mxu0 0
      %1045 = vmatprep.subr.bf16.mxu0 0
      %1046 = vmatpush1.bf16.xpose.msra.mxu0 0
      %1047 = vmatprep.subr.bf16.mxu0 0
      %1048 = vmatpush1.bf16.xpose.msra.mxu0 0
      %1049 = vmatprep.subr.bf16.mxu0 0
      %1050 = vmatpush1.bf16.xpose.msra.mxu0 0
      %1051 = vmatprep.subr.bf16.mxu0 0
      %1052 = vmatpush1.bf16.xpose.msra.mxu0 0
      %1053 = vmatprep.subr.bf16.mxu0 0
      %1054 = vmatpush1.bf16.xpose.msra.mxu0 0
      %1055 = vmatprep.subr.bf16.mxu0 0
      %1056 = vmatpush1.bf16.xpose.msra.mxu0 0
      %1057 = vmatprep.mubr.bf16.mxu0 0
      %1058 = vmatmul.mubr.bf16.gmra.mrb[0].mxu0 %v1014
      %v1059 = vpop.f32.mrb[0].mxu0
      %v1060 = vadd.f32 %v1011, %v1059
      %v1061 = vpop.f32.mrb[0].mxu0
      %v1062 = vpop.f32.mrb[0].mxu0
      %v1063 = vadd.f32 %v1011, %v1062
      %v1064 = vpop.f32.mrb[0].mxu0
      %1065 = vmatprep.mubr.bf16.mxu0 0
      %1066 = vmatmul.mubr.bf16.gmra.mrb[0].mxu0 %v1017
      %v1067 = vpop.f32.mrb[0].mxu0
      %v1068 = vadd.f32 %v1011, %v1067
      %v1069 = vpop.f32.mrb[0].mxu0
      %v1070 = vpop.f32.mrb[0].mxu0
      %v1071 = vadd.f32 %v1011, %v1070
      %v1072 = vpop.f32.mrb[0].mxu0
      %1073 = vmatprep.mubr.bf16.mxu0 0
      %1074 = vmatmul.mubr.bf16.gmra.mrb[0].mxu0 %v1020
      %v1075 = vpop.f32.mrb[0].mxu0
      %v1076 = vadd.f32 %v1011, %v1075
      %v1077 = vpop.f32.mrb[0].mxu0
      %v1078 = vpop.f32.mrb[0].mxu0
      %v1079 = vadd.f32 %v1011, %v1078
      %v1080 = vpop.f32.mrb[0].mxu0
      %1081 = vmatprep.mubr.bf16.mxu0 0
      %1082 = vmatmul.mubr.bf16.gmra.mrb[0].mxu0 %v1023
      %v1083 = vpop.f32.mrb[0].mxu0
      %v1084 = vadd.f32 %v1011, %v1083
      %v1085 = vpop.f32.mrb[0].mxu0
      %v1086 = vpop.f32.mrb[0].mxu0
      %v1087 = vadd.f32 %v1011, %v1086
      %v1088 = vpop.f32.mrb[0].mxu0
      %1089 = vdwg.mxu0
      %v1090 = vsel %vm574, %v1060, -inf
      %1091 = vmax.xlane.f32.xlu0 %v1090
      %v1092 = vpop.xlane.xlu0 %1091
      %v1093 = vsel %vm574, %v1063, -inf
      %1094 = vmax.xlane.f32.xlu0 %v1093
      %v1095 = vpop.xlane.xlu0 %1094
      %v1096 = vsel %vm574, %v1068, -inf
      %1097 = vmax.xlane.f32.xlu0 %v1096
      %v1098 = vpop.xlane.xlu0 %1097
      %v1099 = vsel %vm574, %v1071, -inf
      %1100 = vmax.xlane.f32.xlu0 %v1099
      %v1101 = vpop.xlane.xlu0 %1100
      %v1102 = vsel %vm574, %v1076, -inf
      %1103 = vmax.xlane.f32.xlu0 %v1102
      %v1104 = vpop.xlane.xlu0 %1103
      %v1105 = vsel %vm574, %v1079, -inf
      %1106 = vmax.xlane.f32.xlu0 %v1105
      %v1107 = vpop.xlane.xlu0 %1106
      %v1108 = vsel %vm574, %v1084, -inf
      %1109 = vmax.xlane.f32.xlu0 %v1108
      %v1110 = vpop.xlane.xlu0 %1109
      %v1111 = vsel %vm574, %v1087, -inf
      %1112 = vmax.xlane.f32.xlu0 %v1111
      %v1113 = vpop.xlane.xlu0 %1112
      %v1114 = vsub.f32 %v1060, %v1092
      %v1115 = vsub.f32 %v1063, %v1095
      %v1116 = vsub.f32 %v1068, %v1098
      %v1117 = vsub.f32 %v1071, %v1101
      %v1118 = vsub.f32 %v1076, %v1104
      %v1119 = vsub.f32 %v1079, %v1107
      %v1120 = vsub.f32 %v1084, %v1110
      %v1121 = vsub.f32 %v1087, %v1113
      %v1122 = vmul.f32 %v1114, 1.442695
      %v1123 = vpow.pop %v1122
      %v1124 = vmul.f32 %v1115, 1.442695
      %v1125 = vpow.pop %v1124
      %v1126 = vmul.f32 %v1116, 1.442695
      %v1127 = vpow.pop %v1126
      %v1128 = vmul.f32 %v1117, 1.442695
      %v1129 = vpow.pop %v1128
      %v1130 = vmul.f32 %v1118, 1.442695
      %v1131 = vpow.pop %v1130
      %v1132 = vmul.f32 %v1119, 1.442695
      %v1133 = vpow.pop %v1132
      %v1134 = vmul.f32 %v1120, 1.442695
      %v1135 = vpow.pop %v1134
      %v1136 = vmul.f32 %v1121, 1.442695
      %v1137 = vpow.pop %v1136
      %v1138 = vsel %vm574, %v1123, 0.0
      %1139 = vadd.xlane.f32.xlu0 %v1138
      %v1140 = vpop.xlane.xlu0 %1139
      %v1141 = vsel %vm574, %v1125, 0.0
      %1142 = vadd.xlane.f32.xlu0 %v1141
      %v1143 = vpop.xlane.xlu0 %1142
      %v1144 = vsel %vm574, %v1127, 0.0
      %1145 = vadd.xlane.f32.xlu0 %v1144
      %v1146 = vpop.xlane.xlu0 %1145
      %v1147 = vsel %vm574, %v1129, 0.0
      %1148 = vadd.xlane.f32.xlu0 %v1147
      %v1149 = vpop.xlane.xlu0 %1148
      %v1150 = vsel %vm574, %v1131, 0.0
      %1151 = vadd.xlane.f32.xlu0 %v1150
      %v1152 = vpop.xlane.xlu0 %1151
      %v1153 = vsel %vm574, %v1133, 0.0
      %1154 = vadd.xlane.f32.xlu0 %v1153
      %v1155 = vpop.xlane.xlu0 %1154
      %v1156 = vsel %vm574, %v1135, 0.0
      %1157 = vadd.xlane.f32.xlu0 %v1156
      %v1158 = vpop.xlane.xlu0 %1157
      %v1159 = vsel %vm574, %v1137, 0.0
      %1160 = vadd.xlane.f32.xlu0 %v1159
      %v1161 = vpop.xlane.xlu0 %1160
      %v1162 = vrcp.pop %v1140
      %v1163 = vrcp.pop %v1143
      %v1164 = vrcp.pop %v1146
      %v1165 = vrcp.pop %v1149
      %v1166 = vrcp.pop %v1152
      %v1167 = vrcp.pop %v1155
      %v1168 = vrcp.pop %v1158
      %v1169 = vrcp.pop %v1161
      %v1170 = vmul.f32 %v1123, %v1162
      %v1171 = vmul.f32 %v1125, %v1163
      %v1172 = vmul.f32 %v1127, %v1164
      %v1173 = vmul.f32 %v1129, %v1165
      %v1174 = vmul.f32 %v1131, %v1166
      %v1175 = vmul.f32 %v1133, %v1167
      %v1176 = vmul.f32 %v1135, %v1168
      %v1177 = vmul.f32 %v1137, %v1169
      %v1178 = vpack.c.bf16 %v1171, %v1170
      %v1179 = vpack.c.bf16 %v1173, %v1172
      %v1180 = vpack.c.bf16 %v1175, %v1174
      %v1181 = vpack.c.bf16 %v1177, %v1176
      %1186 = vrot.lane.b32.xlu0 %v991, 64
      %v1187 = vpop.permute.xlu0 %1186
      %1188 = vrot.lane.b32.xlu0 %v993, 64
      %v1189 = vpop.permute.xlu0 %1188
      %1190 = vrot.lane.b32.xlu0 %v995, 64
      %v1191 = vpop.permute.xlu0 %1190
      %1192 = vrot.lane.b32.xlu0 %v997, 64
      %v1193 = vpop.permute.xlu0 %1192
      %v1195 = vsel %vm574, %v1187, 0
      %v1198 = vsel %vm574, %v1189, 0
      %v1201 = vsel %vm574, %v1191, 0
      %v1204 = vsel %vm574, %v1193, 0
      %1206 = vmatprep.subr.bf16.mxu0 0
      %1207 = vmatpush1.bf16.xpose.msra.mxu0 %v774
      %1208 = vmatprep.subr.bf16.mxu0 0
      %1209 = vmatpush1.bf16.xpose.msra.mxu0 %v777
      %1210 = vmatprep.subr.bf16.mxu0 0
      %1211 = vmatpush1.bf16.xpose.msra.mxu0 %v780
      %1212 = vmatprep.subr.bf16.mxu0 0
      %1213 = vmatpush1.bf16.xpose.msra.mxu0 %v783
      %1214 = vmatprep.subr.bf16.mxu0 0
      %1215 = vmatpush1.bf16.xpose.msra.mxu0 0
      %1216 = vmatprep.subr.bf16.mxu0 0
      %1217 = vmatpush1.bf16.xpose.msra.mxu0 0
      %1218 = vmatprep.subr.bf16.mxu0 0
      %1219 = vmatpush1.bf16.xpose.msra.mxu0 0
      %1220 = vmatprep.subr.bf16.mxu0 0
      %1221 = vmatpush1.bf16.xpose.msra.mxu0 0
      %1222 = vmatprep.subr.bf16.mxu0 0
      %1223 = vmatpush1.bf16.xpose.msra.mxu0 0
      %1224 = vmatprep.subr.bf16.mxu0 0
      %1225 = vmatpush1.bf16.xpose.msra.mxu0 0
      %1226 = vmatprep.subr.bf16.mxu0 0
      %1227 = vmatpush1.bf16.xpose.msra.mxu0 0
      %1228 = vmatprep.subr.bf16.mxu0 0
      %1229 = vmatpush1.bf16.xpose.msra.mxu0 0
      %1230 = vmatprep.subr.bf16.mxu0 0
      %1231 = vmatpush1.bf16.xpose.msra.mxu0 0
      %1232 = vmatprep.subr.bf16.mxu0 0
      %1233 = vmatpush1.bf16.xpose.msra.mxu0 0
      %1234 = vmatprep.subr.bf16.mxu0 0
      %1235 = vmatpush1.bf16.xpose.msra.mxu0 0
      %1236 = vmatprep.subr.bf16.mxu0 0
      %1237 = vmatpush1.bf16.xpose.msra.mxu0 0
      %1238 = vmatprep.mubr.bf16.mxu0 0
      %1239 = vmatmul.mubr.bf16.gmra.mrb[0].mxu0 %v1195
      %v1240 = vpop.f32.mrb[0].mxu0
      %v1241 = vadd.f32 %v1011, %v1240
      %v1242 = vpop.f32.mrb[0].mxu0
      %v1243 = vpop.f32.mrb[0].mxu0
      %v1244 = vadd.f32 %v1011, %v1243
      %v1245 = vpop.f32.mrb[0].mxu0
      %1246 = vmatprep.mubr.bf16.mxu0 0
      %1247 = vmatmul.mubr.bf16.gmra.mrb[0].mxu0 %v1198
      %v1248 = vpop.f32.mrb[0].mxu0
      %v1249 = vadd.f32 %v1011, %v1248
      %v1250 = vpop.f32.mrb[0].mxu0
      %v1251 = vpop.f32.mrb[0].mxu0
      %v1252 = vadd.f32 %v1011, %v1251
      %v1253 = vpop.f32.mrb[0].mxu0
      %1254 = vmatprep.mubr.bf16.mxu0 0
      %1255 = vmatmul.mubr.bf16.gmra.mrb[0].mxu0 %v1201
      %v1256 = vpop.f32.mrb[0].mxu0
      %v1257 = vadd.f32 %v1011, %v1256
      %v1258 = vpop.f32.mrb[0].mxu0
      %v1259 = vpop.f32.mrb[0].mxu0
      %v1260 = vadd.f32 %v1011, %v1259
      %v1261 = vpop.f32.mrb[0].mxu0
      %1262 = vmatprep.mubr.bf16.mxu0 0
      %1263 = vmatmul.mubr.bf16.gmra.mrb[0].mxu0 %v1204
      %v1264 = vpop.f32.mrb[0].mxu0
      %v1265 = vadd.f32 %v1011, %v1264
      %v1266 = vpop.f32.mrb[0].mxu0
      %v1267 = vpop.f32.mrb[0].mxu0
      %v1268 = vadd.f32 %v1011, %v1267
      %v1269 = vpop.f32.mrb[0].mxu0
      %1270 = vdwg.mxu0
      %v1271 = vsel %vm574, %v1241, -inf
      %1272 = vmax.xlane.f32.xlu0 %v1271
      %v1273 = vpop.xlane.xlu0 %1272
      %v1274 = vsel %vm574, %v1244, -inf
      %1275 = vmax.xlane.f32.xlu0 %v1274
      %v1276 = vpop.xlane.xlu0 %1275
      %v1277 = vsel %vm574, %v1249, -inf
      %1278 = vmax.xlane.f32.xlu0 %v1277
      %v1279 = vpop.xlane.xlu0 %1278
      %v1280 = vsel %vm574, %v1252, -inf
      %1281 = vmax.xlane.f32.xlu0 %v1280
      %v1282 = vpop.xlane.xlu0 %1281
      %v1283 = vsel %vm574, %v1257, -inf
      %1284 = vmax.xlane.f32.xlu0 %v1283
      %v1285 = vpop.xlane.xlu0 %1284
      %v1286 = vsel %vm574, %v1260, -inf
      %1287 = vmax.xlane.f32.xlu0 %v1286
      %v1288 = vpop.xlane.xlu0 %1287
      %v1289 = vsel %vm574, %v1265, -inf
      %1290 = vmax.xlane.f32.xlu0 %v1289
      %v1291 = vpop.xlane.xlu0 %1290
      %v1292 = vsel %vm574, %v1268, -inf
      %1293 = vmax.xlane.f32.xlu0 %v1292
      %v1294 = vpop.xlane.xlu0 %1293
      %v1295 = vsub.f32 %v1241, %v1273
      %v1296 = vsub.f32 %v1244, %v1276
      %v1297 = vsub.f32 %v1249, %v1279
      %v1298 = vsub.f32 %v1252, %v1282
      %v1299 = vsub.f32 %v1257, %v1285
      %v1300 = vsub.f32 %v1260, %v1288
      %v1301 = vsub.f32 %v1265, %v1291
      %v1302 = vsub.f32 %v1268, %v1294
      %v1303 = vmul.f32 %v1295, 1.442695
      %v1304 = vpow.pop %v1303
      %v1305 = vmul.f32 %v1296, 1.442695
      %v1306 = vpow.pop %v1305
      %v1307 = vmul.f32 %v1297, 1.442695
      %v1308 = vpow.pop %v1307
      %v1309 = vmul.f32 %v1298, 1.442695
      %v1310 = vpow.pop %v1309
      %v1311 = vmul.f32 %v1299, 1.442695
      %v1312 = vpow.pop %v1311
      %v1313 = vmul.f32 %v1300, 1.442695
      %v1314 = vpow.pop %v1313
      %v1315 = vmul.f32 %v1301, 1.442695
      %v1316 = vpow.pop %v1315
      %v1317 = vmul.f32 %v1302, 1.442695
      %v1318 = vpow.pop %v1317
      %v1319 = vsel %vm574, %v1304, 0.0
      %1320 = vadd.xlane.f32.xlu0 %v1319
      %v1321 = vpop.xlane.xlu0 %1320
      %v1322 = vsel %vm574, %v1306, 0.0
      %1323 = vadd.xlane.f32.xlu0 %v1322
      %v1324 = vpop.xlane.xlu0 %1323
      %v1325 = vsel %vm574, %v1308, 0.0
      %1326 = vadd.xlane.f32.xlu0 %v1325
      %v1327 = vpop.xlane.xlu0 %1326
      %v1328 = vsel %vm574, %v1310, 0.0
      %1329 = vadd.xlane.f32.xlu0 %v1328
      %v1330 = vpop.xlane.xlu0 %1329
      %v1331 = vsel %vm574, %v1312, 0.0
      %1332 = vadd.xlane.f32.xlu0 %v1331
      %v1333 = vpop.xlane.xlu0 %1332
      %v1334 = vsel %vm574, %v1314, 0.0
      %1335 = vadd.xlane.f32.xlu0 %v1334
      %v1336 = vpop.xlane.xlu0 %1335
      %v1337 = vsel %vm574, %v1316, 0.0
      %1338 = vadd.xlane.f32.xlu0 %v1337
      %v1339 = vpop.xlane.xlu0 %1338
      %v1340 = vsel %vm574, %v1318, 0.0
      %1341 = vadd.xlane.f32.xlu0 %v1340
      %v1342 = vpop.xlane.xlu0 %1341
      %v1343 = vrcp.pop %v1321
      %v1344 = vrcp.pop %v1324
      %v1345 = vrcp.pop %v1327
      %v1346 = vrcp.pop %v1330
      %v1347 = vrcp.pop %v1333
      %v1348 = vrcp.pop %v1336
      %v1349 = vrcp.pop %v1339
      %v1350 = vrcp.pop %v1342
      %v1351 = vmul.f32 %v1304, %v1343
      %v1352 = vmul.f32 %v1306, %v1344
      %v1353 = vmul.f32 %v1308, %v1345
      %v1354 = vmul.f32 %v1310, %v1346
      %v1355 = vmul.f32 %v1312, %v1347
      %v1356 = vmul.f32 %v1314, %v1348
      %v1357 = vmul.f32 %v1316, %v1349
      %v1358 = vmul.f32 %v1318, %v1350
      %v1359 = vpack.c.bf16 %v1352, %v1351
      %v1360 = vpack.c.bf16 %v1354, %v1353
      %v1361 = vpack.c.bf16 %v1356, %v1355
      %v1362 = vpack.c.bf16 %v1358, %v1357
      %1367 = vrot.lane.b32.xlu0 %v999, 64
      %v1368 = vpop.permute.xlu0 %1367
      %1369 = vrot.lane.b32.xlu0 %v1001, 64
      %v1370 = vpop.permute.xlu0 %1369
      %1371 = vrot.lane.b32.xlu0 %v1003, 64
      %v1372 = vpop.permute.xlu0 %1371
      %1373 = vrot.lane.b32.xlu0 %v1005, 64
      %v1374 = vpop.permute.xlu0 %1373
      %v1380 = vsel %vm574, %v1359, 0
      %v1383 = vsel %vm574, %v1360, 0
      %v1386 = vsel %vm574, %v1361, 0
      %v1389 = vsel %vm574, %v1362, 0
      %1391 = vmatprep.subr.bf16.mxu0 0
      %1392 = vmatpush1.bf16.msra.mxu0 %v1368
      %1393 = vmatprep.subr.bf16.mxu0 0
      %1394 = vmatpush1.bf16.msra.mxu0 %v1370
      %1395 = vmatprep.subr.bf16.mxu0 0
      %1396 = vmatpush1.bf16.msra.mxu0 %v1372
      %1397 = vmatprep.subr.bf16.mxu0 0
      %1398 = vmatpush1.bf16.msra.mxu0 %v1374
      %1399 = vmatprep.subr.bf16.mxu0 0
      %1400 = vmatpush1.bf16.msra.mxu0 0
      %1401 = vmatprep.subr.bf16.mxu0 0
      %1402 = vmatpush1.bf16.msra.mxu0 0
      %1403 = vmatprep.subr.bf16.mxu0 0
      %1404 = vmatpush1.bf16.msra.mxu0 0
      %1405 = vmatprep.subr.bf16.mxu0 0
      %1406 = vmatpush1.bf16.msra.mxu0 0
      %1407 = vmatprep.subr.bf16.mxu0 0
      %1408 = vmatpush1.bf16.msra.mxu0 0
      %1409 = vmatprep.subr.bf16.mxu0 0
      %1410 = vmatpush1.bf16.msra.mxu0 0
      %1411 = vmatprep.subr.bf16.mxu0 0
      %1412 = vmatpush1.bf16.msra.mxu0 0
      %1413 = vmatprep.subr.bf16.mxu0 0
      %1414 = vmatpush1.bf16.msra.mxu0 0
      %1415 = vmatprep.subr.bf16.mxu0 0
      %1416 = vmatpush1.bf16.msra.mxu0 0
      %1417 = vmatprep.subr.bf16.mxu0 0
      %1418 = vmatpush1.bf16.msra.mxu0 0
      %1419 = vmatprep.subr.bf16.mxu0 0
      %1420 = vmatpush1.bf16.msra.mxu0 0
      %1421 = vmatprep.subr.bf16.mxu0 0
      %1422 = vmatpush1.bf16.msra.mxu0 0
      %1423 = vmatprep.mubr.bf16.mxu0 0
      %1424 = vmatmul.mubr.bf16.gmra.mrb[0].mxu0 %v1380
      %v1425 = vpop.f32.mrb[0].mxu0
      %v1426 = vadd.f32 0.0, %v1425
      %v1427 = vpop.f32.mrb[0].mxu0
      %v1428 = vpop.f32.mrb[0].mxu0
      %v1429 = vadd.f32 0.0, %v1428
      %v1430 = vpop.f32.mrb[0].mxu0
      %1431 = vmatprep.mubr.bf16.mxu0 0
      %1432 = vmatmul.mubr.bf16.gmra.mrb[0].mxu0 %v1383
      %v1433 = vpop.f32.mrb[0].mxu0
      %v1434 = vadd.f32 0.0, %v1433
      %v1435 = vpop.f32.mrb[0].mxu0
      %v1436 = vpop.f32.mrb[0].mxu0
      %v1437 = vadd.f32 0.0, %v1436
      %v1438 = vpop.f32.mrb[0].mxu0
      %1439 = vmatprep.mubr.bf16.mxu0 0
      %1440 = vmatmul.mubr.bf16.gmra.mrb[0].mxu0 %v1386
      %v1441 = vpop.f32.mrb[0].mxu0
      %v1442 = vadd.f32 0.0, %v1441
      %v1443 = vpop.f32.mrb[0].mxu0
      %v1444 = vpop.f32.mrb[0].mxu0
      %v1445 = vadd.f32 0.0, %v1444
      %v1446 = vpop.f32.mrb[0].mxu0
      %1447 = vmatprep.mubr.bf16.mxu0 0
      %1448 = vmatmul.mubr.bf16.gmra.mrb[0].mxu0 %v1389
      %v1449 = vpop.f32.mrb[0].mxu0
      %v1450 = vadd.f32 0.0, %v1449
      %v1451 = vpop.f32.mrb[0].mxu0
      %v1452 = vpop.f32.mrb[0].mxu0
      %v1453 = vadd.f32 0.0, %v1452
      %v1454 = vpop.f32.mrb[0].mxu0
      %1455 = vdwg.mxu0
      %v1457 = vsel %vm574, %v1178, 0
      %v1460 = vsel %vm574, %v1179, 0
      %v1463 = vsel %vm574, %v1180, 0
      %v1466 = vsel %vm574, %v1181, 0
      %1468 = vmatprep.subr.bf16.mxu0 0
      %1469 = vmatpush1.bf16.msra.mxu0 %v999
      %1470 = vmatprep.subr.bf16.mxu0 0
      %1471 = vmatpush1.bf16.msra.mxu0 %v1001
      %1472 = vmatprep.subr.bf16.mxu0 0
      %1473 = vmatpush1.bf16.msra.mxu0 %v1003
      %1474 = vmatprep.subr.bf16.mxu0 0
      %1475 = vmatpush1.bf16.msra.mxu0 %v1005
      %1476 = vmatprep.subr.bf16.mxu0 0
      %1477 = vmatpush1.bf16.msra.mxu0 0
      %1478 = vmatprep.subr.bf16.mxu0 0
      %1479 = vmatpush1.bf16.msra.mxu0 0
      %1480 = vmatprep.subr.bf16.mxu0 0
      %1481 = vmatpush1.bf16.msra.mxu0 0
      %1482 = vmatprep.subr.bf16.mxu0 0
      %1483 = vmatpush1.bf16.msra.mxu0 0
      %1484 = vmatprep.subr.bf16.mxu0 0
      %1485 = vmatpush1.bf16.msra.mxu0 0
      %1486 = vmatprep.subr.bf16.mxu0 0
      %1487 = vmatpush1.bf16.msra.mxu0 0
      %1488 = vmatprep.subr.bf16.mxu0 0
      %1489 = vmatpush1.bf16.msra.mxu0 0
      %1490 = vmatprep.subr.bf16.mxu0 0
      %1491 = vmatpush1.bf16.msra.mxu0 0
      %1492 = vmatprep.subr.bf16.mxu0 0
      %1493 = vmatpush1.bf16.msra.mxu0 0
      %1494 = vmatprep.subr.bf16.mxu0 0
      %1495 = vmatpush1.bf16.msra.mxu0 0
      %1496 = vmatprep.subr.bf16.mxu0 0
      %1497 = vmatpush1.bf16.msra.mxu0 0
      %1498 = vmatprep.subr.bf16.mxu0 0
      %1499 = vmatpush1.bf16.msra.mxu0 0
      %1500 = vmatprep.mubr.bf16.mxu0 0
      %1501 = vmatmul.mubr.bf16.gmra.mrb[0].mxu0 %v1457
      %v1502 = vpop.f32.mrb[0].mxu0
      %v1503 = vadd.f32 %v1426, %v1502
      %v1504 = vpop.f32.mrb[0].mxu0
      %v1505 = vpop.f32.mrb[0].mxu0
      %v1506 = vadd.f32 %v1429, %v1505
      %v1507 = vpop.f32.mrb[0].mxu0
      %1508 = vmatprep.mubr.bf16.mxu0 0
      %1509 = vmatmul.mubr.bf16.gmra.mrb[0].mxu0 %v1460
      %v1510 = vpop.f32.mrb[0].mxu0
      %v1511 = vadd.f32 %v1434, %v1510
      %v1512 = vpop.f32.mrb[0].mxu0
      %v1513 = vpop.f32.mrb[0].mxu0
      %v1514 = vadd.f32 %v1437, %v1513
      %v1515 = vpop.f32.mrb[0].mxu0
      %1516 = vmatprep.mubr.bf16.mxu0 0
      %1517 = vmatmul.mubr.bf16.gmra.mrb[0].mxu0 %v1463
      %v1518 = vpop.f32.mrb[0].mxu0
      %v1519 = vadd.f32 %v1442, %v1518
      %v1520 = vpop.f32.mrb[0].mxu0
      %v1521 = vpop.f32.mrb[0].mxu0
      %v1522 = vadd.f32 %v1445, %v1521
      %v1523 = vpop.f32.mrb[0].mxu0
      %1524 = vmatprep.mubr.bf16.mxu0 0
      %1525 = vmatmul.mubr.bf16.gmra.mrb[0].mxu0 %v1466
      %v1526 = vpop.f32.mrb[0].mxu0
      %v1527 = vadd.f32 %v1450, %v1526
      %v1528 = vpop.f32.mrb[0].mxu0
      %v1529 = vpop.f32.mrb[0].mxu0
      %v1530 = vadd.f32 %v1453, %v1529
      %v1531 = vpop.f32.mrb[0].mxu0
      %1532 = vdwg.mxu0
      %v1534 = vsel %vm574, %v992, 0
      %v1537 = vsel %vm574, %v994, 0
      %v1540 = vsel %vm574, %v996, 0
      %v1543 = vsel %vm574, %v998, 0
      %1545 = vmatprep.subr.bf16.mxu0 0
      %1546 = vmatpush1.bf16.xpose.msra.mxu0 %v774
      %1547 = vmatprep.subr.bf16.mxu0 0
      %1548 = vmatpush1.bf16.xpose.msra.mxu0 %v777
      %1549 = vmatprep.subr.bf16.mxu0 0
      %1550 = vmatpush1.bf16.xpose.msra.mxu0 %v780
      %1551 = vmatprep.subr.bf16.mxu0 0
      %1552 = vmatpush1.bf16.xpose.msra.mxu0 %v783
      %1553 = vmatprep.subr.bf16.mxu0 0
      %1554 = vmatpush1.bf16.xpose.msra.mxu0 0
      %1555 = vmatprep.subr.bf16.mxu0 0
      %1556 = vmatpush1.bf16.xpose.msra.mxu0 0
      %1557 = vmatprep.subr.bf16.mxu0 0
      %1558 = vmatpush1.bf16.xpose.msra.mxu0 0
      %1559 = vmatprep.subr.bf16.mxu0 0
      %1560 = vmatpush1.bf16.xpose.msra.mxu0 0
      %1561 = vmatprep.subr.bf16.mxu0 0
      %1562 = vmatpush1.bf16.xpose.msra.mxu0 0
      %1563 = vmatprep.subr.bf16.mxu0 0
      %1564 = vmatpush1.bf16.xpose.msra.mxu0 0
      %1565 = vmatprep.subr.bf16.mxu0 0
      %1566 = vmatpush1.bf16.xpose.msra.mxu0 0
      %1567 = vmatprep.subr.bf16.mxu0 0
      %1568 = vmatpush1.bf16.xpose.msra.mxu0 0
      %1569 = vmatprep.subr.bf16.mxu0 0
      %1570 = vmatpush1.bf16.xpose.msra.mxu0 0
      %1571 = vmatprep.subr.bf16.mxu0 0
      %1572 = vmatpush1.bf16.xpose.msra.mxu0 0
      %1573 = vmatprep.subr.bf16.mxu0 0
      %1574 = vmatpush1.bf16.xpose.msra.mxu0 0
      %1575 = vmatprep.subr.bf16.mxu0 0
      %1576 = vmatpush1.bf16.xpose.msra.mxu0 0
      %1577 = vmatprep.mubr.bf16.mxu0 0
      %1578 = vmatmul.mubr.bf16.gmra.mrb[0].mxu0 %v1534
      %v1579 = vpop.f32.mrb[0].mxu0
      %v1580 = vadd.f32 %v1011, %v1579
      %v1581 = vpop.f32.mrb[0].mxu0
      %v1582 = vpop.f32.mrb[0].mxu0
      %v1583 = vadd.f32 %v1011, %v1582
      %v1584 = vpop.f32.mrb[0].mxu0
      %1585 = vmatprep.mubr.bf16.mxu0 0
      %1586 = vmatmul.mubr.bf16.gmra.mrb[0].mxu0 %v1537
      %v1587 = vpop.f32.mrb[0].mxu0
      %v1588 = vadd.f32 %v1011, %v1587
      %v1589 = vpop.f32.mrb[0].mxu0
      %v1590 = vpop.f32.mrb[0].mxu0
      %v1591 = vadd.f32 %v1011, %v1590
      %v1592 = vpop.f32.mrb[0].mxu0
      %1593 = vmatprep.mubr.bf16.mxu0 0
      %1594 = vmatmul.mubr.bf16.gmra.mrb[0].mxu0 %v1540
      %v1595 = vpop.f32.mrb[0].mxu0
      %v1596 = vadd.f32 %v1011, %v1595
      %v1597 = vpop.f32.mrb[0].mxu0
      %v1598 = vpop.f32.mrb[0].mxu0
      %v1599 = vadd.f32 %v1011, %v1598
      %v1600 = vpop.f32.mrb[0].mxu0
      %1601 = vmatprep.mubr.bf16.mxu0 0
      %1602 = vmatmul.mubr.bf16.gmra.mrb[0].mxu0 %v1543
      %v1603 = vpop.f32.mrb[0].mxu0
      %v1604 = vadd.f32 %v1011, %v1603
      %v1605 = vpop.f32.mrb[0].mxu0
      %v1606 = vpop.f32.mrb[0].mxu0
      %v1607 = vadd.f32 %v1011, %v1606
      %v1608 = vpop.f32.mrb[0].mxu0
      %1609 = vdwg.mxu0
      %v1610 = vsel %vm574, %v1580, -inf
      %1611 = vmax.xlane.f32.xlu0 %v1610
      %v1612 = vpop.xlane.xlu0 %1611
      %v1613 = vsel %vm574, %v1583, -inf
      %1614 = vmax.xlane.f32.xlu0 %v1613
      %v1615 = vpop.xlane.xlu0 %1614
      %v1616 = vsel %vm574, %v1588, -inf
      %1617 = vmax.xlane.f32.xlu0 %v1616
      %v1618 = vpop.xlane.xlu0 %1617
      %v1619 = vsel %vm574, %v1591, -inf
      %1620 = vmax.xlane.f32.xlu0 %v1619
      %v1621 = vpop.xlane.xlu0 %1620
      %v1622 = vsel %vm574, %v1596, -inf
      %1623 = vmax.xlane.f32.xlu0 %v1622
      %v1624 = vpop.xlane.xlu0 %1623
      %v1625 = vsel %vm574, %v1599, -inf
      %1626 = vmax.xlane.f32.xlu0 %v1625
      %v1627 = vpop.xlane.xlu0 %1626
      %v1628 = vsel %vm574, %v1604, -inf
      %1629 = vmax.xlane.f32.xlu0 %v1628
      %v1630 = vpop.xlane.xlu0 %1629
      %v1631 = vsel %vm574, %v1607, -inf
      %1632 = vmax.xlane.f32.xlu0 %v1631
      %v1633 = vpop.xlane.xlu0 %1632
      %v1634 = vsub.f32 %v1580, %v1612
      %v1635 = vsub.f32 %v1583, %v1615
      %v1636 = vsub.f32 %v1588, %v1618
      %v1637 = vsub.f32 %v1591, %v1621
      %v1638 = vsub.f32 %v1596, %v1624
      %v1639 = vsub.f32 %v1599, %v1627
      %v1640 = vsub.f32 %v1604, %v1630
      %v1641 = vsub.f32 %v1607, %v1633
      %v1642 = vmul.f32 %v1634, 1.442695
      %v1643 = vpow.pop %v1642
      %v1644 = vmul.f32 %v1635, 1.442695
      %v1645 = vpow.pop %v1644
      %v1646 = vmul.f32 %v1636, 1.442695
      %v1647 = vpow.pop %v1646
      %v1648 = vmul.f32 %v1637, 1.442695
      %v1649 = vpow.pop %v1648
      %v1650 = vmul.f32 %v1638, 1.442695
      %v1651 = vpow.pop %v1650
      %v1652 = vmul.f32 %v1639, 1.442695
      %v1653 = vpow.pop %v1652
      %v1654 = vmul.f32 %v1640, 1.442695
      %v1655 = vpow.pop %v1654
      %v1656 = vmul.f32 %v1641, 1.442695
      %v1657 = vpow.pop %v1656
      %v1658 = vsel %vm574, %v1643, 0.0
      %1659 = vadd.xlane.f32.xlu0 %v1658
      %v1660 = vpop.xlane.xlu0 %1659
      %v1661 = vsel %vm574, %v1645, 0.0
      %1662 = vadd.xlane.f32.xlu0 %v1661
      %v1663 = vpop.xlane.xlu0 %1662
      %v1664 = vsel %vm574, %v1647, 0.0
      %1665 = vadd.xlane.f32.xlu0 %v1664
      %v1666 = vpop.xlane.xlu0 %1665
      %v1667 = vsel %vm574, %v1649, 0.0
      %1668 = vadd.xlane.f32.xlu0 %v1667
      %v1669 = vpop.xlane.xlu0 %1668
      %v1670 = vsel %vm574, %v1651, 0.0
      %1671 = vadd.xlane.f32.xlu0 %v1670
      %v1672 = vpop.xlane.xlu0 %1671
      %v1673 = vsel %vm574, %v1653, 0.0
      %1674 = vadd.xlane.f32.xlu0 %v1673
      %v1675 = vpop.xlane.xlu0 %1674
      %v1676 = vsel %vm574, %v1655, 0.0
      %1677 = vadd.xlane.f32.xlu0 %v1676
      %v1678 = vpop.xlane.xlu0 %1677
      %v1679 = vsel %vm574, %v1657, 0.0
      %1680 = vadd.xlane.f32.xlu0 %v1679
      %v1681 = vpop.xlane.xlu0 %1680
      %v1682 = vrcp.pop %v1660
      %v1683 = vrcp.pop %v1663
      %v1684 = vrcp.pop %v1666
      %v1685 = vrcp.pop %v1669
      %v1686 = vrcp.pop %v1672
      %v1687 = vrcp.pop %v1675
      %v1688 = vrcp.pop %v1678
      %v1689 = vrcp.pop %v1681
      %v1690 = vmul.f32 %v1643, %v1682
      %v1691 = vmul.f32 %v1645, %v1683
      %v1692 = vmul.f32 %v1647, %v1684
      %v1693 = vmul.f32 %v1649, %v1685
      %v1694 = vmul.f32 %v1651, %v1686
      %v1695 = vmul.f32 %v1653, %v1687
      %v1696 = vmul.f32 %v1655, %v1688
      %v1697 = vmul.f32 %v1657, %v1689
      %v1698 = vpack.c.bf16 %v1691, %v1690
      %v1699 = vpack.c.bf16 %v1693, %v1692
      %v1700 = vpack.c.bf16 %v1695, %v1694
      %v1701 = vpack.c.bf16 %v1697, %v1696
      %v1703 = vsel %vm574, %v1698, 0
      %v1706 = vsel %vm574, %v1699, 0
      %v1709 = vsel %vm574, %v1700, 0
      %v1712 = vsel %vm574, %v1701, 0
      %1714 = vmatprep.subr.bf16.mxu0 0
      %1715 = vmatpush1.bf16.msra.mxu0 %v1000
      %1716 = vmatprep.subr.bf16.mxu0 0
      %1717 = vmatpush1.bf16.msra.mxu0 %v1002
      %1718 = vmatprep.subr.bf16.mxu0 0
      %1719 = vmatpush1.bf16.msra.mxu0 %v1004
      %1720 = vmatprep.subr.bf16.mxu0 0
      %1721 = vmatpush1.bf16.msra.mxu0 %v1006
      %1722 = vmatprep.subr.bf16.mxu0 0
      %1723 = vmatpush1.bf16.msra.mxu0 0
      %1724 = vmatprep.subr.bf16.mxu0 0
      %1725 = vmatpush1.bf16.msra.mxu0 0
      %1726 = vmatprep.subr.bf16.mxu0 0
      %1727 = vmatpush1.bf16.msra.mxu0 0
      %1728 = vmatprep.subr.bf16.mxu0 0
      %1729 = vmatpush1.bf16.msra.mxu0 0
      %1730 = vmatprep.subr.bf16.mxu0 0
      %1731 = vmatpush1.bf16.msra.mxu0 0
      %1732 = vmatprep.subr.bf16.mxu0 0
      %1733 = vmatpush1.bf16.msra.mxu0 0
      %1734 = vmatprep.subr.bf16.mxu0 0
      %1735 = vmatpush1.bf16.msra.mxu0 0
      %1736 = vmatprep.subr.bf16.mxu0 0
      %1737 = vmatpush1.bf16.msra.mxu0 0
      %1738 = vmatprep.subr.bf16.mxu0 0
      %1739 = vmatpush1.bf16.msra.mxu0 0
      %1740 = vmatprep.subr.bf16.mxu0 0
      %1741 = vmatpush1.bf16.msra.mxu0 0
      %1742 = vmatprep.subr.bf16.mxu0 0
      %1743 = vmatpush1.bf16.msra.mxu0 0
      %1744 = vmatprep.subr.bf16.mxu0 0
      %1745 = vmatpush1.bf16.msra.mxu0 0
      %1746 = vmatprep.mubr.bf16.mxu0 0
      %1747 = vmatmul.mubr.bf16.gmra.mrb[0].mxu0 %v1703
      %v1748 = vpop.f32.mrb[0].mxu0
      %v1749 = vadd.f32 0.0, %v1748
      %v1750 = vpop.f32.mrb[0].mxu0
      %v1751 = vpop.f32.mrb[0].mxu0
      %v1752 = vadd.f32 0.0, %v1751
      %v1753 = vpop.f32.mrb[0].mxu0
      %1754 = vmatprep.mubr.bf16.mxu0 0
      %1755 = vmatmul.mubr.bf16.gmra.mrb[0].mxu0 %v1706
      %v1756 = vpop.f32.mrb[0].mxu0
      %v1757 = vadd.f32 0.0, %v1756
      %v1758 = vpop.f32.mrb[0].mxu0
      %v1759 = vpop.f32.mrb[0].mxu0
      %v1760 = vadd.f32 0.0, %v1759
      %v1761 = vpop.f32.mrb[0].mxu0
      %1762 = vmatprep.mubr.bf16.mxu0 0
      %1763 = vmatmul.mubr.bf16.gmra.mrb[0].mxu0 %v1709
      %v1764 = vpop.f32.mrb[0].mxu0
      %v1765 = vadd.f32 0.0, %v1764
      %v1766 = vpop.f32.mrb[0].mxu0
      %v1767 = vpop.f32.mrb[0].mxu0
      %v1768 = vadd.f32 0.0, %v1767
      %v1769 = vpop.f32.mrb[0].mxu0
      %1770 = vmatprep.mubr.bf16.mxu0 0
      %1771 = vmatmul.mubr.bf16.gmra.mrb[0].mxu0 %v1712
      %v1772 = vpop.f32.mrb[0].mxu0
      %v1773 = vadd.f32 0.0, %v1772
      %v1774 = vpop.f32.mrb[0].mxu0
      %v1775 = vpop.f32.mrb[0].mxu0
      %v1776 = vadd.f32 0.0, %v1775
      %v1777 = vpop.f32.mrb[0].mxu0
      %1778 = vdwg.mxu0
      %v1779 = vadd.f32 %v1503, %v1749
      %v1780 = vadd.f32 %v1506, %v1752
      %v1781 = vadd.f32 %v1511, %v1757
      %v1782 = vadd.f32 %v1514, %v1760
      %v1783 = vadd.f32 %v1519, %v1765
      %v1784 = vadd.f32 %v1522, %v1768
      %v1785 = vadd.f32 %v1527, %v1773
      %v1786 = vadd.f32 %v1530, %v1776
      %1791 = vrot.lane.b32.xlu0 %v992, 64
      %v1792 = vpop.permute.xlu0 %1791
      %1793 = vrot.lane.b32.xlu0 %v994, 64
      %v1794 = vpop.permute.xlu0 %1793
      %1795 = vrot.lane.b32.xlu0 %v996, 64
      %v1796 = vpop.permute.xlu0 %1795
      %1797 = vrot.lane.b32.xlu0 %v998, 64
      %v1798 = vpop.permute.xlu0 %1797
      %v1800 = vsel %vm574, %v1792, 0
      %v1803 = vsel %vm574, %v1794, 0
      %v1806 = vsel %vm574, %v1796, 0
      %v1809 = vsel %vm574, %v1798, 0
      %1811 = vmatprep.subr.bf16.mxu0 0
      %1812 = vmatpush1.bf16.xpose.msra.mxu0 %v774
      %1813 = vmatprep.subr.bf16.mxu0 0
      %1814 = vmatpush1.bf16.xpose.msra.mxu0 %v777
      %1815 = vmatprep.subr.bf16.mxu0 0
      %1816 = vmatpush1.bf16.xpose.msra.mxu0 %v780
      %1817 = vmatprep.subr.bf16.mxu0 0
      %1818 = vmatpush1.bf16.xpose.msra.mxu0 %v783
      %1819 = vmatprep.subr.bf16.mxu0 0
      %1820 = vmatpush1.bf16.xpose.msra.mxu0 0
      %1821 = vmatprep.subr.bf16.mxu0 0
      %1822 = vmatpush1.bf16.xpose.msra.mxu0 0
      %1823 = vmatprep.subr.bf16.mxu0 0
      %1824 = vmatpush1.bf16.xpose.msra.mxu0 0
      %1825 = vmatprep.subr.bf16.mxu0 0
      %1826 = vmatpush1.bf16.xpose.msra.mxu0 0
      %1827 = vmatprep.subr.bf16.mxu0 0
      %1828 = vmatpush1.bf16.xpose.msra.mxu0 0
      %1829 = vmatprep.subr.bf16.mxu0 0
      %1830 = vmatpush1.bf16.xpose.msra.mxu0 0
      %1831 = vmatprep.subr.bf16.mxu0 0
      %1832 = vmatpush1.bf16.xpose.msra.mxu0 0
      %1833 = vmatprep.subr.bf16.mxu0 0
      %1834 = vmatpush1.bf16.xpose.msra.mxu0 0
      %1835 = vmatprep.subr.bf16.mxu0 0
      %1836 = vmatpush1.bf16.xpose.msra.mxu0 0
      %1837 = vmatprep.subr.bf16.mxu0 0
      %1838 = vmatpush1.bf16.xpose.msra.mxu0 0
      %1839 = vmatprep.subr.bf16.mxu0 0
      %1840 = vmatpush1.bf16.xpose.msra.mxu0 0
      %1841 = vmatprep.subr.bf16.mxu0 0
      %1842 = vmatpush1.bf16.xpose.msra.mxu0 0
      %1843 = vmatprep.mubr.bf16.mxu0 0
      %1844 = vmatmul.mubr.bf16.gmra.mrb[0].mxu0 %v1800
      %v1845 = vpop.f32.mrb[0].mxu0
      %v1846 = vadd.f32 %v1011, %v1845
      %v1847 = vpop.f32.mrb[0].mxu0
      %v1848 = vpop.f32.mrb[0].mxu0
      %v1849 = vadd.f32 %v1011, %v1848
      %v1850 = vpop.f32.mrb[0].mxu0
      %1851 = vmatprep.mubr.bf16.mxu0 0
      %1852 = vmatmul.mubr.bf16.gmra.mrb[0].mxu0 %v1803
      %v1853 = vpop.f32.mrb[0].mxu0
      %v1854 = vadd.f32 %v1011, %v1853
      %v1855 = vpop.f32.mrb[0].mxu0
      %v1856 = vpop.f32.mrb[0].mxu0
      %v1857 = vadd.f32 %v1011, %v1856
      %v1858 = vpop.f32.mrb[0].mxu0
      %1859 = vmatprep.mubr.bf16.mxu0 0
      %1860 = vmatmul.mubr.bf16.gmra.mrb[0].mxu0 %v1806
      %v1861 = vpop.f32.mrb[0].mxu0
      %v1862 = vadd.f32 %v1011, %v1861
      %v1863 = vpop.f32.mrb[0].mxu0
      %v1864 = vpop.f32.mrb[0].mxu0
      %v1865 = vadd.f32 %v1011, %v1864
      %v1866 = vpop.f32.mrb[0].mxu0
      %1867 = vmatprep.mubr.bf16.mxu0 0
      %1868 = vmatmul.mubr.bf16.gmra.mrb[0].mxu0 %v1809
      %v1869 = vpop.f32.mrb[0].mxu0
      %v1870 = vadd.f32 %v1011, %v1869
      %v1871 = vpop.f32.mrb[0].mxu0
      %v1872 = vpop.f32.mrb[0].mxu0
      %v1873 = vadd.f32 %v1011, %v1872
      %v1874 = vpop.f32.mrb[0].mxu0
      %1875 = vdwg.mxu0
      %v1876 = vsel %vm574, %v1846, -inf
      %1877 = vmax.xlane.f32.xlu0 %v1876
      %v1878 = vpop.xlane.xlu0 %1877
      %v1879 = vsel %vm574, %v1849, -inf
      %1880 = vmax.xlane.f32.xlu0 %v1879
      %v1881 = vpop.xlane.xlu0 %1880
      %v1882 = vsel %vm574, %v1854, -inf
      %1883 = vmax.xlane.f32.xlu0 %v1882
      %v1884 = vpop.xlane.xlu0 %1883
      %v1885 = vsel %vm574, %v1857, -inf
      %1886 = vmax.xlane.f32.xlu0 %v1885
      %v1887 = vpop.xlane.xlu0 %1886
      %v1888 = vsel %vm574, %v1862, -inf
      %1889 = vmax.xlane.f32.xlu0 %v1888
      %v1890 = vpop.xlane.xlu0 %1889
      %v1891 = vsel %vm574, %v1865, -inf
      %1892 = vmax.xlane.f32.xlu0 %v1891
      %v1893 = vpop.xlane.xlu0 %1892
      %v1894 = vsel %vm574, %v1870, -inf
      %1895 = vmax.xlane.f32.xlu0 %v1894
      %v1896 = vpop.xlane.xlu0 %1895
      %v1897 = vsel %vm574, %v1873, -inf
      %1898 = vmax.xlane.f32.xlu0 %v1897
      %v1899 = vpop.xlane.xlu0 %1898
      %v1900 = vsub.f32 %v1846, %v1878
      %v1901 = vsub.f32 %v1849, %v1881
      %v1902 = vsub.f32 %v1854, %v1884
      %v1903 = vsub.f32 %v1857, %v1887
      %v1904 = vsub.f32 %v1862, %v1890
      %v1905 = vsub.f32 %v1865, %v1893
      %v1906 = vsub.f32 %v1870, %v1896
      %v1907 = vsub.f32 %v1873, %v1899
      %v1908 = vmul.f32 %v1900, 1.442695
      %v1909 = vpow.pop %v1908
      %v1910 = vmul.f32 %v1901, 1.442695
      %v1911 = vpow.pop %v1910
      %v1912 = vmul.f32 %v1902, 1.442695
      %v1913 = vpow.pop %v1912
      %v1914 = vmul.f32 %v1903, 1.442695
      %v1915 = vpow.pop %v1914
      %v1916 = vmul.f32 %v1904, 1.442695
      %v1917 = vpow.pop %v1916
      %v1918 = vmul.f32 %v1905, 1.442695
      %v1919 = vpow.pop %v1918
      %v1920 = vmul.f32 %v1906, 1.442695
      %v1921 = vpow.pop %v1920
      %v1922 = vmul.f32 %v1907, 1.442695
      %v1923 = vpow.pop %v1922
      %v1924 = vsel %vm574, %v1909, 0.0
      %1925 = vadd.xlane.f32.xlu0 %v1924
      %v1926 = vpop.xlane.xlu0 %1925
      %v1927 = vsel %vm574, %v1911, 0.0
      %1928 = vadd.xlane.f32.xlu0 %v1927
      %v1929 = vpop.xlane.xlu0 %1928
      %v1930 = vsel %vm574, %v1913, 0.0
      %1931 = vadd.xlane.f32.xlu0 %v1930
      %v1932 = vpop.xlane.xlu0 %1931
      %v1933 = vsel %vm574, %v1915, 0.0
      %1934 = vadd.xlane.f32.xlu0 %v1933
      %v1935 = vpop.xlane.xlu0 %1934
      %v1936 = vsel %vm574, %v1917, 0.0
      %1937 = vadd.xlane.f32.xlu0 %v1936
      %v1938 = vpop.xlane.xlu0 %1937
      %v1939 = vsel %vm574, %v1919, 0.0
      %1940 = vadd.xlane.f32.xlu0 %v1939
      %v1941 = vpop.xlane.xlu0 %1940
      %v1942 = vsel %vm574, %v1921, 0.0
      %1943 = vadd.xlane.f32.xlu0 %v1942
      %v1944 = vpop.xlane.xlu0 %1943
      %v1945 = vsel %vm574, %v1923, 0.0
      %1946 = vadd.xlane.f32.xlu0 %v1945
      %v1947 = vpop.xlane.xlu0 %1946
      %v1948 = vrcp.pop %v1926
      %v1949 = vrcp.pop %v1929
      %v1950 = vrcp.pop %v1932
      %v1951 = vrcp.pop %v1935
      %v1952 = vrcp.pop %v1938
      %v1953 = vrcp.pop %v1941
      %v1954 = vrcp.pop %v1944
      %v1955 = vrcp.pop %v1947
      %v1956 = vmul.f32 %v1909, %v1948
      %v1957 = vmul.f32 %v1911, %v1949
      %v1958 = vmul.f32 %v1913, %v1950
      %v1959 = vmul.f32 %v1915, %v1951
      %v1960 = vmul.f32 %v1917, %v1952
      %v1961 = vmul.f32 %v1919, %v1953
      %v1962 = vmul.f32 %v1921, %v1954
      %v1963 = vmul.f32 %v1923, %v1955
      %v1964 = vpack.c.bf16 %v1957, %v1956
      %v1965 = vpack.c.bf16 %v1959, %v1958
      %v1966 = vpack.c.bf16 %v1961, %v1960
      %v1967 = vpack.c.bf16 %v1963, %v1962
      %1972 = vrot.lane.b32.xlu0 %v1000, 64
      %v1973 = vpop.permute.xlu0 %1972
      %1974 = vrot.lane.b32.xlu0 %v1002, 64
      %v1975 = vpop.permute.xlu0 %1974
      %1976 = vrot.lane.b32.xlu0 %v1004, 64
      %v1977 = vpop.permute.xlu0 %1976
      %1978 = vrot.lane.b32.xlu0 %v1006, 64
      %v1979 = vpop.permute.xlu0 %1978
      %v1985 = vsel %vm574, %v1964, 0
      %v1988 = vsel %vm574, %v1965, 0
      %v1991 = vsel %vm574, %v1966, 0
      %v1994 = vsel %vm574, %v1967, 0
      %1996 = vmatprep.subr.bf16.mxu0 0
      %1997 = vmatpush1.bf16.msra.mxu0 %v1973
      %1998 = vmatprep.subr.bf16.mxu0 0
      %1999 = vmatpush1.bf16.msra.mxu0 %v1975
      %2000 = vmatprep.subr.bf16.mxu0 0
      %2001 = vmatpush1.bf16.msra.mxu0 %v1977
      %2002 = vmatprep.subr.bf16.mxu0 0
      %2003 = vmatpush1.bf16.msra.mxu0 %v1979
      %2004 = vmatprep.subr.bf16.mxu0 0
      %2005 = vmatpush1.bf16.msra.mxu0 0
      %2006 = vmatprep.subr.bf16.mxu0 0
      %2007 = vmatpush1.bf16.msra.mxu0 0
      %2008 = vmatprep.subr.bf16.mxu0 0
      %2009 = vmatpush1.bf16.msra.mxu0 0
      %2010 = vmatprep.subr.bf16.mxu0 0
      %2011 = vmatpush1.bf16.msra.mxu0 0
      %2012 = vmatprep.subr.bf16.mxu0 0
      %2013 = vmatpush1.bf16.msra.mxu0 0
      %2014 = vmatprep.subr.bf16.mxu0 0
      %2015 = vmatpush1.bf16.msra.mxu0 0
      %2016 = vmatprep.subr.bf16.mxu0 0
      %2017 = vmatpush1.bf16.msra.mxu0 0
      %2018 = vmatprep.subr.bf16.mxu0 0
      %2019 = vmatpush1.bf16.msra.mxu0 0
      %2020 = vmatprep.subr.bf16.mxu0 0
      %2021 = vmatpush1.bf16.msra.mxu0 0
      %2022 = vmatprep.subr.bf16.mxu0 0
      %2023 = vmatpush1.bf16.msra.mxu0 0
      %2024 = vmatprep.subr.bf16.mxu0 0
      %2025 = vmatpush1.bf16.msra.mxu0 0
      %2026 = vmatprep.subr.bf16.mxu0 0
      %2027 = vmatpush1.bf16.msra.mxu0 0
      %2028 = vmatprep.mubr.bf16.mxu0 0
      %2029 = vmatmul.mubr.bf16.gmra.mrb[0].mxu0 %v1985
      %v2030 = vpop.f32.mrb[0].mxu0
      %v2031 = vadd.f32 0.0, %v2030
      %v2032 = vpop.f32.mrb[0].mxu0
      %v2033 = vpop.f32.mrb[0].mxu0
      %v2034 = vadd.f32 0.0, %v2033
      %v2035 = vpop.f32.mrb[0].mxu0
      %2036 = vmatprep.mubr.bf16.mxu0 0
      %2037 = vmatmul.mubr.bf16.gmra.mrb[0].mxu0 %v1988
      %v2038 = vpop.f32.mrb[0].mxu0
      %v2039 = vadd.f32 0.0, %v2038
      %v2040 = vpop.f32.mrb[0].mxu0
      %v2041 = vpop.f32.mrb[0].mxu0
      %v2042 = vadd.f32 0.0, %v2041
      %v2043 = vpop.f32.mrb[0].mxu0
      %2044 = vmatprep.mubr.bf16.mxu0 0
      %2045 = vmatmul.mubr.bf16.gmra.mrb[0].mxu0 %v1991
      %v2046 = vpop.f32.mrb[0].mxu0
      %v2047 = vadd.f32 0.0, %v2046
      %v2048 = vpop.f32.mrb[0].mxu0
      %v2049 = vpop.f32.mrb[0].mxu0
      %v2050 = vadd.f32 0.0, %v2049
      %v2051 = vpop.f32.mrb[0].mxu0
      %2052 = vmatprep.mubr.bf16.mxu0 0
      %2053 = vmatmul.mubr.bf16.gmra.mrb[0].mxu0 %v1994
      %v2054 = vpop.f32.mrb[0].mxu0
      %v2055 = vadd.f32 0.0, %v2054
      %v2056 = vpop.f32.mrb[0].mxu0
      %v2057 = vpop.f32.mrb[0].mxu0
      %v2058 = vadd.f32 0.0, %v2057
      %v2059 = vpop.f32.mrb[0].mxu0
      %2060 = vdwg.mxu0
      %v2061 = vadd.f32 %v1779, %v2031
      %v2062 = vadd.f32 %v1780, %v2034
      %v2063 = vadd.f32 %v1781, %v2039
      %v2064 = vadd.f32 %v1782, %v2042
      %v2065 = vadd.f32 %v1783, %v2047
      %v2066 = vadd.f32 %v1784, %v2050
      %v2067 = vadd.f32 %v1785, %v2055
      %v2068 = vadd.f32 %v1786, %v2058
      %v2069 = vadd.f32 %v700, %v2061
      %v2070 = vadd.f32 %v701, %v2062
      %v2071 = vadd.f32 %v702, %v2063
      %v2072 = vadd.f32 %v703, %v2064
      %v2073 = vadd.f32 %v704, %v2065
      %v2074 = vadd.f32 %v705, %v2066
      %v2075 = vadd.f32 %v706, %v2067
      %v2076 = vadd.f32 %v707, %v2068
      %v2077 = vld [vmem:[%s8] sm:$0x1]
      %v2079 = vlaneseq
      %v2080 = vshrl.u32 %v2079, 7
      %v2081 = vsub.s32 0, %v2080
      %v2082 = vrot.slane %v2077, %v2081
      %v2084 = vadd.f32 %v2069, %v2082
      %v2085 = vadd.f32 %v2070, %v2082
      %v2086 = vadd.f32 %v2071, %v2082
      %v2087 = vadd.f32 %v2072, %v2082
      %v2088 = vadd.f32 %v2073, %v2082
      %v2089 = vadd.f32 %v2074, %v2082
      %v2090 = vadd.f32 %v2075, %v2082
      %v2091 = vadd.f32 %v2076, %v2082
      %v2092 = vld [vmem:[%s9] sm:$0x1]
      %v2093 = vld [vmem:[%s10] sm:$0x1]
      %v2094 = vsel %vm574, %v2084, 0.0
      %2095 = vadd.xlane.f32.xlu0 %v2094
      %v2096 = vpop.xlane.xlu0 %2095
      %v2097 = vsel %vm574, %v2085, 0.0
      %2098 = vadd.xlane.f32.xlu0 %v2097
      %v2099 = vpop.xlane.xlu0 %2098
      %v2100 = vsel %vm574, %v2086, 0.0
      %2101 = vadd.xlane.f32.xlu0 %v2100
      %v2102 = vpop.xlane.xlu0 %2101
      %v2103 = vsel %vm574, %v2087, 0.0
      %2104 = vadd.xlane.f32.xlu0 %v2103
      %v2105 = vpop.xlane.xlu0 %2104
      %v2106 = vsel %vm574, %v2088, 0.0
      %2107 = vadd.xlane.f32.xlu0 %v2106
      %v2108 = vpop.xlane.xlu0 %2107
      %v2109 = vsel %vm574, %v2089, 0.0
      %2110 = vadd.xlane.f32.xlu0 %v2109
      %v2111 = vpop.xlane.xlu0 %2110
      %v2112 = vsel %vm574, %v2090, 0.0
      %2113 = vadd.xlane.f32.xlu0 %v2112
      %v2114 = vpop.xlane.xlu0 %2113
      %v2115 = vsel %vm574, %v2091, 0.0
      %2116 = vadd.xlane.f32.xlu0 %v2115
      %v2117 = vpop.xlane.xlu0 %2116
      %v2118 = vmul.f32 %v2096, %v599
      %v2119 = vmul.f32 %v2099, %v599
      %v2120 = vmul.f32 %v2102, %v599
      %v2121 = vmul.f32 %v2105, %v599
      %v2122 = vmul.f32 %v2108, %v599
      %v2123 = vmul.f32 %v2111, %v599
      %v2124 = vmul.f32 %v2114, %v599
      %v2125 = vmul.f32 %v2117, %v599
      %v2126 = vsub.f32 %v2084, %v2118
      %v2127 = vsub.f32 %v2085, %v2119
      %v2128 = vsub.f32 %v2086, %v2120
      %v2129 = vsub.f32 %v2087, %v2121
      %v2130 = vsub.f32 %v2088, %v2122
      %v2131 = vsub.f32 %v2089, %v2123
      %v2132 = vsub.f32 %v2090, %v2124
      %v2133 = vsub.f32 %v2091, %v2125
      %v2134 = vmul.f32 %v2126, %v2126
      %v2135 = vmul.f32 %v2127, %v2127
      %v2136 = vmul.f32 %v2128, %v2128
      %v2137 = vmul.f32 %v2129, %v2129
      %v2138 = vmul.f32 %v2130, %v2130
      %v2139 = vmul.f32 %v2131, %v2131
      %v2140 = vmul.f32 %v2132, %v2132
      %v2141 = vmul.f32 %v2133, %v2133
      %v2142 = vsel %vm574, %v2134, 0.0
      %2143 = vadd.xlane.f32.xlu0 %v2142
      %v2144 = vpop.xlane.xlu0 %2143
      %v2145 = vsel %vm574, %v2135, 0.0
      %2146 = vadd.xlane.f32.xlu0 %v2145
      %v2147 = vpop.xlane.xlu0 %2146
      %v2148 = vsel %vm574, %v2136, 0.0
      %2149 = vadd.xlane.f32.xlu0 %v2148
      %v2150 = vpop.xlane.xlu0 %2149
      %v2151 = vsel %vm574, %v2137, 0.0
      %2152 = vadd.xlane.f32.xlu0 %v2151
      %v2153 = vpop.xlane.xlu0 %2152
      %v2154 = vsel %vm574, %v2138, 0.0
      %2155 = vadd.xlane.f32.xlu0 %v2154
      %v2156 = vpop.xlane.xlu0 %2155
      %v2157 = vsel %vm574, %v2139, 0.0
      %2158 = vadd.xlane.f32.xlu0 %v2157
      %v2159 = vpop.xlane.xlu0 %2158
      %v2160 = vsel %vm574, %v2140, 0.0
      %2161 = vadd.xlane.f32.xlu0 %v2160
      %v2162 = vpop.xlane.xlu0 %2161
      %v2163 = vsel %vm574, %v2141, 0.0
      %2164 = vadd.xlane.f32.xlu0 %v2163
      %v2165 = vpop.xlane.xlu0 %2164
      %v2166 = vmul.f32 %v2144, %v599
      %v2167 = vmul.f32 %v2147, %v599
      %v2168 = vmul.f32 %v2150, %v599
      %v2169 = vmul.f32 %v2153, %v599
      %v2170 = vmul.f32 %v2156, %v599
      %v2171 = vmul.f32 %v2159, %v599
      %v2172 = vmul.f32 %v2162, %v599
      %v2173 = vmul.f32 %v2165, %v599
      %v2174 = vadd.f32 %v2166, 1e-12
      %v2175 = vadd.f32 %v2167, 1e-12
      %v2176 = vadd.f32 %v2168, 1e-12
      %v2177 = vadd.f32 %v2169, 1e-12
      %v2178 = vadd.f32 %v2170, 1e-12
      %v2179 = vadd.f32 %v2171, 1e-12
      %v2180 = vadd.f32 %v2172, 1e-12
      %v2181 = vadd.f32 %v2173, 1e-12
      %v2182 = vrsqrt.pop %v2174
      %v2183 = vrsqrt.pop %v2175
      %v2184 = vrsqrt.pop %v2176
      %v2185 = vrsqrt.pop %v2177
      %v2186 = vrsqrt.pop %v2178
      %v2187 = vrsqrt.pop %v2179
      %v2188 = vrsqrt.pop %v2180
      %v2189 = vrsqrt.pop %v2181
      %v2190 = vmul.f32 %v2126, %v2182
      %v2191 = vmul.f32 %v2127, %v2183
      %v2192 = vmul.f32 %v2128, %v2184
      %v2193 = vmul.f32 %v2129, %v2185
      %v2194 = vmul.f32 %v2130, %v2186
      %v2195 = vmul.f32 %v2131, %v2187
      %v2196 = vmul.f32 %v2132, %v2188
      %v2197 = vmul.f32 %v2133, %v2189
      %v2199 = vlaneseq
      %v2200 = vshrl.u32 %v2199, 7
      %v2201 = vsub.s32 0, %v2200
      %v2202 = vrot.slane %v2092, %v2201
      %v2204 = vmul.f32 %v2190, %v2202
      %v2205 = vmul.f32 %v2191, %v2202
      %v2206 = vmul.f32 %v2192, %v2202
      %v2207 = vmul.f32 %v2193, %v2202
      %v2208 = vmul.f32 %v2194, %v2202
      %v2209 = vmul.f32 %v2195, %v2202
      %v2210 = vmul.f32 %v2196, %v2202
      %v2211 = vmul.f32 %v2197, %v2202
      %v2213 = vlaneseq
      %v2214 = vshrl.u32 %v2213, 7
      %v2215 = vsub.s32 0, %v2214
      %v2216 = vrot.slane %v2093, %v2215
      %v2218 = vadd.f32 %v2204, %v2216
      %v2219 = vadd.f32 %v2205, %v2216
      %v2220 = vadd.f32 %v2206, %v2216
      %v2221 = vadd.f32 %v2207, %v2216
      %v2222 = vadd.f32 %v2208, %v2216
      %v2223 = vadd.f32 %v2209, %v2216
      %v2224 = vadd.f32 %v2210, %v2216
      %v2225 = vadd.f32 %v2211, %v2216
      %v2226 = vpack.c.bf16 %v2219, %v2218
      %v2227 = vpack.c.bf16 %v2221, %v2220
      %v2228 = vpack.c.bf16 %v2223, %v2222
      %v2229 = vpack.c.bf16 %v2225, %v2224
      %v2230 = vld [vmem:[%s11] sm:$0xff]
      %v2231 = vld [vmem:[%s11 + $0x8] sm:$0xff]
      %v2232 = vld [vmem:[%s11 + $0x10] sm:$0xff]
      %v2233 = vld [vmem:[%s11 + $0x18] sm:$0xff]
      %v2234 = vld [vmem:[%s11 + $0x20] sm:$0xff]
      %v2235 = vld [vmem:[%s11 + $0x28] sm:$0xff]
      %v2236 = vld [vmem:[%s11 + $0x30] sm:$0xff]
      %v2237 = vld [vmem:[%s11 + $0x38] sm:$0xff]
      %v2238 = vld [vmem:[%s12] sm:$0x3]
      %v2240 = vlaneseq
      %v2241 = vshrl.u32 %v2240, 7
      %v2242 = vsub.s32 0, %v2241
      %v2243 = vrot.slane %v2238, %v2242
      %v2244 = vlaneseq
      %v2245 = vshrl.u32 %v2244, 7
      %v2246 = vsub.s32 1, %v2245
      %v2247 = vrot.slane %v2238, %v2246
      %v2258 = vunpack.c.l.b16 %v2230
      %v2259 = vunpack.c.h.b16 %v2230
      %v2260 = vunpack.c.l.b16 %v2231
      %v2261 = vunpack.c.h.b16 %v2231
      %v2262 = vunpack.c.l.b16 %v2232
      %v2263 = vunpack.c.h.b16 %v2232
      %v2264 = vunpack.c.l.b16 %v2233
      %v2265 = vunpack.c.h.b16 %v2233
      %v2266 = vunpack.c.l.b16 %v2234
      %v2267 = vunpack.c.h.b16 %v2234
      %v2268 = vunpack.c.l.b16 %v2235
      %v2269 = vunpack.c.h.b16 %v2235
      %v2270 = vunpack.c.l.b16 %v2236
      %v2271 = vunpack.c.h.b16 %v2236
      %v2272 = vunpack.c.l.b16 %v2237
      %v2273 = vunpack.c.h.b16 %v2237
      %v2274 = vpack.c.b16 %v2260, %v2258
      %v2275 = vpack.c.b16 %v2261, %v2259
      %v2276 = vpack.c.b16 %v2264, %v2262
      %v2277 = vpack.c.b16 %v2265, %v2263
      %v2278 = vpack.c.b16 %v2268, %v2266
      %v2279 = vpack.c.b16 %v2269, %v2267
      %v2280 = vpack.c.b16 %v2272, %v2270
      %v2281 = vpack.c.b16 %v2273, %v2271
      %v2291 = vsel %vm574, %v2226, 0
      %v2294 = vsel %vm574, %v2227, 0
      %v2297 = vsel %vm574, %v2228, 0
      %v2300 = vsel %vm574, %v2229, 0
      %2302 = vmatprep.subr.bf16.mxu0 %v2275
      %2303 = vmatpush1.bf16.msra.mxu0 %v2274
      %2304 = vmatprep.subr.bf16.mxu0 %v2277
      %2305 = vmatpush1.bf16.msra.mxu0 %v2276
      %2306 = vmatprep.subr.bf16.mxu0 %v2279
      %2307 = vmatpush1.bf16.msra.mxu0 %v2278
      %2308 = vmatprep.subr.bf16.mxu0 %v2281
      %2309 = vmatpush1.bf16.msra.mxu0 %v2280
      %2310 = vmatprep.subr.bf16.mxu0 0
      %2311 = vmatpush1.bf16.msra.mxu0 0
      %2312 = vmatprep.subr.bf16.mxu0 0
      %2313 = vmatpush1.bf16.msra.mxu0 0
      %2314 = vmatprep.subr.bf16.mxu0 0
      %2315 = vmatpush1.bf16.msra.mxu0 0
      %2316 = vmatprep.subr.bf16.mxu0 0
      %2317 = vmatpush1.bf16.msra.mxu0 0
      %2318 = vmatprep.subr.bf16.mxu0 0
      %2319 = vmatpush1.bf16.msra.mxu0 0
      %2320 = vmatprep.subr.bf16.mxu0 0
      %2321 = vmatpush1.bf16.msra.mxu0 0
      %2322 = vmatprep.subr.bf16.mxu0 0
      %2323 = vmatpush1.bf16.msra.mxu0 0
      %2324 = vmatprep.subr.bf16.mxu0 0
      %2325 = vmatpush1.bf16.msra.mxu0 0
      %2326 = vmatprep.subr.bf16.mxu0 0
      %2327 = vmatpush1.bf16.msra.mxu0 0
      %2328 = vmatprep.subr.bf16.mxu0 0
      %2329 = vmatpush1.bf16.msra.mxu0 0
      %2330 = vmatprep.subr.bf16.mxu0 0
      %2331 = vmatpush1.bf16.msra.mxu0 0
      %2332 = vmatprep.subr.bf16.mxu0 0
      %2333 = vmatpush1.bf16.msra.mxu0 0
      %2334 = vmatprep.mubr.bf16.mxu0 0
      %2335 = vmatmul.mubr.bf16.gmra.mrb[0].mxu0 %v2291
      %v2336 = vpop.f32.mrb[0].mxu0
      %v2337 = vadd.f32 %v2243, %v2336
      %v2338 = vpop.f32.mrb[0].mxu0
      %v2339 = vadd.f32 %v2247, %v2338
      %v2340 = vpop.f32.mrb[0].mxu0
      %v2341 = vadd.f32 %v2243, %v2340
      %v2342 = vpop.f32.mrb[0].mxu0
      %v2343 = vadd.f32 %v2247, %v2342
      %2344 = vmatprep.mubr.bf16.mxu0 0
      %2345 = vmatmul.mubr.bf16.gmra.mrb[0].mxu0 %v2294
      %v2346 = vpop.f32.mrb[0].mxu0
      %v2347 = vadd.f32 %v2243, %v2346
      %v2348 = vpop.f32.mrb[0].mxu0
      %v2349 = vadd.f32 %v2247, %v2348
      %v2350 = vpop.f32.mrb[0].mxu0
      %v2351 = vadd.f32 %v2243, %v2350
      %v2352 = vpop.f32.mrb[0].mxu0
      %v2353 = vadd.f32 %v2247, %v2352
      %2354 = vmatprep.mubr.bf16.mxu0 0
      %2355 = vmatmul.mubr.bf16.gmra.mrb[0].mxu0 %v2297
      %v2356 = vpop.f32.mrb[0].mxu0
      %v2357 = vadd.f32 %v2243, %v2356
      %v2358 = vpop.f32.mrb[0].mxu0
      %v2359 = vadd.f32 %v2247, %v2358
      %v2360 = vpop.f32.mrb[0].mxu0
      %v2361 = vadd.f32 %v2243, %v2360
      %v2362 = vpop.f32.mrb[0].mxu0
      %v2363 = vadd.f32 %v2247, %v2362
      %2364 = vmatprep.mubr.bf16.mxu0 0
      %2365 = vmatmul.mubr.bf16.gmra.mrb[0].mxu0 %v2300
      %v2366 = vpop.f32.mrb[0].mxu0
      %v2367 = vadd.f32 %v2243, %v2366
      %v2368 = vpop.f32.mrb[0].mxu0
      %v2369 = vadd.f32 %v2247, %v2368
      %v2370 = vpop.f32.mrb[0].mxu0
      %v2371 = vadd.f32 %v2243, %v2370
      %v2372 = vpop.f32.mrb[0].mxu0
      %v2373 = vadd.f32 %v2247, %v2372
      %2374 = vdwg.mxu0
      %v2375 = vmul.f32 %v2337, 0.5
      %v2376 = vmul.f32 %v2339, 0.5
      %v2377 = vmul.f32 %v2341, 0.5
      %v2378 = vmul.f32 %v2343, 0.5
      %v2379 = vmul.f32 %v2347, 0.5
      %v2380 = vmul.f32 %v2349, 0.5
      %v2381 = vmul.f32 %v2351, 0.5
      %v2382 = vmul.f32 %v2353, 0.5
      %v2383 = vmul.f32 %v2357, 0.5
      %v2384 = vmul.f32 %v2359, 0.5
      %v2385 = vmul.f32 %v2361, 0.5
      %v2386 = vmul.f32 %v2363, 0.5
      %v2387 = vmul.f32 %v2367, 0.5
      %v2388 = vmul.f32 %v2369, 0.5
      %v2389 = vmul.f32 %v2371, 0.5
      %v2390 = vmul.f32 %v2373, 0.5
      %v2391 = vmul.f32 %v2337, 0.044715
      %v2392 = vmul.f32 %v2339, 0.044715
      %v2393 = vmul.f32 %v2341, 0.044715
      %v2394 = vmul.f32 %v2343, 0.044715
      %v2395 = vmul.f32 %v2347, 0.044715
      %v2396 = vmul.f32 %v2349, 0.044715
      %v2397 = vmul.f32 %v2351, 0.044715
      %v2398 = vmul.f32 %v2353, 0.044715
      %v2399 = vmul.f32 %v2357, 0.044715
      %v2400 = vmul.f32 %v2359, 0.044715
      %v2401 = vmul.f32 %v2361, 0.044715
      %v2402 = vmul.f32 %v2363, 0.044715
      %v2403 = vmul.f32 %v2367, 0.044715
      %v2404 = vmul.f32 %v2369, 0.044715
      %v2405 = vmul.f32 %v2371, 0.044715
      %v2406 = vmul.f32 %v2373, 0.044715
      %v2407 = vmul.f32 %v2391, %v2337
      %v2408 = vmul.f32 %v2392, %v2339
      %v2409 = vmul.f32 %v2393, %v2341
      %v2410 = vmul.f32 %v2394, %v2343
      %v2411 = vmul.f32 %v2395, %v2347
      %v2412 = vmul.f32 %v2396, %v2349
      %v2413 = vmul.f32 %v2397, %v2351
      %v2414 = vmul.f32 %v2398, %v2353
      %v2415 = vmul.f32 %v2399, %v2357
      %v2416 = vmul.f32 %v2400, %v2359
      %v2417 = vmul.f32 %v2401, %v2361
      %v2418 = vmul.f32 %v2402, %v2363
      %v2419 = vmul.f32 %v2403, %v2367
      %v2420 = vmul.f32 %v2404, %v2369
      %v2421 = vmul.f32 %v2405, %v2371
      %v2422 = vmul.f32 %v2406, %v2373
      %v2423 = vmul.f32 %v2407, %v2337
      %v2424 = vmul.f32 %v2408, %v2339
      %v2425 = vmul.f32 %v2409, %v2341
      %v2426 = vmul.f32 %v2410, %v2343
      %v2427 = vmul.f32 %v2411, %v2347
      %v2428 = vmul.f32 %v2412, %v2349
      %v2429 = vmul.f32 %v2413, %v2351
      %v2430 = vmul.f32 %v2414, %v2353
      %v2431 = vmul.f32 %v2415, %v2357
      %v2432 = vmul.f32 %v2416, %v2359
      %v2433 = vmul.f32 %v2417, %v2361
      %v2434 = vmul.f32 %v2418, %v2363
      %v2435 = vmul.f32 %v2419, %v2367
      %v2436 = vmul.f32 %v2420, %v2369
      %v2437 = vmul.f32 %v2421, %v2371
      %v2438 = vmul.f32 %v2422, %v2373
      %v2439 = vadd.f32 %v2337, %v2423
      %v2440 = vadd.f32 %v2339, %v2424
      %v2441 = vadd.f32 %v2341, %v2425
      %v2442 = vadd.f32 %v2343, %v2426
      %v2443 = vadd.f32 %v2347, %v2427
      %v2444 = vadd.f32 %v2349, %v2428
      %v2445 = vadd.f32 %v2351, %v2429
      %v2446 = vadd.f32 %v2353, %v2430
      %v2447 = vadd.f32 %v2357, %v2431
      %v2448 = vadd.f32 %v2359, %v2432
      %v2449 = vadd.f32 %v2361, %v2433
      %v2450 = vadd.f32 %v2363, %v2434
      %v2451 = vadd.f32 %v2367, %v2435
      %v2452 = vadd.f32 %v2369, %v2436
      %v2453 = vadd.f32 %v2371, %v2437
      %v2454 = vadd.f32 %v2373, %v2438
      %v2455 = vmul.f32 %v2439, 0.7978846
      %v2456 = vmul.f32 %v2440, 0.7978846
      %v2457 = vmul.f32 %v2441, 0.7978846
      %v2458 = vmul.f32 %v2442, 0.7978846
      %v2459 = vmul.f32 %v2443, 0.7978846
      %v2460 = vmul.f32 %v2444, 0.7978846
      %v2461 = vmul.f32 %v2445, 0.7978846
      %v2462 = vmul.f32 %v2446, 0.7978846
      %v2463 = vmul.f32 %v2447, 0.7978846
      %v2464 = vmul.f32 %v2448, 0.7978846
      %v2465 = vmul.f32 %v2449, 0.7978846
      %v2466 = vmul.f32 %v2450, 0.7978846
      %v2467 = vmul.f32 %v2451, 0.7978846
      %v2468 = vmul.f32 %v2452, 0.7978846
      %v2469 = vmul.f32 %v2453, 0.7978846
      %v2470 = vmul.f32 %v2454, 0.7978846
      %v2471 = vtanh.pop %v2455
      %v2472 = vtanh.pop %v2456
      %v2473 = vtanh.pop %v2457
      %v2474 = vtanh.pop %v2458
      %v2475 = vtanh.pop %v2459
      %v2476 = vtanh.pop %v2460
      %v2477 = vtanh.pop %v2461
      %v2478 = vtanh.pop %v2462
      %v2479 = vtanh.pop %v2463
      %v2480 = vtanh.pop %v2464
      %v2481 = vtanh.pop %v2465
      %v2482 = vtanh.pop %v2466
      %v2483 = vtanh.pop %v2467
      %v2484 = vtanh.pop %v2468
      %v2485 = vtanh.pop %v2469
      %v2486 = vtanh.pop %v2470
      %v2487 = vadd.f32 %v2471, 1.0
      %v2488 = vadd.f32 %v2472, 1.0
      %v2489 = vadd.f32 %v2473, 1.0
      %v2490 = vadd.f32 %v2474, 1.0
      %v2491 = vadd.f32 %v2475, 1.0
      %v2492 = vadd.f32 %v2476, 1.0
      %v2493 = vadd.f32 %v2477, 1.0
      %v2494 = vadd.f32 %v2478, 1.0
      %v2495 = vadd.f32 %v2479, 1.0
      %v2496 = vadd.f32 %v2480, 1.0
      %v2497 = vadd.f32 %v2481, 1.0
      %v2498 = vadd.f32 %v2482, 1.0
      %v2499 = vadd.f32 %v2483, 1.0
      %v2500 = vadd.f32 %v2484, 1.0
      %v2501 = vadd.f32 %v2485, 1.0
      %v2502 = vadd.f32 %v2486, 1.0
      %v2503 = vmul.f32 %v2375, %v2487
      %v2504 = vmul.f32 %v2376, %v2488
      %v2505 = vmul.f32 %v2377, %v2489
      %v2506 = vmul.f32 %v2378, %v2490
      %v2507 = vmul.f32 %v2379, %v2491
      %v2508 = vmul.f32 %v2380, %v2492
      %v2509 = vmul.f32 %v2381, %v2493
      %v2510 = vmul.f32 %v2382, %v2494
      %v2511 = vmul.f32 %v2383, %v2495
      %v2512 = vmul.f32 %v2384, %v2496
      %v2513 = vmul.f32 %v2385, %v2497
      %v2514 = vmul.f32 %v2386, %v2498
      %v2515 = vmul.f32 %v2387, %v2499
      %v2516 = vmul.f32 %v2388, %v2500
      %v2517 = vmul.f32 %v2389, %v2501
      %v2518 = vmul.f32 %v2390, %v2502
      %v2519 = vpack.c.bf16 %v2505, %v2503
      %v2520 = vpack.c.bf16 %v2506, %v2504
      %v2521 = vpack.c.bf16 %v2509, %v2507
      %v2522 = vpack.c.bf16 %v2510, %v2508
      %v2523 = vpack.c.bf16 %v2513, %v2511
      %v2524 = vpack.c.bf16 %v2514, %v2512
      %v2525 = vpack.c.bf16 %v2517, %v2515
      %v2526 = vpack.c.bf16 %v2518, %v2516
      %v2527 = vld [vmem:[%s13] sm:$0xf]
      %v2528 = vld [vmem:[%s13 + $0x4] sm:$0xf]
      %v2529 = vld [vmem:[%s13 + $0x8] sm:$0xf]
      %v2530 = vld [vmem:[%s13 + $0xc] sm:$0xf]
      %v2531 = vld [vmem:[%s13 + $0x10] sm:$0xf]
      %v2532 = vld [vmem:[%s13 + $0x14] sm:$0xf]
      %v2533 = vld [vmem:[%s13 + $0x18] sm:$0xf]
      %v2534 = vld [vmem:[%s13 + $0x1c] sm:$0xf]
      %v2535 = vld [vmem:[%s13 + $0x20] sm:$0xf]
      %v2536 = vld [vmem:[%s13 + $0x24] sm:$0xf]
      %v2537 = vld [vmem:[%s13 + $0x28] sm:$0xf]
      %v2538 = vld [vmem:[%s13 + $0x2c] sm:$0xf]
      %v2539 = vld [vmem:[%s13 + $0x30] sm:$0xf]
      %v2540 = vld [vmem:[%s13 + $0x34] sm:$0xf]
      %v2541 = vld [vmem:[%s13 + $0x38] sm:$0xf]
      %v2542 = vld [vmem:[%s13 + $0x3c] sm:$0xf]
      %v2543 = vld [vmem:[%s13 + $0x40] sm:$0xf]
      %v2544 = vld [vmem:[%s13 + $0x44] sm:$0xf]
      %v2545 = vld [vmem:[%s13 + $0x48] sm:$0xf]
      %v2546 = vld [vmem:[%s13 + $0x4c] sm:$0xf]
      %v2547 = vld [vmem:[%s13 + $0x50] sm:$0xf]
      %v2548 = vld [vmem:[%s13 + $0x54] sm:$0xf]
      %v2549 = vld [vmem:[%s13 + $0x58] sm:$0xf]
      %v2550 = vld [vmem:[%s13 + $0x5c] sm:$0xf]
      %v2551 = vld [vmem:[%s13 + $0x60] sm:$0xf]
      %v2552 = vld [vmem:[%s13 + $0x64] sm:$0xf]
      %v2553 = vld [vmem:[%s13 + $0x68] sm:$0xf]
      %v2554 = vld [vmem:[%s13 + $0x6c] sm:$0xf]
      %v2555 = vld [vmem:[%s13 + $0x70] sm:$0xf]
      %v2556 = vld [vmem:[%s13 + $0x74] sm:$0xf]
      %v2557 = vld [vmem:[%s13 + $0x78] sm:$0xf]
      %v2558 = vld [vmem:[%s13 + $0x7c] sm:$0xf]
      %v2559 = vld [vmem:[%s14] sm:$0x1]
      %v2561 = vlaneseq
      %v2562 = vshrl.u32 %v2561, 7
      %v2563 = vsub.s32 0, %v2562
      %v2564 = vrot.slane %v2559, %v2563
      %v2598 = vunpack.c.l.b16 %v2527
      %v2599 = vunpack.c.l.b16 %v2528
      %v2600 = vunpack.c.l.b16 %v2529
      %v2601 = vunpack.c.l.b16 %v2530
      %v2602 = vunpack.c.l.b16 %v2531
      %v2603 = vunpack.c.l.b16 %v2532
      %v2604 = vunpack.c.l.b16 %v2533
      %v2605 = vunpack.c.l.b16 %v2534
      %v2606 = vunpack.c.l.b16 %v2535
      %v2607 = vunpack.c.l.b16 %v2536
      %v2608 = vunpack.c.l.b16 %v2537
      %v2609 = vunpack.c.l.b16 %v2538
      %v2610 = vunpack.c.l.b16 %v2539
      %v2611 = vunpack.c.l.b16 %v2540
      %v2612 = vunpack.c.l.b16 %v2541
      %v2613 = vunpack.c.l.b16 %v2542
      %v2614 = vunpack.c.l.b16 %v2543
      %v2615 = vunpack.c.l.b16 %v2544
      %v2616 = vunpack.c.l.b16 %v2545
      %v2617 = vunpack.c.l.b16 %v2546
      %v2618 = vunpack.c.l.b16 %v2547
      %v2619 = vunpack.c.l.b16 %v2548
      %v2620 = vunpack.c.l.b16 %v2549
      %v2621 = vunpack.c.l.b16 %v2550
      %v2622 = vunpack.c.l.b16 %v2551
      %v2623 = vunpack.c.l.b16 %v2552
      %v2624 = vunpack.c.l.b16 %v2553
      %v2625 = vunpack.c.l.b16 %v2554
      %v2626 = vunpack.c.l.b16 %v2555
      %v2627 = vunpack.c.l.b16 %v2556
      %v2628 = vunpack.c.l.b16 %v2557
      %v2629 = vunpack.c.l.b16 %v2558
      %v2630 = vpack.c.b16 %v2599, %v2598
      %v2631 = vpack.c.b16 %v2601, %v2600
      %v2632 = vpack.c.b16 %v2603, %v2602
      %v2633 = vpack.c.b16 %v2605, %v2604
      %v2634 = vpack.c.b16 %v2607, %v2606
      %v2635 = vpack.c.b16 %v2609, %v2608
      %v2636 = vpack.c.b16 %v2611, %v2610
      %v2637 = vpack.c.b16 %v2613, %v2612
      %v2638 = vpack.c.b16 %v2615, %v2614
      %v2639 = vpack.c.b16 %v2617, %v2616
      %v2640 = vpack.c.b16 %v2619, %v2618
      %v2641 = vpack.c.b16 %v2621, %v2620
      %v2642 = vpack.c.b16 %v2623, %v2622
      %v2643 = vpack.c.b16 %v2625, %v2624
      %v2644 = vpack.c.b16 %v2627, %v2626
      %v2645 = vpack.c.b16 %v2629, %v2628
      %2662 = vmatprep.subr.bf16.mxu0 0
      %2663 = vmatpush1.bf16.msra.mxu0 %v2630
      %2664 = vmatprep.subr.bf16.mxu0 0
      %2665 = vmatpush1.bf16.msra.mxu0 %v2631
      %2666 = vmatprep.subr.bf16.mxu0 0
      %2667 = vmatpush1.bf16.msra.mxu0 %v2632
      %2668 = vmatprep.subr.bf16.mxu0 0
      %2669 = vmatpush1.bf16.msra.mxu0 %v2633
      %2670 = vmatprep.subr.bf16.mxu0 0
      %2671 = vmatpush1.bf16.msra.mxu0 %v2634
      %2672 = vmatprep.subr.bf16.mxu0 0
      %2673 = vmatpush1.bf16.msra.mxu0 %v2635
      %2674 = vmatprep.subr.bf16.mxu0 0
      %2675 = vmatpush1.bf16.msra.mxu0 %v2636
      %2676 = vmatprep.subr.bf16.mxu0 0
      %2677 = vmatpush1.bf16.msra.mxu0 %v2637
      %2678 = vmatprep.subr.bf16.mxu0 0
      %2679 = vmatpush1.bf16.msra.mxu0 %v2638
      %2680 = vmatprep.subr.bf16.mxu0 0
      %2681 = vmatpush1.bf16.msra.mxu0 %v2639
      %2682 = vmatprep.subr.bf16.mxu0 0
      %2683 = vmatpush1.bf16.msra.mxu0 %v2640
      %2684 = vmatprep.subr.bf16.mxu0 0
      %2685 = vmatpush1.bf16.msra.mxu0 %v2641
      %2686 = vmatprep.subr.bf16.mxu0 0
      %2687 = vmatpush1.bf16.msra.mxu0 %v2642
      %2688 = vmatprep.subr.bf16.mxu0 0
      %2689 = vmatpush1.bf16.msra.mxu0 %v2643
      %2690 = vmatprep.subr.bf16.mxu0 0
      %2691 = vmatpush1.bf16.msra.mxu0 %v2644
      %2692 = vmatprep.subr.bf16.mxu0 0
      %2693 = vmatpush1.bf16.msra.mxu0 %v2645
      %2694 = vmatprep.mubr.bf16.mxu0 %v2520
      %2695 = vmatmul.mubr.bf16.gmra.mrb[0].mxu0 %v2519
      %v2696 = vpop.f32.mrb[0].mxu0
      %v2697 = vadd.f32 %v2564, %v2696
      %v2698 = vpop.f32.mrb[0].mxu0
      %v2699 = vpop.f32.mrb[0].mxu0
      %v2700 = vadd.f32 %v2564, %v2699
      %v2701 = vpop.f32.mrb[0].mxu0
      %2702 = vmatprep.mubr.bf16.mxu0 %v2522
      %2703 = vmatmul.mubr.bf16.gmra.mrb[0].mxu0 %v2521
      %v2704 = vpop.f32.mrb[0].mxu0
      %v2705 = vadd.f32 %v2564, %v2704
      %v2706 = vpop.f32.mrb[0].mxu0
      %v2707 = vpop.f32.mrb[0].mxu0
      %v2708 = vadd.f32 %v2564, %v2707
      %v2709 = vpop.f32.mrb[0].mxu0
      %2710 = vmatprep.mubr.bf16.mxu0 %v2524
      %2711 = vmatmul.mubr.bf16.gmra.mrb[0].mxu0 %v2523
      %v2712 = vpop.f32.mrb[0].mxu0
      %v2713 = vadd.f32 %v2564, %v2712
      %v2714 = vpop.f32.mrb[0].mxu0
      %v2715 = vpop.f32.mrb[0].mxu0
      %v2716 = vadd.f32 %v2564, %v2715
      %v2717 = vpop.f32.mrb[0].mxu0
      %2718 = vmatprep.mubr.bf16.mxu0 %v2526
      %2719 = vmatmul.mubr.bf16.gmra.mrb[0].mxu0 %v2525
      %v2720 = vpop.f32.mrb[0].mxu0
      %v2721 = vadd.f32 %v2564, %v2720
      %v2722 = vpop.f32.mrb[0].mxu0
      %v2723 = vpop.f32.mrb[0].mxu0
      %v2724 = vadd.f32 %v2564, %v2723
      %v2725 = vpop.f32.mrb[0].mxu0
      %2726 = vdwg.mxu0
      %v2727 = vadd.f32 %v2218, %v2697
      %v2728 = vadd.f32 %v2219, %v2700
      %v2729 = vadd.f32 %v2220, %v2705
      %v2730 = vadd.f32 %v2221, %v2708
      %v2731 = vadd.f32 %v2222, %v2713
      %v2732 = vadd.f32 %v2223, %v2716
      %v2733 = vadd.f32 %v2224, %v2721
      %v2734 = vadd.f32 %v2225, %v2724
      %v2735 = vld [vmem:[%s15] sm:$0x1]
      %v2736 = vld [vmem:[%s16] sm:$0x1]
      %v2737 = vsel %vm574, %v2727, 0.0
      %2738 = vadd.xlane.f32.xlu0 %v2737
      %v2739 = vpop.xlane.xlu0 %2738
      %v2740 = vsel %vm574, %v2728, 0.0
      %2741 = vadd.xlane.f32.xlu0 %v2740
      %v2742 = vpop.xlane.xlu0 %2741
      %v2743 = vsel %vm574, %v2729, 0.0
      %2744 = vadd.xlane.f32.xlu0 %v2743
      %v2745 = vpop.xlane.xlu0 %2744
      %v2746 = vsel %vm574, %v2730, 0.0
      %2747 = vadd.xlane.f32.xlu0 %v2746
      %v2748 = vpop.xlane.xlu0 %2747
      %v2749 = vsel %vm574, %v2731, 0.0
      %2750 = vadd.xlane.f32.xlu0 %v2749
      %v2751 = vpop.xlane.xlu0 %2750
      %v2752 = vsel %vm574, %v2732, 0.0
      %2753 = vadd.xlane.f32.xlu0 %v2752
      %v2754 = vpop.xlane.xlu0 %2753
      %v2755 = vsel %vm574, %v2733, 0.0
      %2756 = vadd.xlane.f32.xlu0 %v2755
      %v2757 = vpop.xlane.xlu0 %2756
      %v2758 = vsel %vm574, %v2734, 0.0
      %2759 = vadd.xlane.f32.xlu0 %v2758
      %v2760 = vpop.xlane.xlu0 %2759
      %v2761 = vmul.f32 %v2739, %v599
      %v2762 = vmul.f32 %v2742, %v599
      %v2763 = vmul.f32 %v2745, %v599
      %v2764 = vmul.f32 %v2748, %v599
      %v2765 = vmul.f32 %v2751, %v599
      %v2766 = vmul.f32 %v2754, %v599
      %v2767 = vmul.f32 %v2757, %v599
      %v2768 = vmul.f32 %v2760, %v599
      %v2769 = vsub.f32 %v2727, %v2761
      %v2770 = vsub.f32 %v2728, %v2762
      %v2771 = vsub.f32 %v2729, %v2763
      %v2772 = vsub.f32 %v2730, %v2764
      %v2773 = vsub.f32 %v2731, %v2765
      %v2774 = vsub.f32 %v2732, %v2766
      %v2775 = vsub.f32 %v2733, %v2767
      %v2776 = vsub.f32 %v2734, %v2768
      %v2777 = vmul.f32 %v2769, %v2769
      %v2778 = vmul.f32 %v2770, %v2770
      %v2779 = vmul.f32 %v2771, %v2771
      %v2780 = vmul.f32 %v2772, %v2772
      %v2781 = vmul.f32 %v2773, %v2773
      %v2782 = vmul.f32 %v2774, %v2774
      %v2783 = vmul.f32 %v2775, %v2775
      %v2784 = vmul.f32 %v2776, %v2776
      %v2785 = vsel %vm574, %v2777, 0.0
      %2786 = vadd.xlane.f32.xlu0 %v2785
      %v2787 = vpop.xlane.xlu0 %2786
      %v2788 = vsel %vm574, %v2778, 0.0
      %2789 = vadd.xlane.f32.xlu0 %v2788
      %v2790 = vpop.xlane.xlu0 %2789
      %v2791 = vsel %vm574, %v2779, 0.0
      %2792 = vadd.xlane.f32.xlu0 %v2791
      %v2793 = vpop.xlane.xlu0 %2792
      %v2794 = vsel %vm574, %v2780, 0.0
      %2795 = vadd.xlane.f32.xlu0 %v2794
      %v2796 = vpop.xlane.xlu0 %2795
      %v2797 = vsel %vm574, %v2781, 0.0
      %2798 = vadd.xlane.f32.xlu0 %v2797
      %v2799 = vpop.xlane.xlu0 %2798
      %v2800 = vsel %vm574, %v2782, 0.0
      %2801 = vadd.xlane.f32.xlu0 %v2800
      %v2802 = vpop.xlane.xlu0 %2801
      %v2803 = vsel %vm574, %v2783, 0.0
      %2804 = vadd.xlane.f32.xlu0 %v2803
      %v2805 = vpop.xlane.xlu0 %2804
      %v2806 = vsel %vm574, %v2784, 0.0
      %2807 = vadd.xlane.f32.xlu0 %v2806
      %v2808 = vpop.xlane.xlu0 %2807
      %v2809 = vmul.f32 %v2787, %v599
      %v2810 = vmul.f32 %v2790, %v599
      %v2811 = vmul.f32 %v2793, %v599
      %v2812 = vmul.f32 %v2796, %v599
      %v2813 = vmul.f32 %v2799, %v599
      %v2814 = vmul.f32 %v2802, %v599
      %v2815 = vmul.f32 %v2805, %v599
      %v2816 = vmul.f32 %v2808, %v599
      %v2817 = vadd.f32 %v2809, 1e-12
      %v2818 = vadd.f32 %v2810, 1e-12
      %v2819 = vadd.f32 %v2811, 1e-12
      %v2820 = vadd.f32 %v2812, 1e-12
      %v2821 = vadd.f32 %v2813, 1e-12
      %v2822 = vadd.f32 %v2814, 1e-12
      %v2823 = vadd.f32 %v2815, 1e-12
      %v2824 = vadd.f32 %v2816, 1e-12
      %v2825 = vrsqrt.pop %v2817
      %v2826 = vrsqrt.pop %v2818
      %v2827 = vrsqrt.pop %v2819
      %v2828 = vrsqrt.pop %v2820
      %v2829 = vrsqrt.pop %v2821
      %v2830 = vrsqrt.pop %v2822
      %v2831 = vrsqrt.pop %v2823
      %v2832 = vrsqrt.pop %v2824
      %v2833 = vmul.f32 %v2769, %v2825
      %v2834 = vmul.f32 %v2770, %v2826
      %v2835 = vmul.f32 %v2771, %v2827
      %v2836 = vmul.f32 %v2772, %v2828
      %v2837 = vmul.f32 %v2773, %v2829
      %v2838 = vmul.f32 %v2774, %v2830
      %v2839 = vmul.f32 %v2775, %v2831
      %v2840 = vmul.f32 %v2776, %v2832
      %v2842 = vlaneseq
      %v2843 = vshrl.u32 %v2842, 7
      %v2844 = vsub.s32 0, %v2843
      %v2845 = vrot.slane %v2735, %v2844
      %v2847 = vmul.f32 %v2833, %v2845
      %v2848 = vmul.f32 %v2834, %v2845
      %v2849 = vmul.f32 %v2835, %v2845
      %v2850 = vmul.f32 %v2836, %v2845
      %v2851 = vmul.f32 %v2837, %v2845
      %v2852 = vmul.f32 %v2838, %v2845
      %v2853 = vmul.f32 %v2839, %v2845
      %v2854 = vmul.f32 %v2840, %v2845
      %v2856 = vlaneseq
      %v2857 = vshrl.u32 %v2856, 7
      %v2858 = vsub.s32 0, %v2857
      %v2859 = vrot.slane %v2736, %v2858
      %v2861 = vadd.f32 %v2847, %v2859
      %v2862 = vadd.f32 %v2848, %v2859
      %v2863 = vadd.f32 %v2849, %v2859
      %v2864 = vadd.f32 %v2850, %v2859
      %v2865 = vadd.f32 %v2851, %v2859
      %v2866 = vadd.f32 %v2852, %v2859
      %v2867 = vadd.f32 %v2853, %v2859
      %v2868 = vadd.f32 %v2854, %v2859
      %v2869 = vpack.c.bf16 %v2862, %v2861
      %v2870 = vpack.c.bf16 %v2864, %v2863
      %v2871 = vpack.c.bf16 %v2866, %v2865
      %v2872 = vpack.c.bf16 %v2868, %v2867
      %s2873 = scalar_lea.vmem %s4, 64
      %v2874 = vld [vmem:[%s2873] sm:$0xff]
      %v2875 = vld [vmem:[%s2873 + $0x8] sm:$0xff]
      %v2876 = vld [vmem:[%s2873 + $0x10] sm:$0xff]
      %v2877 = vld [vmem:[%s2873 + $0x18] sm:$0xff]
      %v2878 = vld [vmem:[%s2873 + $0x20] sm:$0xff]
      %v2879 = vld [vmem:[%s2873 + $0x28] sm:$0xff]
      %v2880 = vld [vmem:[%s2873 + $0x30] sm:$0xff]
      %v2881 = vld [vmem:[%s2873 + $0x38] sm:$0xff]
      %s2882 = scalar_lea.vmem %s5, 2
      %v2883 = vld [vmem:[%s2882] sm:$0x3]
      %v2885 = vlaneseq
      %v2886 = vshrl.u32 %v2885, 7
      %v2887 = vsub.s32 0, %v2886
      %v2888 = vrot.slane %v2883, %v2887
      %v2889 = vlaneseq
      %v2890 = vshrl.u32 %v2889, 7
      %v2891 = vsub.s32 1, %v2890
      %v2892 = vrot.slane %v2883, %v2891
      %v2903 = vunpack.c.l.b16 %v2874
      %v2904 = vunpack.c.h.b16 %v2874
      %v2905 = vunpack.c.l.b16 %v2875
      %v2906 = vunpack.c.h.b16 %v2875
      %v2907 = vunpack.c.l.b16 %v2876
      %v2908 = vunpack.c.h.b16 %v2876
      %v2909 = vunpack.c.l.b16 %v2877
      %v2910 = vunpack.c.h.b16 %v2877
      %v2911 = vunpack.c.l.b16 %v2878
      %v2912 = vunpack.c.h.b16 %v2878
      %v2913 = vunpack.c.l.b16 %v2879
      %v2914 = vunpack.c.h.b16 %v2879
      %v2915 = vunpack.c.l.b16 %v2880
      %v2916 = vunpack.c.h.b16 %v2880
      %v2917 = vunpack.c.l.b16 %v2881
      %v2918 = vunpack.c.h.b16 %v2881
      %v2919 = vpack.c.b16 %v2905, %v2903
      %v2920 = vpack.c.b16 %v2906, %v2904
      %v2921 = vpack.c.b16 %v2909, %v2907
      %v2922 = vpack.c.b16 %v2910, %v2908
      %v2923 = vpack.c.b16 %v2913, %v2911
      %v2924 = vpack.c.b16 %v2914, %v2912
      %v2925 = vpack.c.b16 %v2917, %v2915
      %v2926 = vpack.c.b16 %v2918, %v2916
      %v2936 = vsel %vm574, %v2869, 0
      %v2939 = vsel %vm574, %v2870, 0
      %v2942 = vsel %vm574, %v2871, 0
      %v2945 = vsel %vm574, %v2872, 0
      %2947 = vmatprep.subr.bf16.mxu0 %v2920
      %2948 = vmatpush1.bf16.msra.mxu0 %v2919
      %2949 = vmatprep.subr.bf16.mxu0 %v2922
      %2950 = vmatpush1.bf16.msra.mxu0 %v2921
      %2951 = vmatprep.subr.bf16.mxu0 %v2924
      %2952 = vmatpush1.bf16.msra.mxu0 %v2923
      %2953 = vmatprep.subr.bf16.mxu0 %v2926
      %2954 = vmatpush1.bf16.msra.mxu0 %v2925
      %2955 = vmatprep.subr.bf16.mxu0 0
      %2956 = vmatpush1.bf16.msra.mxu0 0
      %2957 = vmatprep.subr.bf16.mxu0 0
      %2958 = vmatpush1.bf16.msra.mxu0 0
      %2959 = vmatprep.subr.bf16.mxu0 0
      %2960 = vmatpush1.bf16.msra.mxu0 0
      %2961 = vmatprep.subr.bf16.mxu0 0
      %2962 = vmatpush1.bf16.msra.mxu0 0
      %2963 = vmatprep.subr.bf16.mxu0 0
      %2964 = vmatpush1.bf16.msra.mxu0 0
      %2965 = vmatprep.subr.bf16.mxu0 0
      %2966 = vmatpush1.bf16.msra.mxu0 0
      %2967 = vmatprep.subr.bf16.mxu0 0
      %2968 = vmatpush1.bf16.msra.mxu0 0
      %2969 = vmatprep.subr.bf16.mxu0 0
      %2970 = vmatpush1.bf16.msra.mxu0 0
      %2971 = vmatprep.subr.bf16.mxu0 0
      %2972 = vmatpush1.bf16.msra.mxu0 0
      %2973 = vmatprep.subr.bf16.mxu0 0
      %2974 = vmatpush1.bf16.msra.mxu0 0
      %2975 = vmatprep.subr.bf16.mxu0 0
      %2976 = vmatpush1.bf16.msra.mxu0 0
      %2977 = vmatprep.subr.bf16.mxu0 0
      %2978 = vmatpush1.bf16.msra.mxu0 0
      %2979 = vmatprep.mubr.bf16.mxu0 0
      %2980 = vmatmul.mubr.bf16.gmra.mrb[0].mxu0 %v2936
      %v2981 = vpop.f32.mrb[0].mxu0
      %v2982 = vadd.f32 %v2888, %v2981
      %v2983 = vpop.f32.mrb[0].mxu0
      %v2984 = vadd.f32 %v2892, %v2983
      %v2985 = vpop.f32.mrb[0].mxu0
      %v2986 = vadd.f32 %v2888, %v2985
      %v2987 = vpop.f32.mrb[0].mxu0
      %v2988 = vadd.f32 %v2892, %v2987
      %2989 = vmatprep.mubr.bf16.mxu0 0
      %2990 = vmatmul.mubr.bf16.gmra.mrb[0].mxu0 %v2939
      %v2991 = vpop.f32.mrb[0].mxu0
      %v2992 = vadd.f32 %v2888, %v2991
      %v2993 = vpop.f32.mrb[0].mxu0
      %v2994 = vadd.f32 %v2892, %v2993
      %v2995 = vpop.f32.mrb[0].mxu0
      %v2996 = vadd.f32 %v2888, %v2995
      %v2997 = vpop.f32.mrb[0].mxu0
      %v2998 = vadd.f32 %v2892, %v2997
      %2999 = vmatprep.mubr.bf16.mxu0 0
      %3000 = vmatmul.mubr.bf16.gmra.mrb[0].mxu0 %v2942
      %v3001 = vpop.f32.mrb[0].mxu0
      %v3002 = vadd.f32 %v2888, %v3001
      %v3003 = vpop.f32.mrb[0].mxu0
      %v3004 = vadd.f32 %v2892, %v3003
      %v3005 = vpop.f32.mrb[0].mxu0
      %v3006 = vadd.f32 %v2888, %v3005
      %v3007 = vpop.f32.mrb[0].mxu0
      %v3008 = vadd.f32 %v2892, %v3007
      %3009 = vmatprep.mubr.bf16.mxu0 0
      %3010 = vmatmul.mubr.bf16.gmra.mrb[0].mxu0 %v2945
      %v3011 = vpop.f32.mrb[0].mxu0
      %v3012 = vadd.f32 %v2888, %v3011
      %v3013 = vpop.f32.mrb[0].mxu0
      %v3014 = vadd.f32 %v2892, %v3013
      %v3015 = vpop.f32.mrb[0].mxu0
      %v3016 = vadd.f32 %v2888, %v3015
      %v3017 = vpop.f32.mrb[0].mxu0
      %v3018 = vadd.f32 %v2892, %v3017
      %3019 = vdwg.mxu0
      %s3020 = scalar_lea.vmem %s6, 64
      %v3021 = vld [vmem:[%s3020] sm:$0xff]
      %v3022 = vld [vmem:[%s3020 + $0x8] sm:$0xff]
      %v3023 = vld [vmem:[%s3020 + $0x10] sm:$0xff]
      %v3024 = vld [vmem:[%s3020 + $0x18] sm:$0xff]
      %v3025 = vld [vmem:[%s3020 + $0x20] sm:$0xff]
      %v3026 = vld [vmem:[%s3020 + $0x28] sm:$0xff]
      %v3027 = vld [vmem:[%s3020 + $0x30] sm:$0xff]
      %v3028 = vld [vmem:[%s3020 + $0x38] sm:$0xff]
      %s3029 = scalar_lea.vmem %s7, 2
      %v3030 = vld [vmem:[%s3029] sm:$0x3]
      %v3032 = vlaneseq
      %v3033 = vshrl.u32 %v3032, 7
      %v3034 = vsub.s32 0, %v3033
      %v3035 = vrot.slane %v3030, %v3034
      %v3036 = vlaneseq
      %v3037 = vshrl.u32 %v3036, 7
      %v3038 = vsub.s32 1, %v3037
      %v3039 = vrot.slane %v3030, %v3038
      %v3050 = vunpack.c.l.b16 %v3021
      %v3051 = vunpack.c.h.b16 %v3021
      %v3052 = vunpack.c.l.b16 %v3022
      %v3053 = vunpack.c.h.b16 %v3022
      %v3054 = vunpack.c.l.b16 %v3023
      %v3055 = vunpack.c.h.b16 %v3023
      %v3056 = vunpack.c.l.b16 %v3024
      %v3057 = vunpack.c.h.b16 %v3024
      %v3058 = vunpack.c.l.b16 %v3025
      %v3059 = vunpack.c.h.b16 %v3025
      %v3060 = vunpack.c.l.b16 %v3026
      %v3061 = vunpack.c.h.b16 %v3026
      %v3062 = vunpack.c.l.b16 %v3027
      %v3063 = vunpack.c.h.b16 %v3027
      %v3064 = vunpack.c.l.b16 %v3028
      %v3065 = vunpack.c.h.b16 %v3028
      %v3066 = vpack.c.b16 %v3052, %v3050
      %v3067 = vpack.c.b16 %v3053, %v3051
      %v3068 = vpack.c.b16 %v3056, %v3054
      %v3069 = vpack.c.b16 %v3057, %v3055
      %v3070 = vpack.c.b16 %v3060, %v3058
      %v3071 = vpack.c.b16 %v3061, %v3059
      %v3072 = vpack.c.b16 %v3064, %v3062
      %v3073 = vpack.c.b16 %v3065, %v3063
      %3082 = vmatprep.subr.bf16.mxu0 %v3067
      %3083 = vmatpush1.bf16.msra.mxu0 %v3066
      %3084 = vmatprep.subr.bf16.mxu0 %v3069
      %3085 = vmatpush1.bf16.msra.mxu0 %v3068
      %3086 = vmatprep.subr.bf16.mxu0 %v3071
      %3087 = vmatpush1.bf16.msra.mxu0 %v3070
      %3088 = vmatprep.subr.bf16.mxu0 %v3073
      %3089 = vmatpush1.bf16.msra.mxu0 %v3072
      %3090 = vmatprep.subr.bf16.mxu0 0
      %3091 = vmatpush1.bf16.msra.mxu0 0
      %3092 = vmatprep.subr.bf16.mxu0 0
      %3093 = vmatpush1.bf16.msra.mxu0 0
      %3094 = vmatprep.subr.bf16.mxu0 0
      %3095 = vmatpush1.bf16.msra.mxu0 0
      %3096 = vmatprep.subr.bf16.mxu0 0
      %3097 = vmatpush1.bf16.msra.mxu0 0
      %3098 = vmatprep.subr.bf16.mxu0 0
      %3099 = vmatpush1.bf16.msra.mxu0 0
      %3100 = vmatprep.subr.bf16.mxu0 0
      %3101 = vmatpush1.bf16.msra.mxu0 0
      %3102 = vmatprep.subr.bf16.mxu0 0
      %3103 = vmatpush1.bf16.msra.mxu0 0
      %3104 = vmatprep.subr.bf16.mxu0 0
      %3105 = vmatpush1.bf16.msra.mxu0 0
      %3106 = vmatprep.subr.bf16.mxu0 0
      %3107 = vmatpush1.bf16.msra.mxu0 0
      %3108 = vmatprep.subr.bf16.mxu0 0
      %3109 = vmatpush1.bf16.msra.mxu0 0
      %3110 = vmatprep.subr.bf16.mxu0 0
      %3111 = vmatpush1.bf16.msra.mxu0 0
      %3112 = vmatprep.subr.bf16.mxu0 0
      %3113 = vmatpush1.bf16.msra.mxu0 0
      %3114 = vmatprep.mubr.bf16.mxu0 0
      %3115 = vmatmul.mubr.bf16.gmra.mrb[0].mxu0 %v2936
      %v3116 = vpop.f32.mrb[0].mxu0
      %v3117 = vadd.f32 %v3035, %v3116
      %v3118 = vpop.f32.mrb[0].mxu0
      %v3119 = vadd.f32 %v3039, %v3118
      %v3120 = vpop.f32.mrb[0].mxu0
      %v3121 = vadd.f32 %v3035, %v3120
      %v3122 = vpop.f32.mrb[0].mxu0
      %v3123 = vadd.f32 %v3039, %v3122
      %3124 = vmatprep.mubr.bf16.mxu0 0
      %3125 = vmatmul.mubr.bf16.gmra.mrb[0].mxu0 %v2939
      %v3126 = vpop.f32.mrb[0].mxu0
      %v3127 = vadd.f32 %v3035, %v3126
      %v3128 = vpop.f32.mrb[0].mxu0
      %v3129 = vadd.f32 %v3039, %v3128
      %v3130 = vpop.f32.mrb[0].mxu0
      %v3131 = vadd.f32 %v3035, %v3130
      %v3132 = vpop.f32.mrb[0].mxu0
      %v3133 = vadd.f32 %v3039, %v3132
      %3134 = vmatprep.mubr.bf16.mxu0 0
      %3135 = vmatmul.mubr.bf16.gmra.mrb[0].mxu0 %v2942
      %v3136 = vpop.f32.mrb[0].mxu0
      %v3137 = vadd.f32 %v3035, %v3136
      %v3138 = vpop.f32.mrb[0].mxu0
      %v3139 = vadd.f32 %v3039, %v3138
      %v3140 = vpop.f32.mrb[0].mxu0
      %v3141 = vadd.f32 %v3035, %v3140
      %v3142 = vpop.f32.mrb[0].mxu0
      %v3143 = vadd.f32 %v3039, %v3142
      %3144 = vmatprep.mubr.bf16.mxu0 0
      %3145 = vmatmul.mubr.bf16.gmra.mrb[0].mxu0 %v2945
      %v3146 = vpop.f32.mrb[0].mxu0
      %v3147 = vadd.f32 %v3035, %v3146
      %v3148 = vpop.f32.mrb[0].mxu0
      %v3149 = vadd.f32 %v3039, %v3148
      %v3150 = vpop.f32.mrb[0].mxu0
      %v3151 = vadd.f32 %v3035, %v3150
      %v3152 = vpop.f32.mrb[0].mxu0
      %v3153 = vadd.f32 %v3039, %v3152
      %3154 = vdwg.mxu0
      %v3155 = vpack.c.bf16 %v2986, %v2982
      %v3156 = vpack.c.bf16 %v2988, %v2984
      %v3157 = vpack.c.bf16 %v2996, %v2992
      %v3158 = vpack.c.bf16 %v2998, %v2994
      %v3159 = vpack.c.bf16 %v3006, %v3002
      %v3160 = vpack.c.bf16 %v3008, %v3004
      %v3161 = vpack.c.bf16 %v3016, %v3012
      %v3162 = vpack.c.bf16 %v3018, %v3014
      %v3163 = vpack.c.bf16 %v3121, %v3117
      %v3164 = vpack.c.bf16 %v3123, %v3119
      %v3165 = vpack.c.bf16 %v3131, %v3127
      %v3166 = vpack.c.bf16 %v3133, %v3129
      %v3167 = vpack.c.bf16 %v3141, %v3137
      %v3168 = vpack.c.bf16 %v3143, %v3139
      %v3169 = vpack.c.bf16 %v3151, %v3147
      %v3170 = vpack.c.bf16 %v3153, %v3149
      %v3172 = vsel %vm574, %v3155, 0
      %v3175 = vsel %vm574, %v3157, 0
      %v3178 = vsel %vm574, %v3159, 0
      %v3181 = vsel %vm574, %v3161, 0
      %3183 = vmatprep.subr.bf16.mxu0 0
      %3184 = vmatpush1.bf16.xpose.msra.mxu0 %v2936
      %3185 = vmatprep.subr.bf16.mxu0 0
      %3186 = vmatpush1.bf16.xpose.msra.mxu0 %v2939
      %3187 = vmatprep.subr.bf16.mxu0 0
      %3188 = vmatpush1.bf16.xpose.msra.mxu0 %v2942
      %3189 = vmatprep.subr.bf16.mxu0 0
      %3190 = vmatpush1.bf16.xpose.msra.mxu0 %v2945
      %3191 = vmatprep.subr.bf16.mxu0 0
      %3192 = vmatpush1.bf16.xpose.msra.mxu0 0
      %3193 = vmatprep.subr.bf16.mxu0 0
      %3194 = vmatpush1.bf16.xpose.msra.mxu0 0
      %3195 = vmatprep.subr.bf16.mxu0 0
      %3196 = vmatpush1.bf16.xpose.msra.mxu0 0
      %3197 = vmatprep.subr.bf16.mxu0 0
      %3198 = vmatpush1.bf16.xpose.msra.mxu0 0
      %3199 = vmatprep.subr.bf16.mxu0 0
      %3200 = vmatpush1.bf16.xpose.msra.mxu0 0
      %3201 = vmatprep.subr.bf16.mxu0 0
      %3202 = vmatpush1.bf16.xpose.msra.mxu0 0
      %3203 = vmatprep.subr.bf16.mxu0 0
      %3204 = vmatpush1.bf16.xpose.msra.mxu0 0
      %3205 = vmatprep.subr.bf16.mxu0 0
      %3206 = vmatpush1.bf16.xpose.msra.mxu0 0
      %3207 = vmatprep.subr.bf16.mxu0 0
      %3208 = vmatpush1.bf16.xpose.msra.mxu0 0
      %3209 = vmatprep.subr.bf16.mxu0 0
      %3210 = vmatpush1.bf16.xpose.msra.mxu0 0
      %3211 = vmatprep.subr.bf16.mxu0 0
      %3212 = vmatpush1.bf16.xpose.msra.mxu0 0
      %3213 = vmatprep.subr.bf16.mxu0 0
      %3214 = vmatpush1.bf16.xpose.msra.mxu0 0
      %3215 = vmatprep.mubr.bf16.mxu0 0
      %3216 = vmatmul.mubr.bf16.gmra.mrb[0].mxu0 %v3172
      %v3217 = vpop.f32.mrb[0].mxu0
      %v3218 = vadd.f32 %v1011, %v3217
      %v3219 = vpop.f32.mrb[0].mxu0
      %v3220 = vpop.f32.mrb[0].mxu0
      %v3221 = vadd.f32 %v1011, %v3220
      %v3222 = vpop.f32.mrb[0].mxu0
      %3223 = vmatprep.mubr.bf16.mxu0 0
      %3224 = vmatmul.mubr.bf16.gmra.mrb[0].mxu0 %v3175
      %v3225 = vpop.f32.mrb[0].mxu0
      %v3226 = vadd.f32 %v1011, %v3225
      %v3227 = vpop.f32.mrb[0].mxu0
      %v3228 = vpop.f32.mrb[0].mxu0
      %v3229 = vadd.f32 %v1011, %v3228
      %v3230 = vpop.f32.mrb[0].mxu0
      %3231 = vmatprep.mubr.bf16.mxu0 0
      %3232 = vmatmul.mubr.bf16.gmra.mrb[0].mxu0 %v3178
      %v3233 = vpop.f32.mrb[0].mxu0
      %v3234 = vadd.f32 %v1011, %v3233
      %v3235 = vpop.f32.mrb[0].mxu0
      %v3236 = vpop.f32.mrb[0].mxu0
      %v3237 = vadd.f32 %v1011, %v3236
      %v3238 = vpop.f32.mrb[0].mxu0
      %3239 = vmatprep.mubr.bf16.mxu0 0
      %3240 = vmatmul.mubr.bf16.gmra.mrb[0].mxu0 %v3181
      %v3241 = vpop.f32.mrb[0].mxu0
      %v3242 = vadd.f32 %v1011, %v3241
      %v3243 = vpop.f32.mrb[0].mxu0
      %v3244 = vpop.f32.mrb[0].mxu0
      %v3245 = vadd.f32 %v1011, %v3244
      %v3246 = vpop.f32.mrb[0].mxu0
      %3247 = vdwg.mxu0
      %v3248 = vsel %vm574, %v3218, -inf
      %3249 = vmax.xlane.f32.xlu0 %v3248
      %v3250 = vpop.xlane.xlu0 %3249
      %v3251 = vsel %vm574, %v3221, -inf
      %3252 = vmax.xlane.f32.xlu0 %v3251
      %v3253 = vpop.xlane.xlu0 %3252
      %v3254 = vsel %vm574, %v3226, -inf
      %3255 = vmax.xlane.f32.xlu0 %v3254
      %v3256 = vpop.xlane.xlu0 %3255
      %v3257 = vsel %vm574, %v3229, -inf
      %3258 = vmax.xlane.f32.xlu0 %v3257
      %v3259 = vpop.xlane.xlu0 %3258
      %v3260 = vsel %vm574, %v3234, -inf
      %3261 = vmax.xlane.f32.xlu0 %v3260
      %v3262 = vpop.xlane.xlu0 %3261
      %v3263 = vsel %vm574, %v3237, -inf
      %3264 = vmax.xlane.f32.xlu0 %v3263
      %v3265 = vpop.xlane.xlu0 %3264
      %v3266 = vsel %vm574, %v3242, -inf
      %3267 = vmax.xlane.f32.xlu0 %v3266
      %v3268 = vpop.xlane.xlu0 %3267
      %v3269 = vsel %vm574, %v3245, -inf
      %3270 = vmax.xlane.f32.xlu0 %v3269
      %v3271 = vpop.xlane.xlu0 %3270
      %v3272 = vsub.f32 %v3218, %v3250
      %v3273 = vsub.f32 %v3221, %v3253
      %v3274 = vsub.f32 %v3226, %v3256
      %v3275 = vsub.f32 %v3229, %v3259
      %v3276 = vsub.f32 %v3234, %v3262
      %v3277 = vsub.f32 %v3237, %v3265
      %v3278 = vsub.f32 %v3242, %v3268
      %v3279 = vsub.f32 %v3245, %v3271
      %v3280 = vmul.f32 %v3272, 1.442695
      %v3281 = vpow.pop %v3280
      %v3282 = vmul.f32 %v3273, 1.442695
      %v3283 = vpow.pop %v3282
      %v3284 = vmul.f32 %v3274, 1.442695
      %v3285 = vpow.pop %v3284
      %v3286 = vmul.f32 %v3275, 1.442695
      %v3287 = vpow.pop %v3286
      %v3288 = vmul.f32 %v3276, 1.442695
      %v3289 = vpow.pop %v3288
      %v3290 = vmul.f32 %v3277, 1.442695
      %v3291 = vpow.pop %v3290
      %v3292 = vmul.f32 %v3278, 1.442695
      %v3293 = vpow.pop %v3292
      %v3294 = vmul.f32 %v3279, 1.442695
      %v3295 = vpow.pop %v3294
      %v3296 = vsel %vm574, %v3281, 0.0
      %3297 = vadd.xlane.f32.xlu0 %v3296
      %v3298 = vpop.xlane.xlu0 %3297
      %v3299 = vsel %vm574, %v3283, 0.0
      %3300 = vadd.xlane.f32.xlu0 %v3299
      %v3301 = vpop.xlane.xlu0 %3300
      %v3302 = vsel %vm574, %v3285, 0.0
      %3303 = vadd.xlane.f32.xlu0 %v3302
      %v3304 = vpop.xlane.xlu0 %3303
      %v3305 = vsel %vm574, %v3287, 0.0
      %3306 = vadd.xlane.f32.xlu0 %v3305
      %v3307 = vpop.xlane.xlu0 %3306
      %v3308 = vsel %vm574, %v3289, 0.0
      %3309 = vadd.xlane.f32.xlu0 %v3308
      %v3310 = vpop.xlane.xlu0 %3309
      %v3311 = vsel %vm574, %v3291, 0.0
      %3312 = vadd.xlane.f32.xlu0 %v3311
      %v3313 = vpop.xlane.xlu0 %3312
      %v3314 = vsel %vm574, %v3293, 0.0
      %3315 = vadd.xlane.f32.xlu0 %v3314
      %v3316 = vpop.xlane.xlu0 %3315
      %v3317 = vsel %vm574, %v3295, 0.0
      %3318 = vadd.xlane.f32.xlu0 %v3317
      %v3319 = vpop.xlane.xlu0 %3318
      %v3320 = vrcp.pop %v3298
      %v3321 = vrcp.pop %v3301
      %v3322 = vrcp.pop %v3304
      %v3323 = vrcp.pop %v3307
      %v3324 = vrcp.pop %v3310
      %v3325 = vrcp.pop %v3313
      %v3326 = vrcp.pop %v3316
      %v3327 = vrcp.pop %v3319
      %v3328 = vmul.f32 %v3281, %v3320
      %v3329 = vmul.f32 %v3283, %v3321
      %v3330 = vmul.f32 %v3285, %v3322
      %v3331 = vmul.f32 %v3287, %v3323
      %v3332 = vmul.f32 %v3289, %v3324
      %v3333 = vmul.f32 %v3291, %v3325
      %v3334 = vmul.f32 %v3293, %v3326
      %v3335 = vmul.f32 %v3295, %v3327
      %v3336 = vpack.c.bf16 %v3329, %v3328
      %v3337 = vpack.c.bf16 %v3331, %v3330
      %v3338 = vpack.c.bf16 %v3333, %v3332
      %v3339 = vpack.c.bf16 %v3335, %v3334
      %3344 = vrot.lane.b32.xlu0 %v3155, 64
      %v3345 = vpop.permute.xlu0 %3344
      %3346 = vrot.lane.b32.xlu0 %v3157, 64
      %v3347 = vpop.permute.xlu0 %3346
      %3348 = vrot.lane.b32.xlu0 %v3159, 64
      %v3349 = vpop.permute.xlu0 %3348
      %3350 = vrot.lane.b32.xlu0 %v3161, 64
      %v3351 = vpop.permute.xlu0 %3350
      %v3353 = vsel %vm574, %v3345, 0
      %v3356 = vsel %vm574, %v3347, 0
      %v3359 = vsel %vm574, %v3349, 0
      %v3362 = vsel %vm574, %v3351, 0
      %3364 = vmatprep.subr.bf16.mxu0 0
      %3365 = vmatpush1.bf16.xpose.msra.mxu0 %v2936
      %3366 = vmatprep.subr.bf16.mxu0 0
      %3367 = vmatpush1.bf16.xpose.msra.mxu0 %v2939
      %3368 = vmatprep.subr.bf16.mxu0 0
      %3369 = vmatpush1.bf16.xpose.msra.mxu0 %v2942
      %3370 = vmatprep.subr.bf16.mxu0 0
      %3371 = vmatpush1.bf16.xpose.msra.mxu0 %v2945
      %3372 = vmatprep.subr.bf16.mxu0 0
      %3373 = vmatpush1.bf16.xpose.msra.mxu0 0
      %3374 = vmatprep.subr.bf16.mxu0 0
      %3375 = vmatpush1.bf16.xpose.msra.mxu0 0
      %3376 = vmatprep.subr.bf16.mxu0 0
      %3377 = vmatpush1.bf16.xpose.msra.mxu0 0
      %3378 = vmatprep.subr.bf16.mxu0 0
      %3379 = vmatpush1.bf16.xpose.msra.mxu0 0
      %3380 = vmatprep.subr.bf16.mxu0 0
      %3381 = vmatpush1.bf16.xpose.msra.mxu0 0
      %3382 = vmatprep.subr.bf16.mxu0 0
      %3383 = vmatpush1.bf16.xpose.msra.mxu0 0
      %3384 = vmatprep.subr.bf16.mxu0 0
      %3385 = vmatpush1.bf16.xpose.msra.mxu0 0
      %3386 = vmatprep.subr.bf16.mxu0 0
      %3387 = vmatpush1.bf16.xpose.msra.mxu0 0
      %3388 = vmatprep.subr.bf16.mxu0 0
      %3389 = vmatpush1.bf16.xpose.msra.mxu0 0
      %3390 = vmatprep.subr.bf16.mxu0 0
      %3391 = vmatpush1.bf16.xpose.msra.mxu0 0
      %3392 = vmatprep.subr.bf16.mxu0 0
      %3393 = vmatpush1.bf16.xpose.msra.mxu0 0
      %3394 = vmatprep.subr.bf16.mxu0 0
      %3395 = vmatpush1.bf16.xpose.msra.mxu0 0
      %3396 = vmatprep.mubr.bf16.mxu0 0
      %3397 = vmatmul.mubr.bf16.gmra.mrb[0].mxu0 %v3353
      %v3398 = vpop.f32.mrb[0].mxu0
      %v3399 = vadd.f32 %v1011, %v3398
      %v3400 = vpop.f32.mrb[0].mxu0
      %v3401 = vpop.f32.mrb[0].mxu0
      %v3402 = vadd.f32 %v1011, %v3401
      %v3403 = vpop.f32.mrb[0].mxu0
      %3404 = vmatprep.mubr.bf16.mxu0 0
      %3405 = vmatmul.mubr.bf16.gmra.mrb[0].mxu0 %v3356
      %v3406 = vpop.f32.mrb[0].mxu0
      %v3407 = vadd.f32 %v1011, %v3406
      %v3408 = vpop.f32.mrb[0].mxu0
      %v3409 = vpop.f32.mrb[0].mxu0
      %v3410 = vadd.f32 %v1011, %v3409
      %v3411 = vpop.f32.mrb[0].mxu0
      %3412 = vmatprep.mubr.bf16.mxu0 0
      %3413 = vmatmul.mubr.bf16.gmra.mrb[0].mxu0 %v3359
      %v3414 = vpop.f32.mrb[0].mxu0
      %v3415 = vadd.f32 %v1011, %v3414
      %v3416 = vpop.f32.mrb[0].mxu0
      %v3417 = vpop.f32.mrb[0].mxu0
      %v3418 = vadd.f32 %v1011, %v3417
      %v3419 = vpop.f32.mrb[0].mxu0
      %3420 = vmatprep.mubr.bf16.mxu0 0
      %3421 = vmatmul.mubr.bf16.gmra.mrb[0].mxu0 %v3362
      %v3422 = vpop.f32.mrb[0].mxu0
      %v3423 = vadd.f32 %v1011, %v3422
      %v3424 = vpop.f32.mrb[0].mxu0
      %v3425 = vpop.f32.mrb[0].mxu0
      %v3426 = vadd.f32 %v1011, %v3425
      %v3427 = vpop.f32.mrb[0].mxu0
      %3428 = vdwg.mxu0
      %v3429 = vsel %vm574, %v3399, -inf
      %3430 = vmax.xlane.f32.xlu0 %v3429
      %v3431 = vpop.xlane.xlu0 %3430
      %v3432 = vsel %vm574, %v3402, -inf
      %3433 = vmax.xlane.f32.xlu0 %v3432
      %v3434 = vpop.xlane.xlu0 %3433
      %v3435 = vsel %vm574, %v3407, -inf
      %3436 = vmax.xlane.f32.xlu0 %v3435
      %v3437 = vpop.xlane.xlu0 %3436
      %v3438 = vsel %vm574, %v3410, -inf
      %3439 = vmax.xlane.f32.xlu0 %v3438
      %v3440 = vpop.xlane.xlu0 %3439
      %v3441 = vsel %vm574, %v3415, -inf
      %3442 = vmax.xlane.f32.xlu0 %v3441
      %v3443 = vpop.xlane.xlu0 %3442
      %v3444 = vsel %vm574, %v3418, -inf
      %3445 = vmax.xlane.f32.xlu0 %v3444
      %v3446 = vpop.xlane.xlu0 %3445
      %v3447 = vsel %vm574, %v3423, -inf
      %3448 = vmax.xlane.f32.xlu0 %v3447
      %v3449 = vpop.xlane.xlu0 %3448
      %v3450 = vsel %vm574, %v3426, -inf
      %3451 = vmax.xlane.f32.xlu0 %v3450
      %v3452 = vpop.xlane.xlu0 %3451
      %v3453 = vsub.f32 %v3399, %v3431
      %v3454 = vsub.f32 %v3402, %v3434
      %v3455 = vsub.f32 %v3407, %v3437
      %v3456 = vsub.f32 %v3410, %v3440
      %v3457 = vsub.f32 %v3415, %v3443
      %v3458 = vsub.f32 %v3418, %v3446
      %v3459 = vsub.f32 %v3423, %v3449
      %v3460 = vsub.f32 %v3426, %v3452
      %v3461 = vmul.f32 %v3453, 1.442695
      %v3462 = vpow.pop %v3461
      %v3463 = vmul.f32 %v3454, 1.442695
      %v3464 = vpow.pop %v3463
      %v3465 = vmul.f32 %v3455, 1.442695
      %v3466 = vpow.pop %v3465
      %v3467 = vmul.f32 %v3456, 1.442695
      %v3468 = vpow.pop %v3467
      %v3469 = vmul.f32 %v3457, 1.442695
      %v3470 = vpow.pop %v3469
      %v3471 = vmul.f32 %v3458, 1.442695
      %v3472 = vpow.pop %v3471
      %v3473 = vmul.f32 %v3459, 1.442695
      %v3474 = vpow.pop %v3473
      %v3475 = vmul.f32 %v3460, 1.442695
      %v3476 = vpow.pop %v3475
      %v3477 = vsel %vm574, %v3462, 0.0
      %3478 = vadd.xlane.f32.xlu0 %v3477
      %v3479 = vpop.xlane.xlu0 %3478
      %v3480 = vsel %vm574, %v3464, 0.0
      %3481 = vadd.xlane.f32.xlu0 %v3480
      %v3482 = vpop.xlane.xlu0 %3481
      %v3483 = vsel %vm574, %v3466, 0.0
      %3484 = vadd.xlane.f32.xlu0 %v3483
      %v3485 = vpop.xlane.xlu0 %3484
      %v3486 = vsel %vm574, %v3468, 0.0
      %3487 = vadd.xlane.f32.xlu0 %v3486
      %v3488 = vpop.xlane.xlu0 %3487
      %v3489 = vsel %vm574, %v3470, 0.0
      %3490 = vadd.xlane.f32.xlu0 %v3489
      %v3491 = vpop.xlane.xlu0 %3490
      %v3492 = vsel %vm574, %v3472, 0.0
      %3493 = vadd.xlane.f32.xlu0 %v3492
      %v3494 = vpop.xlane.xlu0 %3493
      %v3495 = vsel %vm574, %v3474, 0.0
      %3496 = vadd.xlane.f32.xlu0 %v3495
      %v3497 = vpop.xlane.xlu0 %3496
      %v3498 = vsel %vm574, %v3476, 0.0
      %3499 = vadd.xlane.f32.xlu0 %v3498
      %v3500 = vpop.xlane.xlu0 %3499
      %v3501 = vrcp.pop %v3479
      %v3502 = vrcp.pop %v3482
      %v3503 = vrcp.pop %v3485
      %v3504 = vrcp.pop %v3488
      %v3505 = vrcp.pop %v3491
      %v3506 = vrcp.pop %v3494
      %v3507 = vrcp.pop %v3497
      %v3508 = vrcp.pop %v3500
      %v3509 = vmul.f32 %v3462, %v3501
      %v3510 = vmul.f32 %v3464, %v3502
      %v3511 = vmul.f32 %v3466, %v3503
      %v3512 = vmul.f32 %v3468, %v3504
      %v3513 = vmul.f32 %v3470, %v3505
      %v3514 = vmul.f32 %v3472, %v3506
      %v3515 = vmul.f32 %v3474, %v3507
      %v3516 = vmul.f32 %v3476, %v3508
      %v3517 = vpack.c.bf16 %v3510, %v3509
      %v3518 = vpack.c.bf16 %v3512, %v3511
      %v3519 = vpack.c.bf16 %v3514, %v3513
      %v3520 = vpack.c.bf16 %v3516, %v3515
      %3525 = vrot.lane.b32.xlu0 %v3163, 64
      %v3526 = vpop.permute.xlu0 %3525
      %3527 = vrot.lane.b32.xlu0 %v3165, 64
      %v3528 = vpop.permute.xlu0 %3527
      %3529 = vrot.lane.b32.xlu0 %v3167, 64
      %v3530 = vpop.permute.xlu0 %3529
      %3531 = vrot.lane.b32.xlu0 %v3169, 64
      %v3532 = vpop.permute.xlu0 %3531
      %v3538 = vsel %vm574, %v3517, 0
      %v3541 = vsel %vm574, %v3518, 0
      %v3544 = vsel %vm574, %v3519, 0
      %v3547 = vsel %vm574, %v3520, 0
      %3549 = vmatprep.subr.bf16.mxu0 0
      %3550 = vmatpush1.bf16.msra.mxu0 %v3526
      %3551 = vmatprep.subr.bf16.mxu0 0
      %3552 = vmatpush1.bf16.msra.mxu0 %v3528
      %3553 = vmatprep.subr.bf16.mxu0 0
      %3554 = vmatpush1.bf16.msra.mxu0 %v3530
      %3555 = vmatprep.subr.bf16.mxu0 0
      %3556 = vmatpush1.bf16.msra.mxu0 %v3532
      %3557 = vmatprep.subr.bf16.mxu0 0
      %3558 = vmatpush1.bf16.msra.mxu0 0
      %3559 = vmatprep.subr.bf16.mxu0 0
      %3560 = vmatpush1.bf16.msra.mxu0 0
      %3561 = vmatprep.subr.bf16.mxu0 0
      %3562 = vmatpush1.bf16.msra.mxu0 0
      %3563 = vmatprep.subr.bf16.mxu0 0
      %3564 = vmatpush1.bf16.msra.mxu0 0
      %3565 = vmatprep.subr.bf16.mxu0 0
      %3566 = vmatpush1.bf16.msra.mxu0 0
      %3567 = vmatprep.subr.bf16.mxu0 0
      %3568 = vmatpush1.bf16.msra.mxu0 0
      %3569 = vmatprep.subr.bf16.mxu0 0
      %3570 = vmatpush1.bf16.msra.mxu0 0
      %3571 = vmatprep.subr.bf16.mxu0 0
      %3572 = vmatpush1.bf16.msra.mxu0 0
      %3573 = vmatprep.subr.bf16.mxu0 0
      %3574 = vmatpush1.bf16.msra.mxu0 0
      %3575 = vmatprep.subr.bf16.mxu0 0
      %3576 = vmatpush1.bf16.msra.mxu0 0
      %3577 = vmatprep.subr.bf16.mxu0 0
      %3578 = vmatpush1.bf16.msra.mxu0 0
      %3579 = vmatprep.subr.bf16.mxu0 0
      %3580 = vmatpush1.bf16.msra.mxu0 0
      %3581 = vmatprep.mubr.bf16.mxu0 0
      %3582 = vmatmul.mubr.bf16.gmra.mrb[0].mxu0 %v3538
      %v3583 = vpop.f32.mrb[0].mxu0
      %v3584 = vadd.f32 0.0, %v3583
      %v3585 = vpop.f32.mrb[0].mxu0
      %v3586 = vpop.f32.mrb[0].mxu0
      %v3587 = vadd.f32 0.0, %v3586
      %v3588 = vpop.f32.mrb[0].mxu0
      %3589 = vmatprep.mubr.bf16.mxu0 0
      %3590 = vmatmul.mubr.bf16.gmra.mrb[0].mxu0 %v3541
      %v3591 = vpop.f32.mrb[0].mxu0
      %v3592 = vadd.f32 0.0, %v3591
      %v3593 = vpop.f32.mrb[0].mxu0
      %v3594 = vpop.f32.mrb[0].mxu0
      %v3595 = vadd.f32 0.0, %v3594
      %v3596 = vpop.f32.mrb[0].mxu0
      %3597 = vmatprep.mubr.bf16.mxu0 0
      %3598 = vmatmul.mubr.bf16.gmra.mrb[0].mxu0 %v3544
      %v3599 = vpop.f32.mrb[0].mxu0
      %v3600 = vadd.f32 0.0, %v3599
      %v3601 = vpop.f32.mrb[0].mxu0
      %v3602 = vpop.f32.mrb[0].mxu0
      %v3603 = vadd.f32 0.0, %v3602
      %v3604 = vpop.f32.mrb[0].mxu0
      %3605 = vmatprep.mubr.bf16.mxu0 0
      %3606 = vmatmul.mubr.bf16.gmra.mrb[0].mxu0 %v3547
      %v3607 = vpop.f32.mrb[0].mxu0
      %v3608 = vadd.f32 0.0, %v3607
      %v3609 = vpop.f32.mrb[0].mxu0
      %v3610 = vpop.f32.mrb[0].mxu0
      %v3611 = vadd.f32 0.0, %v3610
      %v3612 = vpop.f32.mrb[0].mxu0
      %3613 = vdwg.mxu0
      %v3615 = vsel %vm574, %v3336, 0
      %v3618 = vsel %vm574, %v3337, 0
      %v3621 = vsel %vm574, %v3338, 0
      %v3624 = vsel %vm574, %v3339, 0
      %3626 = vmatprep.subr.bf16.mxu0 0
      %3627 = vmatpush1.bf16.msra.mxu0 %v3163
      %3628 = vmatprep.subr.bf16.mxu0 0
      %3629 = vmatpush1.bf16.msra.mxu0 %v3165
      %3630 = vmatprep.subr.bf16.mxu0 0
      %3631 = vmatpush1.bf16.msra.mxu0 %v3167
      %3632 = vmatprep.subr.bf16.mxu0 0
      %3633 = vmatpush1.bf16.msra.mxu0 %v3169
      %3634 = vmatprep.subr.bf16.mxu0 0
      %3635 = vmatpush1.bf16.msra.mxu0 0
      %3636 = vmatprep.subr.bf16.mxu0 0
      %3637 = vmatpush1.bf16.msra.mxu0 0
      %3638 = vmatprep.subr.bf16.mxu0 0
      %3639 = vmatpush1.bf16.msra.mxu0 0
      %3640 = vmatprep.subr.bf16.mxu0 0
      %3641 = vmatpush1.bf16.msra.mxu0 0
      %3642 = vmatprep.subr.bf16.mxu0 0
      %3643 = vmatpush1.bf16.msra.mxu0 0
      %3644 = vmatprep.subr.bf16.mxu0 0
      %3645 = vmatpush1.bf16.msra.mxu0 0
      %3646 = vmatprep.subr.bf16.mxu0 0
      %3647 = vmatpush1.bf16.msra.mxu0 0
      %3648 = vmatprep.subr.bf16.mxu0 0
      %3649 = vmatpush1.bf16.msra.mxu0 0
      %3650 = vmatprep.subr.bf16.mxu0 0
      %3651 = vmatpush1.bf16.msra.mxu0 0
      %3652 = vmatprep.subr.bf16.mxu0 0
      %3653 = vmatpush1.bf16.msra.mxu0 0
      %3654 = vmatprep.subr.bf16.mxu0 0
      %3655 = vmatpush1.bf16.msra.mxu0 0
      %3656 = vmatprep.subr.bf16.mxu0 0
      %3657 = vmatpush1.bf16.msra.mxu0 0
      %3658 = vmatprep.mubr.bf16.mxu0 0
      %3659 = vmatmul.mubr.bf16.gmra.mrb[0].mxu0 %v3615
      %v3660 = vpop.f32.mrb[0].mxu0
      %v3661 = vadd.f32 %v3584, %v3660
      %v3662 = vpop.f32.mrb[0].mxu0
      %v3663 = vpop.f32.mrb[0].mxu0
      %v3664 = vadd.f32 %v3587, %v3663
      %v3665 = vpop.f32.mrb[0].mxu0
      %3666 = vmatprep.mubr.bf16.mxu0 0
      %3667 = vmatmul.mubr.bf16.gmra.mrb[0].mxu0 %v3618
      %v3668 = vpop.f32.mrb[0].mxu0
      %v3669 = vadd.f32 %v3592, %v3668
      %v3670 = vpop.f32.mrb[0].mxu0
      %v3671 = vpop.f32.mrb[0].mxu0
      %v3672 = vadd.f32 %v3595, %v3671
      %v3673 = vpop.f32.mrb[0].mxu0
      %3674 = vmatprep.mubr.bf16.mxu0 0
      %3675 = vmatmul.mubr.bf16.gmra.mrb[0].mxu0 %v3621
      %v3676 = vpop.f32.mrb[0].mxu0
      %v3677 = vadd.f32 %v3600, %v3676
      %v3678 = vpop.f32.mrb[0].mxu0
      %v3679 = vpop.f32.mrb[0].mxu0
      %v3680 = vadd.f32 %v3603, %v3679
      %v3681 = vpop.f32.mrb[0].mxu0
      %3682 = vmatprep.mubr.bf16.mxu0 0
      %3683 = vmatmul.mubr.bf16.gmra.mrb[0].mxu0 %v3624
      %v3684 = vpop.f32.mrb[0].mxu0
      %v3685 = vadd.f32 %v3608, %v3684
      %v3686 = vpop.f32.mrb[0].mxu0
      %v3687 = vpop.f32.mrb[0].mxu0
      %v3688 = vadd.f32 %v3611, %v3687
      %v3689 = vpop.f32.mrb[0].mxu0
      %3690 = vdwg.mxu0
      %v3692 = vsel %vm574, %v3156, 0
      %v3695 = vsel %vm574, %v3158, 0
      %v3698 = vsel %vm574, %v3160, 0
      %v3701 = vsel %vm574, %v3162, 0
      %3703 = vmatprep.subr.bf16.mxu0 0
      %3704 = vmatpush1.bf16.xpose.msra.mxu0 %v2936
      %3705 = vmatprep.subr.bf16.mxu0 0
      %3706 = vmatpush1.bf16.xpose.msra.mxu0 %v2939
      %3707 = vmatprep.subr.bf16.mxu0 0
      %3708 = vmatpush1.bf16.xpose.msra.mxu0 %v2942
      %3709 = vmatprep.subr.bf16.mxu0 0
      %3710 = vmatpush1.bf16.xpose.msra.mxu0 %v2945
      %3711 = vmatprep.subr.bf16.mxu0 0
      %3712 = vmatpush1.bf16.xpose.msra.mxu0 0
      %3713 = vmatprep.subr.bf16.mxu0 0
      %3714 = vmatpush1.bf16.xpose.msra.mxu0 0
      %3715 = vmatprep.subr.bf16.mxu0 0
      %3716 = vmatpush1.bf16.xpose.msra.mxu0 0
      %3717 = vmatprep.subr.bf16.mxu0 0
      %3718 = vmatpush1.bf16.xpose.msra.mxu0 0
      %3719 = vmatprep.subr.bf16.mxu0 0
      %3720 = vmatpush1.bf16.xpose.msra.mxu0 0
      %3721 = vmatprep.subr.bf16.mxu0 0
      %3722 = vmatpush1.bf16.xpose.msra.mxu0 0
      %3723 = vmatprep.subr.bf16.mxu0 0
      %3724 = vmatpush1.bf16.xpose.msra.mxu0 0
      %3725 = vmatprep.subr.bf16.mxu0 0
      %3726 = vmatpush1.bf16.xpose.msra.mxu0 0
      %3727 = vmatprep.subr.bf16.mxu0 0
      %3728 = vmatpush1.bf16.xpose.msra.mxu0 0
      %3729 = vmatprep.subr.bf16.mxu0 0
      %3730 = vmatpush1.bf16.xpose.msra.mxu0 0
      %3731 = vmatprep.subr.bf16.mxu0 0
      %3732 = vmatpush1.bf16.xpose.msra.mxu0 0
      %3733 = vmatprep.subr.bf16.mxu0 0
      %3734 = vmatpush1.bf16.xpose.msra.mxu0 0
      %3735 = vmatprep.mubr.bf16.mxu0 0
      %3736 = vmatmul.mubr.bf16.gmra.mrb[0].mxu0 %v3692
      %v3737 = vpop.f32.mrb[0].mxu0
      %v3738 = vadd.f32 %v1011, %v3737
      %v3739 = vpop.f32.mrb[0].mxu0
      %v3740 = vpop.f32.mrb[0].mxu0
      %v3741 = vadd.f32 %v1011, %v3740
      %v3742 = vpop.f32.mrb[0].mxu0
      %3743 = vmatprep.mubr.bf16.mxu0 0
      %3744 = vmatmul.mubr.bf16.gmra.mrb[0].mxu0 %v3695
      %v3745 = vpop.f32.mrb[0].mxu0
      %v3746 = vadd.f32 %v1011, %v3745
      %v3747 = vpop.f32.mrb[0].mxu0
      %v3748 = vpop.f32.mrb[0].mxu0
      %v3749 = vadd.f32 %v1011, %v3748
      %v3750 = vpop.f32.mrb[0].mxu0
      %3751 = vmatprep.mubr.bf16.mxu0 0
      %3752 = vmatmul.mubr.bf16.gmra.mrb[0].mxu0 %v3698
      %v3753 = vpop.f32.mrb[0].mxu0
      %v3754 = vadd.f32 %v1011, %v3753
      %v3755 = vpop.f32.mrb[0].mxu0
      %v3756 = vpop.f32.mrb[0].mxu0
      %v3757 = vadd.f32 %v1011, %v3756
      %v3758 = vpop.f32.mrb[0].mxu0
      %3759 = vmatprep.mubr.bf16.mxu0 0
      %3760 = vmatmul.mubr.bf16.gmra.mrb[0].mxu0 %v3701
      %v3761 = vpop.f32.mrb[0].mxu0
      %v3762 = vadd.f32 %v1011, %v3761
      %v3763 = vpop.f32.mrb[0].mxu0
      %v3764 = vpop.f32.mrb[0].mxu0
      %v3765 = vadd.f32 %v1011, %v3764
      %v3766 = vpop.f32.mrb[0].mxu0
      %3767 = vdwg.mxu0
      %v3768 = vsel %vm574, %v3738, -inf
      %3769 = vmax.xlane.f32.xlu0 %v3768
      %v3770 = vpop.xlane.xlu0 %3769
      %v3771 = vsel %vm574, %v3741, -inf
      %3772 = vmax.xlane.f32.xlu0 %v3771
      %v3773 = vpop.xlane.xlu0 %3772
      %v3774 = vsel %vm574, %v3746, -inf
      %3775 = vmax.xlane.f32.xlu0 %v3774
      %v3776 = vpop.xlane.xlu0 %3775
      %v3777 = vsel %vm574, %v3749, -inf
      %3778 = vmax.xlane.f32.xlu0 %v3777
      %v3779 = vpop.xlane.xlu0 %3778
      %v3780 = vsel %vm574, %v3754, -inf
      %3781 = vmax.xlane.f32.xlu0 %v3780
      %v3782 = vpop.xlane.xlu0 %3781
      %v3783 = vsel %vm574, %v3757, -inf
      %3784 = vmax.xlane.f32.xlu0 %v3783
      %v3785 = vpop.xlane.xlu0 %3784
      %v3786 = vsel %vm574, %v3762, -inf
      %3787 = vmax.xlane.f32.xlu0 %v3786
      %v3788 = vpop.xlane.xlu0 %3787
      %v3789 = vsel %vm574, %v3765, -inf
      %3790 = vmax.xlane.f32.xlu0 %v3789
      %v3791 = vpop.xlane.xlu0 %3790
      %v3792 = vsub.f32 %v3738, %v3770
      %v3793 = vsub.f32 %v3741, %v3773
      %v3794 = vsub.f32 %v3746, %v3776
      %v3795 = vsub.f32 %v3749, %v3779
      %v3796 = vsub.f32 %v3754, %v3782
      %v3797 = vsub.f32 %v3757, %v3785
      %v3798 = vsub.f32 %v3762, %v3788
      %v3799 = vsub.f32 %v3765, %v3791
      %v3800 = vmul.f32 %v3792, 1.442695
      %v3801 = vpow.pop %v3800
      %v3802 = vmul.f32 %v3793, 1.442695
      %v3803 = vpow.pop %v3802
      %v3804 = vmul.f32 %v3794, 1.442695
      %v3805 = vpow.pop %v3804
      %v3806 = vmul.f32 %v3795, 1.442695
      %v3807 = vpow.pop %v3806
      %v3808 = vmul.f32 %v3796, 1.442695
      %v3809 = vpow.pop %v3808
      %v3810 = vmul.f32 %v3797, 1.442695
      %v3811 = vpow.pop %v3810
      %v3812 = vmul.f32 %v3798, 1.442695
      %v3813 = vpow.pop %v3812
      %v3814 = vmul.f32 %v3799, 1.442695
      %v3815 = vpow.pop %v3814
      %v3816 = vsel %vm574, %v3801, 0.0
      %3817 = vadd.xlane.f32.xlu0 %v3816
      %v3818 = vpop.xlane.xlu0 %3817
      %v3819 = vsel %vm574, %v3803, 0.0
      %3820 = vadd.xlane.f32.xlu0 %v3819
      %v3821 = vpop.xlane.xlu0 %3820
      %v3822 = vsel %vm574, %v3805, 0.0
      %3823 = vadd.xlane.f32.xlu0 %v3822
      %v3824 = vpop.xlane.xlu0 %3823
      %v3825 = vsel %vm574, %v3807, 0.0
      %3826 = vadd.xlane.f32.xlu0 %v3825
      %v3827 = vpop.xlane.xlu0 %3826
      %v3828 = vsel %vm574, %v3809, 0.0
      %3829 = vadd.xlane.f32.xlu0 %v3828
      %v3830 = vpop.xlane.xlu0 %3829
      %v3831 = vsel %vm574, %v3811, 0.0
      %3832 = vadd.xlane.f32.xlu0 %v3831
      %v3833 = vpop.xlane.xlu0 %3832
      %v3834 = vsel %vm574, %v3813, 0.0
      %3835 = vadd.xlane.f32.xlu0 %v3834
      %v3836 = vpop.xlane.xlu0 %3835
      %v3837 = vsel %vm574, %v3815, 0.0
      %3838 = vadd.xlane.f32.xlu0 %v3837
      %v3839 = vpop.xlane.xlu0 %3838
      %v3840 = vrcp.pop %v3818
      %v3841 = vrcp.pop %v3821
      %v3842 = vrcp.pop %v3824
      %v3843 = vrcp.pop %v3827
      %v3844 = vrcp.pop %v3830
      %v3845 = vrcp.pop %v3833
      %v3846 = vrcp.pop %v3836
      %v3847 = vrcp.pop %v3839
      %v3848 = vmul.f32 %v3801, %v3840
      %v3849 = vmul.f32 %v3803, %v3841
      %v3850 = vmul.f32 %v3805, %v3842
      %v3851 = vmul.f32 %v3807, %v3843
      %v3852 = vmul.f32 %v3809, %v3844
      %v3853 = vmul.f32 %v3811, %v3845
      %v3854 = vmul.f32 %v3813, %v3846
      %v3855 = vmul.f32 %v3815, %v3847
      %v3856 = vpack.c.bf16 %v3849, %v3848
      %v3857 = vpack.c.bf16 %v3851, %v3850
      %v3858 = vpack.c.bf16 %v3853, %v3852
      %v3859 = vpack.c.bf16 %v3855, %v3854
      %v3861 = vsel %vm574, %v3856, 0
      %v3864 = vsel %vm574, %v3857, 0
      %v3867 = vsel %vm574, %v3858, 0
      %v3870 = vsel %vm574, %v3859, 0
      %3872 = vmatprep.subr.bf16.mxu0 0
      %3873 = vmatpush1.bf16.msra.mxu0 %v3164
      %3874 = vmatprep.subr.bf16.mxu0 0
      %3875 = vmatpush1.bf16.msra.mxu0 %v3166
      %3876 = vmatprep.subr.bf16.mxu0 0
      %3877 = vmatpush1.bf16.msra.mxu0 %v3168
      %3878 = vmatprep.subr.bf16.mxu0 0
      %3879 = vmatpush1.bf16.msra.mxu0 %v3170
      %3880 = vmatprep.subr.bf16.mxu0 0
      %3881 = vmatpush1.bf16.msra.mxu0 0
      %3882 = vmatprep.subr.bf16.mxu0 0
      %3883 = vmatpush1.bf16.msra.mxu0 0
      %3884 = vmatprep.subr.bf16.mxu0 0
      %3885 = vmatpush1.bf16.msra.mxu0 0
      %3886 = vmatprep.subr.bf16.mxu0 0
      %3887 = vmatpush1.bf16.msra.mxu0 0
      %3888 = vmatprep.subr.bf16.mxu0 0
      %3889 = vmatpush1.bf16.msra.mxu0 0
      %3890 = vmatprep.subr.bf16.mxu0 0
      %3891 = vmatpush1.bf16.msra.mxu0 0
      %3892 = vmatprep.subr.bf16.mxu0 0
      %3893 = vmatpush1.bf16.msra.mxu0 0
      %3894 = vmatprep.subr.bf16.mxu0 0
      %3895 = vmatpush1.bf16.msra.mxu0 0
      %3896 = vmatprep.subr.bf16.mxu0 0
      %3897 = vmatpush1.bf16.msra.mxu0 0
      %3898 = vmatprep.subr.bf16.mxu0 0
      %3899 = vmatpush1.bf16.msra.mxu0 0
      %3900 = vmatprep.subr.bf16.mxu0 0
      %3901 = vmatpush1.bf16.msra.mxu0 0
      %3902 = vmatprep.subr.bf16.mxu0 0
      %3903 = vmatpush1.bf16.msra.mxu0 0
      %3904 = vmatprep.mubr.bf16.mxu0 0
      %3905 = vmatmul.mubr.bf16.gmra.mrb[0].mxu0 %v3861
      %v3906 = vpop.f32.mrb[0].mxu0
      %v3907 = vadd.f32 0.0, %v3906
      %v3908 = vpop.f32.mrb[0].mxu0
      %v3909 = vpop.f32.mrb[0].mxu0
      %v3910 = vadd.f32 0.0, %v3909
      %v3911 = vpop.f32.mrb[0].mxu0
      %3912 = vmatprep.mubr.bf16.mxu0 0
      %3913 = vmatmul.mubr.bf16.gmra.mrb[0].mxu0 %v3864
      %v3914 = vpop.f32.mrb[0].mxu0
      %v3915 = vadd.f32 0.0, %v3914
      %v3916 = vpop.f32.mrb[0].mxu0
      %v3917 = vpop.f32.mrb[0].mxu0
      %v3918 = vadd.f32 0.0, %v3917
      %v3919 = vpop.f32.mrb[0].mxu0
      %3920 = vmatprep.mubr.bf16.mxu0 0
      %3921 = vmatmul.mubr.bf16.gmra.mrb[0].mxu0 %v3867
      %v3922 = vpop.f32.mrb[0].mxu0
      %v3923 = vadd.f32 0.0, %v3922
      %v3924 = vpop.f32.mrb[0].mxu0
      %v3925 = vpop.f32.mrb[0].mxu0
      %v3926 = vadd.f32 0.0, %v3925
      %v3927 = vpop.f32.mrb[0].mxu0
      %3928 = vmatprep.mubr.bf16.mxu0 0
      %3929 = vmatmul.mubr.bf16.gmra.mrb[0].mxu0 %v3870
      %v3930 = vpop.f32.mrb[0].mxu0
      %v3931 = vadd.f32 0.0, %v3930
      %v3932 = vpop.f32.mrb[0].mxu0
      %v3933 = vpop.f32.mrb[0].mxu0
      %v3934 = vadd.f32 0.0, %v3933
      %v3935 = vpop.f32.mrb[0].mxu0
      %3936 = vdwg.mxu0
      %v3937 = vadd.f32 %v3661, %v3907
      %v3938 = vadd.f32 %v3664, %v3910
      %v3939 = vadd.f32 %v3669, %v3915
      %v3940 = vadd.f32 %v3672, %v3918
      %v3941 = vadd.f32 %v3677, %v3923
      %v3942 = vadd.f32 %v3680, %v3926
      %v3943 = vadd.f32 %v3685, %v3931
      %v3944 = vadd.f32 %v3688, %v3934
      %3949 = vrot.lane.b32.xlu0 %v3156, 64
      %v3950 = vpop.permute.xlu0 %3949
      %3951 = vrot.lane.b32.xlu0 %v3158, 64
      %v3952 = vpop.permute.xlu0 %3951
      %3953 = vrot.lane.b32.xlu0 %v3160, 64
      %v3954 = vpop.permute.xlu0 %3953
      %3955 = vrot.lane.b32.xlu0 %v3162, 64
      %v3956 = vpop.permute.xlu0 %3955
      %v3958 = vsel %vm574, %v3950, 0
      %v3961 = vsel %vm574, %v3952, 0
      %v3964 = vsel %vm574, %v3954, 0
      %v3967 = vsel %vm574, %v3956, 0
      %3969 = vmatprep.subr.bf16.mxu0 0
      %3970 = vmatpush1.bf16.xpose.msra.mxu0 %v2936
      %3971 = vmatprep.subr.bf16.mxu0 0
      %3972 = vmatpush1.bf16.xpose.msra.mxu0 %v2939
      %3973 = vmatprep.subr.bf16.mxu0 0
      %3974 = vmatpush1.bf16.xpose.msra.mxu0 %v2942
      %3975 = vmatprep.subr.bf16.mxu0 0
      %3976 = vmatpush1.bf16.xpose.msra.mxu0 %v2945
      %3977 = vmatprep.subr.bf16.mxu0 0
      %3978 = vmatpush1.bf16.xpose.msra.mxu0 0
      %3979 = vmatprep.subr.bf16.mxu0 0
      %3980 = vmatpush1.bf16.xpose.msra.mxu0 0
      %3981 = vmatprep.subr.bf16.mxu0 0
      %3982 = vmatpush1.bf16.xpose.msra.mxu0 0
      %3983 = vmatprep.subr.bf16.mxu0 0
      %3984 = vmatpush1.bf16.xpose.msra.mxu0 0
      %3985 = vmatprep.subr.bf16.mxu0 0
      %3986 = vmatpush1.bf16.xpose.msra.mxu0 0
      %3987 = vmatprep.subr.bf16.mxu0 0
      %3988 = vmatpush1.bf16.xpose.msra.mxu0 0
      %3989 = vmatprep.subr.bf16.mxu0 0
      %3990 = vmatpush1.bf16.xpose.msra.mxu0 0
      %3991 = vmatprep.subr.bf16.mxu0 0
      %3992 = vmatpush1.bf16.xpose.msra.mxu0 0
      %3993 = vmatprep.subr.bf16.mxu0 0
      %3994 = vmatpush1.bf16.xpose.msra.mxu0 0
      %3995 = vmatprep.subr.bf16.mxu0 0
      %3996 = vmatpush1.bf16.xpose.msra.mxu0 0
      %3997 = vmatprep.subr.bf16.mxu0 0
      %3998 = vmatpush1.bf16.xpose.msra.mxu0 0
      %3999 = vmatprep.subr.bf16.mxu0 0
      %4000 = vmatpush1.bf16.xpose.msra.mxu0 0
      %4001 = vmatprep.mubr.bf16.mxu0 0
      %4002 = vmatmul.mubr.bf16.gmra.mrb[0].mxu0 %v3958
      %v4003 = vpop.f32.mrb[0].mxu0
      %v4004 = vadd.f32 %v1011, %v4003
      %v4005 = vpop.f32.mrb[0].mxu0
      %v4006 = vpop.f32.mrb[0].mxu0
      %v4007 = vadd.f32 %v1011, %v4006
      %v4008 = vpop.f32.mrb[0].mxu0
      %4009 = vmatprep.mubr.bf16.mxu0 0
      %4010 = vmatmul.mubr.bf16.gmra.mrb[0].mxu0 %v3961
      %v4011 = vpop.f32.mrb[0].mxu0
      %v4012 = vadd.f32 %v1011, %v4011
      %v4013 = vpop.f32.mrb[0].mxu0
      %v4014 = vpop.f32.mrb[0].mxu0
      %v4015 = vadd.f32 %v1011, %v4014
      %v4016 = vpop.f32.mrb[0].mxu0
      %4017 = vmatprep.mubr.bf16.mxu0 0
      %4018 = vmatmul.mubr.bf16.gmra.mrb[0].mxu0 %v3964
      %v4019 = vpop.f32.mrb[0].mxu0
      %v4020 = vadd.f32 %v1011, %v4019
      %v4021 = vpop.f32.mrb[0].mxu0
      %v4022 = vpop.f32.mrb[0].mxu0
      %v4023 = vadd.f32 %v1011, %v4022
      %v4024 = vpop.f32.mrb[0].mxu0
      %4025 = vmatprep.mubr.bf16.mxu0 0
      %4026 = vmatmul.mubr.bf16.gmra.mrb[0].mxu0 %v3967
      %v4027 = vpop.f32.mrb[0].mxu0
      %v4028 = vadd.f32 %v1011, %v4027
      %v4029 = vpop.f32.mrb[0].mxu0
      %v4030 = vpop.f32.mrb[0].mxu0
      %v4031 = vadd.f32 %v1011, %v4030
      %v4032 = vpop.f32.mrb[0].mxu0
      %4033 = vdwg.mxu0
      %v4034 = vsel %vm574, %v4004, -inf
      %4035 = vmax.xlane.f32.xlu0 %v4034
      %v4036 = vpop.xlane.xlu0 %4035
      %v4037 = vsel %vm574, %v4007, -inf
      %4038 = vmax.xlane.f32.xlu0 %v4037
      %v4039 = vpop.xlane.xlu0 %4038
      %v4040 = vsel %vm574, %v4012, -inf
      %4041 = vmax.xlane.f32.xlu0 %v4040
      %v4042 = vpop.xlane.xlu0 %4041
      %v4043 = vsel %vm574, %v4015, -inf
      %4044 = vmax.xlane.f32.xlu0 %v4043
      %v4045 = vpop.xlane.xlu0 %4044
      %v4046 = vsel %vm574, %v4020, -inf
      %4047 = vmax.xlane.f32.xlu0 %v4046
      %v4048 = vpop.xlane.xlu0 %4047
      %v4049 = vsel %vm574, %v4023, -inf
      %4050 = vmax.xlane.f32.xlu0 %v4049
      %v4051 = vpop.xlane.xlu0 %4050
      %v4052 = vsel %vm574, %v4028, -inf
      %4053 = vmax.xlane.f32.xlu0 %v4052
      %v4054 = vpop.xlane.xlu0 %4053
      %v4055 = vsel %vm574, %v4031, -inf
      %4056 = vmax.xlane.f32.xlu0 %v4055
      %v4057 = vpop.xlane.xlu0 %4056
      %v4058 = vsub.f32 %v4004, %v4036
      %v4059 = vsub.f32 %v4007, %v4039
      %v4060 = vsub.f32 %v4012, %v4042
      %v4061 = vsub.f32 %v4015, %v4045
      %v4062 = vsub.f32 %v4020, %v4048
      %v4063 = vsub.f32 %v4023, %v4051
      %v4064 = vsub.f32 %v4028, %v4054
      %v4065 = vsub.f32 %v4031, %v4057
      %v4066 = vmul.f32 %v4058, 1.442695
      %v4067 = vpow.pop %v4066
      %v4068 = vmul.f32 %v4059, 1.442695
      %v4069 = vpow.pop %v4068
      %v4070 = vmul.f32 %v4060, 1.442695
      %v4071 = vpow.pop %v4070
      %v4072 = vmul.f32 %v4061, 1.442695
      %v4073 = vpow.pop %v4072
      %v4074 = vmul.f32 %v4062, 1.442695
      %v4075 = vpow.pop %v4074
      %v4076 = vmul.f32 %v4063, 1.442695
      %v4077 = vpow.pop %v4076
      %v4078 = vmul.f32 %v4064, 1.442695
      %v4079 = vpow.pop %v4078
      %v4080 = vmul.f32 %v4065, 1.442695
      %v4081 = vpow.pop %v4080
      %v4082 = vsel %vm574, %v4067, 0.0
      %4083 = vadd.xlane.f32.xlu0 %v4082
      %v4084 = vpop.xlane.xlu0 %4083
      %v4085 = vsel %vm574, %v4069, 0.0
      %4086 = vadd.xlane.f32.xlu0 %v4085
      %v4087 = vpop.xlane.xlu0 %4086
      %v4088 = vsel %vm574, %v4071, 0.0
      %4089 = vadd.xlane.f32.xlu0 %v4088
      %v4090 = vpop.xlane.xlu0 %4089
      %v4091 = vsel %vm574, %v4073, 0.0
      %4092 = vadd.xlane.f32.xlu0 %v4091
      %v4093 = vpop.xlane.xlu0 %4092
      %v4094 = vsel %vm574, %v4075, 0.0
      %4095 = vadd.xlane.f32.xlu0 %v4094
      %v4096 = vpop.xlane.xlu0 %4095
      %v4097 = vsel %vm574, %v4077, 0.0
      %4098 = vadd.xlane.f32.xlu0 %v4097
      %v4099 = vpop.xlane.xlu0 %4098
      %v4100 = vsel %vm574, %v4079, 0.0
      %4101 = vadd.xlane.f32.xlu0 %v4100
      %v4102 = vpop.xlane.xlu0 %4101
      %v4103 = vsel %vm574, %v4081, 0.0
      %4104 = vadd.xlane.f32.xlu0 %v4103
      %v4105 = vpop.xlane.xlu0 %4104
      %v4106 = vrcp.pop %v4084
      %v4107 = vrcp.pop %v4087
      %v4108 = vrcp.pop %v4090
      %v4109 = vrcp.pop %v4093
      %v4110 = vrcp.pop %v4096
      %v4111 = vrcp.pop %v4099
      %v4112 = vrcp.pop %v4102
      %v4113 = vrcp.pop %v4105
      %v4114 = vmul.f32 %v4067, %v4106
      %v4115 = vmul.f32 %v4069, %v4107
      %v4116 = vmul.f32 %v4071, %v4108
      %v4117 = vmul.f32 %v4073, %v4109
      %v4118 = vmul.f32 %v4075, %v4110
      %v4119 = vmul.f32 %v4077, %v4111
      %v4120 = vmul.f32 %v4079, %v4112
      %v4121 = vmul.f32 %v4081, %v4113
      %v4122 = vpack.c.bf16 %v4115, %v4114
      %v4123 = vpack.c.bf16 %v4117, %v4116
      %v4124 = vpack.c.bf16 %v4119, %v4118
      %v4125 = vpack.c.bf16 %v4121, %v4120
      %4130 = vrot.lane.b32.xlu0 %v3164, 64
      %v4131 = vpop.permute.xlu0 %4130
      %4132 = vrot.lane.b32.xlu0 %v3166, 64
      %v4133 = vpop.permute.xlu0 %4132
      %4134 = vrot.lane.b32.xlu0 %v3168, 64
      %v4135 = vpop.permute.xlu0 %4134
      %4136 = vrot.lane.b32.xlu0 %v3170, 64
      %v4137 = vpop.permute.xlu0 %4136
      %v4143 = vsel %vm574, %v4122, 0
      %v4146 = vsel %vm574, %v4123, 0
      %v4149 = vsel %vm574, %v4124, 0
      %v4152 = vsel %vm574, %v4125, 0
      %4154 = vmatprep.subr.bf16.mxu0 0
      %4155 = vmatpush1.bf16.msra.mxu0 %v4131
      %4156 = vmatprep.subr.bf16.mxu0 0
      %4157 = vmatpush1.bf16.msra.mxu0 %v4133
      %4158 = vmatprep.subr.bf16.mxu0 0
      %4159 = vmatpush1.bf16.msra.mxu0 %v4135
      %4160 = vmatprep.subr.bf16.mxu0 0
      %4161 = vmatpush1.bf16.msra.mxu0 %v4137
      %4162 = vmatprep.subr.bf16.mxu0 0
      %4163 = vmatpush1.bf16.msra.mxu0 0
      %4164 = vmatprep.subr.bf16.mxu0 0
      %4165 = vmatpush1.bf16.msra.mxu0 0
      %4166 = vmatprep.subr.bf16.mxu0 0
      %4167 = vmatpush1.bf16.msra.mxu0 0
      %4168 = vmatprep.subr.bf16.mxu0 0
      %4169 = vmatpush1.bf16.msra.mxu0 0
      %4170 = vmatprep.subr.bf16.mxu0 0
      %4171 = vmatpush1.bf16.msra.mxu0 0
      %4172 = vmatprep.subr.bf16.mxu0 0
      %4173 = vmatpush1.bf16.msra.mxu0 0
      %4174 = vmatprep.subr.bf16.mxu0 0
      %4175 = vmatpush1.bf16.msra.mxu0 0
      %4176 = vmatprep.subr.bf16.mxu0 0
      %4177 = vmatpush1.bf16.msra.mxu0 0
      %4178 = vmatprep.subr.bf16.mxu0 0
      %4179 = vmatpush1.bf16.msra.mxu0 0
      %4180 = vmatprep.subr.bf16.mxu0 0
      %4181 = vmatpush1.bf16.msra.mxu0 0
      %4182 = vmatprep.subr.bf16.mxu0 0
      %4183 = vmatpush1.bf16.msra.mxu0 0
      %4184 = vmatprep.subr.bf16.mxu0 0
      %4185 = vmatpush1.bf16.msra.mxu0 0
      %4186 = vmatprep.mubr.bf16.mxu0 0
      %4187 = vmatmul.mubr.bf16.gmra.mrb[0].mxu0 %v4143
      %v4188 = vpop.f32.mrb[0].mxu0
      %v4189 = vadd.f32 0.0, %v4188
      %v4190 = vpop.f32.mrb[0].mxu0
      %v4191 = vpop.f32.mrb[0].mxu0
      %v4192 = vadd.f32 0.0, %v4191
      %v4193 = vpop.f32.mrb[0].mxu0
      %4194 = vmatprep.mubr.bf16.mxu0 0
      %4195 = vmatmul.mubr.bf16.gmra.mrb[0].mxu0 %v4146
      %v4196 = vpop.f32.mrb[0].mxu0
      %v4197 = vadd.f32 0.0, %v4196
      %v4198 = vpop.f32.mrb[0].mxu0
      %v4199 = vpop.f32.mrb[0].mxu0
      %v4200 = vadd.f32 0.0, %v4199
      %v4201 = vpop.f32.mrb[0].mxu0
      %4202 = vmatprep.mubr.bf16.mxu0 0
      %4203 = vmatmul.mubr.bf16.gmra.mrb[0].mxu0 %v4149
      %v4204 = vpop.f32.mrb[0].mxu0
      %v4205 = vadd.f32 0.0, %v4204
      %v4206 = vpop.f32.mrb[0].mxu0
      %v4207 = vpop.f32.mrb[0].mxu0
      %v4208 = vadd.f32 0.0, %v4207
      %v4209 = vpop.f32.mrb[0].mxu0
      %4210 = vmatprep.mubr.bf16.mxu0 0
      %4211 = vmatmul.mubr.bf16.gmra.mrb[0].mxu0 %v4152
      %v4212 = vpop.f32.mrb[0].mxu0
      %v4213 = vadd.f32 0.0, %v4212
      %v4214 = vpop.f32.mrb[0].mxu0
      %v4215 = vpop.f32.mrb[0].mxu0
      %v4216 = vadd.f32 0.0, %v4215
      %v4217 = vpop.f32.mrb[0].mxu0
      %4218 = vdwg.mxu0
      %v4219 = vadd.f32 %v3937, %v4189
      %v4220 = vadd.f32 %v3938, %v4192
      %v4221 = vadd.f32 %v3939, %v4197
      %v4222 = vadd.f32 %v3940, %v4200
      %v4223 = vadd.f32 %v3941, %v4205
      %v4224 = vadd.f32 %v3942, %v4208
      %v4225 = vadd.f32 %v3943, %v4213
      %v4226 = vadd.f32 %v3944, %v4216
      %v4227 = vadd.f32 %v2861, %v4219
      %v4228 = vadd.f32 %v2862, %v4220
      %v4229 = vadd.f32 %v2863, %v4221
      %v4230 = vadd.f32 %v2864, %v4222
      %v4231 = vadd.f32 %v2865, %v4223
      %v4232 = vadd.f32 %v2866, %v4224
      %v4233 = vadd.f32 %v2867, %v4225
      %v4234 = vadd.f32 %v2868, %v4226
      %s4235 = scalar_lea.vmem %s8, 1
      %v4236 = vld [vmem:[%s4235] sm:$0x1]
      %v4238 = vlaneseq
      %v4239 = vshrl.u32 %v4238, 7
      %v4240 = vsub.s32 0, %v4239
      %v4241 = vrot.slane %v4236, %v4240
      %v4243 = vadd.f32 %v4227, %v4241
      %v4244 = vadd.f32 %v4228, %v4241
      %v4245 = vadd.f32 %v4229, %v4241
      %v4246 = vadd.f32 %v4230, %v4241
      %v4247 = vadd.f32 %v4231, %v4241
      %v4248 = vadd.f32 %v4232, %v4241
      %v4249 = vadd.f32 %v4233, %v4241
      %v4250 = vadd.f32 %v4234, %v4241
      %s4251 = scalar_lea.vmem %s9, 1
      %v4252 = vld [vmem:[%s4251] sm:$0x1]
      %s4253 = scalar_lea.vmem %s10, 1
      %v4254 = vld [vmem:[%s4253] sm:$0x1]
      %v4255 = vsel %vm574, %v4243, 0.0
      %4256 = vadd.xlane.f32.xlu0 %v4255
      %v4257 = vpop.xlane.xlu0 %4256
      %v4258 = vsel %vm574, %v4244, 0.0
      %4259 = vadd.xlane.f32.xlu0 %v4258
      %v4260 = vpop.xlane.xlu0 %4259
      %v4261 = vsel %vm574, %v4245, 0.0
      %4262 = vadd.xlane.f32.xlu0 %v4261
      %v4263 = vpop.xlane.xlu0 %4262
      %v4264 = vsel %vm574, %v4246, 0.0
      %4265 = vadd.xlane.f32.xlu0 %v4264
      %v4266 = vpop.xlane.xlu0 %4265
      %v4267 = vsel %vm574, %v4247, 0.0
      %4268 = vadd.xlane.f32.xlu0 %v4267
      %v4269 = vpop.xlane.xlu0 %4268
      %v4270 = vsel %vm574, %v4248, 0.0
      %4271 = vadd.xlane.f32.xlu0 %v4270
      %v4272 = vpop.xlane.xlu0 %4271
      %v4273 = vsel %vm574, %v4249, 0.0
      %4274 = vadd.xlane.f32.xlu0 %v4273
      %v4275 = vpop.xlane.xlu0 %4274
      %v4276 = vsel %vm574, %v4250, 0.0
      %4277 = vadd.xlane.f32.xlu0 %v4276
      %v4278 = vpop.xlane.xlu0 %4277
      %v4279 = vmul.f32 %v4257, %v599
      %v4280 = vmul.f32 %v4260, %v599
      %v4281 = vmul.f32 %v4263, %v599
      %v4282 = vmul.f32 %v4266, %v599
      %v4283 = vmul.f32 %v4269, %v599
      %v4284 = vmul.f32 %v4272, %v599
      %v4285 = vmul.f32 %v4275, %v599
      %v4286 = vmul.f32 %v4278, %v599
      %v4287 = vsub.f32 %v4243, %v4279
      %v4288 = vsub.f32 %v4244, %v4280
      %v4289 = vsub.f32 %v4245, %v4281
      %v4290 = vsub.f32 %v4246, %v4282
      %v4291 = vsub.f32 %v4247, %v4283
      %v4292 = vsub.f32 %v4248, %v4284
      %v4293 = vsub.f32 %v4249, %v4285
      %v4294 = vsub.f32 %v4250, %v4286
      %v4295 = vmul.f32 %v4287, %v4287
      %v4296 = vmul.f32 %v4288, %v4288
      %v4297 = vmul.f32 %v4289, %v4289
      %v4298 = vmul.f32 %v4290, %v4290
      %v4299 = vmul.f32 %v4291, %v4291
      %v4300 = vmul.f32 %v4292, %v4292
      %v4301 = vmul.f32 %v4293, %v4293
      %v4302 = vmul.f32 %v4294, %v4294
      %v4303 = vsel %vm574, %v4295, 0.0
      %4304 = vadd.xlane.f32.xlu0 %v4303
      %v4305 = vpop.xlane.xlu0 %4304
      %v4306 = vsel %vm574, %v4296, 0.0
      %4307 = vadd.xlane.f32.xlu0 %v4306
      %v4308 = vpop.xlane.xlu0 %4307
      %v4309 = vsel %vm574, %v4297, 0.0
      %4310 = vadd.xlane.f32.xlu0 %v4309
      %v4311 = vpop.xlane.xlu0 %4310
      %v4312 = vsel %vm574, %v4298, 0.0
      %4313 = vadd.xlane.f32.xlu0 %v4312
      %v4314 = vpop.xlane.xlu0 %4313
      %v4315 = vsel %vm574, %v4299, 0.0
      %4316 = vadd.xlane.f32.xlu0 %v4315
      %v4317 = vpop.xlane.xlu0 %4316
      %v4318 = vsel %vm574, %v4300, 0.0
      %4319 = vadd.xlane.f32.xlu0 %v4318
      %v4320 = vpop.xlane.xlu0 %4319
      %v4321 = vsel %vm574, %v4301, 0.0
      %4322 = vadd.xlane.f32.xlu0 %v4321
      %v4323 = vpop.xlane.xlu0 %4322
      %v4324 = vsel %vm574, %v4302, 0.0
      %4325 = vadd.xlane.f32.xlu0 %v4324
      %v4326 = vpop.xlane.xlu0 %4325
      %v4327 = vmul.f32 %v4305, %v599
      %v4328 = vmul.f32 %v4308, %v599
      %v4329 = vmul.f32 %v4311, %v599
      %v4330 = vmul.f32 %v4314, %v599
      %v4331 = vmul.f32 %v4317, %v599
      %v4332 = vmul.f32 %v4320, %v599
      %v4333 = vmul.f32 %v4323, %v599
      %v4334 = vmul.f32 %v4326, %v599
      %v4335 = vadd.f32 %v4327, 1e-12
      %v4336 = vadd.f32 %v4328, 1e-12
      %v4337 = vadd.f32 %v4329, 1e-12
      %v4338 = vadd.f32 %v4330, 1e-12
      %v4339 = vadd.f32 %v4331, 1e-12
      %v4340 = vadd.f32 %v4332, 1e-12
      %v4341 = vadd.f32 %v4333, 1e-12
      %v4342 = vadd.f32 %v4334, 1e-12
      %v4343 = vrsqrt.pop %v4335
      %v4344 = vrsqrt.pop %v4336
      %v4345 = vrsqrt.pop %v4337
      %v4346 = vrsqrt.pop %v4338
      %v4347 = vrsqrt.pop %v4339
      %v4348 = vrsqrt.pop %v4340
      %v4349 = vrsqrt.pop %v4341
      %v4350 = vrsqrt.pop %v4342
      %v4351 = vmul.f32 %v4287, %v4343
      %v4352 = vmul.f32 %v4288, %v4344
      %v4353 = vmul.f32 %v4289, %v4345
      %v4354 = vmul.f32 %v4290, %v4346
      %v4355 = vmul.f32 %v4291, %v4347
      %v4356 = vmul.f32 %v4292, %v4348
      %v4357 = vmul.f32 %v4293, %v4349
      %v4358 = vmul.f32 %v4294, %v4350
      %v4360 = vlaneseq
      %v4361 = vshrl.u32 %v4360, 7
      %v4362 = vsub.s32 0, %v4361
      %v4363 = vrot.slane %v4252, %v4362
      %v4365 = vmul.f32 %v4351, %v4363
      %v4366 = vmul.f32 %v4352, %v4363
      %v4367 = vmul.f32 %v4353, %v4363
      %v4368 = vmul.f32 %v4354, %v4363
      %v4369 = vmul.f32 %v4355, %v4363
      %v4370 = vmul.f32 %v4356, %v4363
      %v4371 = vmul.f32 %v4357, %v4363
      %v4372 = vmul.f32 %v4358, %v4363
      %v4374 = vlaneseq
      %v4375 = vshrl.u32 %v4374, 7
      %v4376 = vsub.s32 0, %v4375
      %v4377 = vrot.slane %v4254, %v4376
      %v4379 = vadd.f32 %v4365, %v4377
      %v4380 = vadd.f32 %v4366, %v4377
      %v4381 = vadd.f32 %v4367, %v4377
      %v4382 = vadd.f32 %v4368, %v4377
      %v4383 = vadd.f32 %v4369, %v4377
      %v4384 = vadd.f32 %v4370, %v4377
      %v4385 = vadd.f32 %v4371, %v4377
      %v4386 = vadd.f32 %v4372, %v4377
      %v4387 = vpack.c.bf16 %v4380, %v4379
      %v4388 = vpack.c.bf16 %v4382, %v4381
      %v4389 = vpack.c.bf16 %v4384, %v4383
      %v4390 = vpack.c.bf16 %v4386, %v4385
      %s4391 = scalar_lea.vmem %s11, 64
      %v4392 = vld [vmem:[%s4391] sm:$0xff]
      %v4393 = vld [vmem:[%s4391 + $0x8] sm:$0xff]
      %v4394 = vld [vmem:[%s4391 + $0x10] sm:$0xff]
      %v4395 = vld [vmem:[%s4391 + $0x18] sm:$0xff]
      %v4396 = vld [vmem:[%s4391 + $0x20] sm:$0xff]
      %v4397 = vld [vmem:[%s4391 + $0x28] sm:$0xff]
      %v4398 = vld [vmem:[%s4391 + $0x30] sm:$0xff]
      %v4399 = vld [vmem:[%s4391 + $0x38] sm:$0xff]
      %s4400 = scalar_lea.vmem %s12, 2
      %v4401 = vld [vmem:[%s4400] sm:$0x3]
      %v4403 = vlaneseq
      %v4404 = vshrl.u32 %v4403, 7
      %v4405 = vsub.s32 0, %v4404
      %v4406 = vrot.slane %v4401, %v4405
      %v4407 = vlaneseq
      %v4408 = vshrl.u32 %v4407, 7
      %v4409 = vsub.s32 1, %v4408
      %v4410 = vrot.slane %v4401, %v4409
      %v4421 = vunpack.c.l.b16 %v4392
      %v4422 = vunpack.c.h.b16 %v4392
      %v4423 = vunpack.c.l.b16 %v4393
      %v4424 = vunpack.c.h.b16 %v4393
      %v4425 = vunpack.c.l.b16 %v4394
      %v4426 = vunpack.c.h.b16 %v4394
      %v4427 = vunpack.c.l.b16 %v4395
      %v4428 = vunpack.c.h.b16 %v4395
      %v4429 = vunpack.c.l.b16 %v4396
      %v4430 = vunpack.c.h.b16 %v4396
      %v4431 = vunpack.c.l.b16 %v4397
      %v4432 = vunpack.c.h.b16 %v4397
      %v4433 = vunpack.c.l.b16 %v4398
      %v4434 = vunpack.c.h.b16 %v4398
      %v4435 = vunpack.c.l.b16 %v4399
      %v4436 = vunpack.c.h.b16 %v4399
      %v4437 = vpack.c.b16 %v4423, %v4421
      %v4438 = vpack.c.b16 %v4424, %v4422
      %v4439 = vpack.c.b16 %v4427, %v4425
      %v4440 = vpack.c.b16 %v4428, %v4426
      %v4441 = vpack.c.b16 %v4431, %v4429
      %v4442 = vpack.c.b16 %v4432, %v4430
      %v4443 = vpack.c.b16 %v4435, %v4433
      %v4444 = vpack.c.b16 %v4436, %v4434
      %v4454 = vsel %vm574, %v4387, 0
      %v4457 = vsel %vm574, %v4388, 0
      %v4460 = vsel %vm574, %v4389, 0
      %v4463 = vsel %vm574, %v4390, 0
      %4465 = vmatprep.subr.bf16.mxu0 %v4438
      %4466 = vmatpush1.bf16.msra.mxu0 %v4437
      %4467 = vmatprep.subr.bf16.mxu0 %v4440
      %4468 = vmatpush1.bf16.msra.mxu0 %v4439
      %4469 = vmatprep.subr.bf16.mxu0 %v4442
      %4470 = vmatpush1.bf16.msra.mxu0 %v4441
      %4471 = vmatprep.subr.bf16.mxu0 %v4444
      %4472 = vmatpush1.bf16.msra.mxu0 %v4443
      %4473 = vmatprep.subr.bf16.mxu0 0
      %4474 = vmatpush1.bf16.msra.mxu0 0
      %4475 = vmatprep.subr.bf16.mxu0 0
      %4476 = vmatpush1.bf16.msra.mxu0 0
      %4477 = vmatprep.subr.bf16.mxu0 0
      %4478 = vmatpush1.bf16.msra.mxu0 0
      %4479 = vmatprep.subr.bf16.mxu0 0
      %4480 = vmatpush1.bf16.msra.mxu0 0
      %4481 = vmatprep.subr.bf16.mxu0 0
      %4482 = vmatpush1.bf16.msra.mxu0 0
      %4483 = vmatprep.subr.bf16.mxu0 0
      %4484 = vmatpush1.bf16.msra.mxu0 0
      %4485 = vmatprep.subr.bf16.mxu0 0
      %4486 = vmatpush1.bf16.msra.mxu0 0
      %4487 = vmatprep.subr.bf16.mxu0 0
      %4488 = vmatpush1.bf16.msra.mxu0 0
      %4489 = vmatprep.subr.bf16.mxu0 0
      %4490 = vmatpush1.bf16.msra.mxu0 0
      %4491 = vmatprep.subr.bf16.mxu0 0
      %4492 = vmatpush1.bf16.msra.mxu0 0
      %4493 = vmatprep.subr.bf16.mxu0 0
      %4494 = vmatpush1.bf16.msra.mxu0 0
      %4495 = vmatprep.subr.bf16.mxu0 0
      %4496 = vmatpush1.bf16.msra.mxu0 0
      %4497 = vmatprep.mubr.bf16.mxu0 0
      %4498 = vmatmul.mubr.bf16.gmra.mrb[0].mxu0 %v4454
      %v4499 = vpop.f32.mrb[0].mxu0
      %v4500 = vadd.f32 %v4406, %v4499
      %v4501 = vpop.f32.mrb[0].mxu0
      %v4502 = vadd.f32 %v4410, %v4501
      %v4503 = vpop.f32.mrb[0].mxu0
      %v4504 = vadd.f32 %v4406, %v4503
      %v4505 = vpop.f32.mrb[0].mxu0
      %v4506 = vadd.f32 %v4410, %v4505
      %4507 = vmatprep.mubr.bf16.mxu0 0
      %4508 = vmatmul.mubr.bf16.gmra.mrb[0].mxu0 %v4457
      %v4509 = vpop.f32.mrb[0].mxu0
      %v4510 = vadd.f32 %v4406, %v4509
      %v4511 = vpop.f32.mrb[0].mxu0
      %v4512 = vadd.f32 %v4410, %v4511
      %v4513 = vpop.f32.mrb[0].mxu0
      %v4514 = vadd.f32 %v4406, %v4513
      %v4515 = vpop.f32.mrb[0].mxu0
      %v4516 = vadd.f32 %v4410, %v4515
      %4517 = vmatprep.mubr.bf16.mxu0 0
      %4518 = vmatmul.mubr.bf16.gmra.mrb[0].mxu0 %v4460
      %v4519 = vpop.f32.mrb[0].mxu0
      %v4520 = vadd.f32 %v4406, %v4519
      %v4521 = vpop.f32.mrb[0].mxu0
      %v4522 = vadd.f32 %v4410, %v4521
      %v4523 = vpop.f32.mrb[0].mxu0
      %v4524 = vadd.f32 %v4406, %v4523
      %v4525 = vpop.f32.mrb[0].mxu0
      %v4526 = vadd.f32 %v4410, %v4525
      %4527 = vmatprep.mubr.bf16.mxu0 0
      %4528 = vmatmul.mubr.bf16.gmra.mrb[0].mxu0 %v4463
      %v4529 = vpop.f32.mrb[0].mxu0
      %v4530 = vadd.f32 %v4406, %v4529
      %v4531 = vpop.f32.mrb[0].mxu0
      %v4532 = vadd.f32 %v4410, %v4531
      %v4533 = vpop.f32.mrb[0].mxu0
      %v4534 = vadd.f32 %v4406, %v4533
      %v4535 = vpop.f32.mrb[0].mxu0
      %v4536 = vadd.f32 %v4410, %v4535
      %4537 = vdwg.mxu0
      %v4538 = vmul.f32 %v4500, 0.5
      %v4539 = vmul.f32 %v4502, 0.5
      %v4540 = vmul.f32 %v4504, 0.5
      %v4541 = vmul.f32 %v4506, 0.5
      %v4542 = vmul.f32 %v4510, 0.5
      %v4543 = vmul.f32 %v4512, 0.5
      %v4544 = vmul.f32 %v4514, 0.5
      %v4545 = vmul.f32 %v4516, 0.5
      %v4546 = vmul.f32 %v4520, 0.5
      %v4547 = vmul.f32 %v4522, 0.5
      %v4548 = vmul.f32 %v4524, 0.5
      %v4549 = vmul.f32 %v4526, 0.5
      %v4550 = vmul.f32 %v4530, 0.5
      %v4551 = vmul.f32 %v4532, 0.5
      %v4552 = vmul.f32 %v4534, 0.5
      %v4553 = vmul.f32 %v4536, 0.5
      %v4554 = vmul.f32 %v4500, 0.044715
      %v4555 = vmul.f32 %v4502, 0.044715
      %v4556 = vmul.f32 %v4504, 0.044715
      %v4557 = vmul.f32 %v4506, 0.044715
      %v4558 = vmul.f32 %v4510, 0.044715
      %v4559 = vmul.f32 %v4512, 0.044715
      %v4560 = vmul.f32 %v4514, 0.044715
      %v4561 = vmul.f32 %v4516, 0.044715
      %v4562 = vmul.f32 %v4520, 0.044715
      %v4563 = vmul.f32 %v4522, 0.044715
      %v4564 = vmul.f32 %v4524, 0.044715
      %v4565 = vmul.f32 %v4526, 0.044715
      %v4566 = vmul.f32 %v4530, 0.044715
      %v4567 = vmul.f32 %v4532, 0.044715
      %v4568 = vmul.f32 %v4534, 0.044715
      %v4569 = vmul.f32 %v4536, 0.044715
      %v4570 = vmul.f32 %v4554, %v4500
      %v4571 = vmul.f32 %v4555, %v4502
      %v4572 = vmul.f32 %v4556, %v4504
      %v4573 = vmul.f32 %v4557, %v4506
      %v4574 = vmul.f32 %v4558, %v4510
      %v4575 = vmul.f32 %v4559, %v4512
      %v4576 = vmul.f32 %v4560, %v4514
      %v4577 = vmul.f32 %v4561, %v4516
      %v4578 = vmul.f32 %v4562, %v4520
      %v4579 = vmul.f32 %v4563, %v4522
      %v4580 = vmul.f32 %v4564, %v4524
      %v4581 = vmul.f32 %v4565, %v4526
      %v4582 = vmul.f32 %v4566, %v4530
      %v4583 = vmul.f32 %v4567, %v4532
      %v4584 = vmul.f32 %v4568, %v4534
      %v4585 = vmul.f32 %v4569, %v4536
      %v4586 = vmul.f32 %v4570, %v4500
      %v4587 = vmul.f32 %v4571, %v4502
      %v4588 = vmul.f32 %v4572, %v4504
      %v4589 = vmul.f32 %v4573, %v4506
      %v4590 = vmul.f32 %v4574, %v4510
      %v4591 = vmul.f32 %v4575, %v4512
      %v4592 = vmul.f32 %v4576, %v4514
      %v4593 = vmul.f32 %v4577, %v4516
      %v4594 = vmul.f32 %v4578, %v4520
      %v4595 = vmul.f32 %v4579, %v4522
      %v4596 = vmul.f32 %v4580, %v4524
      %v4597 = vmul.f32 %v4581, %v4526
      %v4598 = vmul.f32 %v4582, %v4530
      %v4599 = vmul.f32 %v4583, %v4532
      %v4600 = vmul.f32 %v4584, %v4534
      %v4601 = vmul.f32 %v4585, %v4536
      %v4602 = vadd.f32 %v4500, %v4586
      %v4603 = vadd.f32 %v4502, %v4587
      %v4604 = vadd.f32 %v4504, %v4588
      %v4605 = vadd.f32 %v4506, %v4589
      %v4606 = vadd.f32 %v4510, %v4590
      %v4607 = vadd.f32 %v4512, %v4591
      %v4608 = vadd.f32 %v4514, %v4592
      %v4609 = vadd.f32 %v4516, %v4593
      %v4610 = vadd.f32 %v4520, %v4594
      %v4611 = vadd.f32 %v4522, %v4595
      %v4612 = vadd.f32 %v4524, %v4596
      %v4613 = vadd.f32 %v4526, %v4597
      %v4614 = vadd.f32 %v4530, %v4598
      %v4615 = vadd.f32 %v4532, %v4599
      %v4616 = vadd.f32 %v4534, %v4600
      %v4617 = vadd.f32 %v4536, %v4601
      %v4618 = vmul.f32 %v4602, 0.7978846
      %v4619 = vmul.f32 %v4603, 0.7978846
      %v4620 = vmul.f32 %v4604, 0.7978846
      %v4621 = vmul.f32 %v4605, 0.7978846
      %v4622 = vmul.f32 %v4606, 0.7978846
      %v4623 = vmul.f32 %v4607, 0.7978846
      %v4624 = vmul.f32 %v4608, 0.7978846
      %v4625 = vmul.f32 %v4609, 0.7978846
      %v4626 = vmul.f32 %v4610, 0.7978846
      %v4627 = vmul.f32 %v4611, 0.7978846
      %v4628 = vmul.f32 %v4612, 0.7978846
      %v4629 = vmul.f32 %v4613, 0.7978846
      %v4630 = vmul.f32 %v4614, 0.7978846
      %v4631 = vmul.f32 %v4615, 0.7978846
      %v4632 = vmul.f32 %v4616, 0.7978846
      %v4633 = vmul.f32 %v4617, 0.7978846
      %v4634 = vtanh.pop %v4618
      %v4635 = vtanh.pop %v4619
      %v4636 = vtanh.pop %v4620
      %v4637 = vtanh.pop %v4621
      %v4638 = vtanh.pop %v4622
      %v4639 = vtanh.pop %v4623
      %v4640 = vtanh.pop %v4624
      %v4641 = vtanh.pop %v4625
      %v4642 = vtanh.pop %v4626
      %v4643 = vtanh.pop %v4627
      %v4644 = vtanh.pop %v4628
      %v4645 = vtanh.pop %v4629
      %v4646 = vtanh.pop %v4630
      %v4647 = vtanh.pop %v4631
      %v4648 = vtanh.pop %v4632
      %v4649 = vtanh.pop %v4633
      %v4650 = vadd.f32 %v4634, 1.0
      %v4651 = vadd.f32 %v4635, 1.0
      %v4652 = vadd.f32 %v4636, 1.0
      %v4653 = vadd.f32 %v4637, 1.0
      %v4654 = vadd.f32 %v4638, 1.0
      %v4655 = vadd.f32 %v4639, 1.0
      %v4656 = vadd.f32 %v4640, 1.0
      %v4657 = vadd.f32 %v4641, 1.0
      %v4658 = vadd.f32 %v4642, 1.0
      %v4659 = vadd.f32 %v4643, 1.0
      %v4660 = vadd.f32 %v4644, 1.0
      %v4661 = vadd.f32 %v4645, 1.0
      %v4662 = vadd.f32 %v4646, 1.0
      %v4663 = vadd.f32 %v4647, 1.0
      %v4664 = vadd.f32 %v4648, 1.0
      %v4665 = vadd.f32 %v4649, 1.0
      %v4666 = vmul.f32 %v4538, %v4650
      %v4667 = vmul.f32 %v4539, %v4651
      %v4668 = vmul.f32 %v4540, %v4652
      %v4669 = vmul.f32 %v4541, %v4653
      %v4670 = vmul.f32 %v4542, %v4654
      %v4671 = vmul.f32 %v4543, %v4655
      %v4672 = vmul.f32 %v4544, %v4656
      %v4673 = vmul.f32 %v4545, %v4657
      %v4674 = vmul.f32 %v4546, %v4658
      %v4675 = vmul.f32 %v4547, %v4659
      %v4676 = vmul.f32 %v4548, %v4660
      %v4677 = vmul.f32 %v4549, %v4661
      %v4678 = vmul.f32 %v4550, %v4662
      %v4679 = vmul.f32 %v4551, %v4663
      %v4680 = vmul.f32 %v4552, %v4664
      %v4681 = vmul.f32 %v4553, %v4665
      %v4682 = vpack.c.bf16 %v4668, %v4666
      %v4683 = vpack.c.bf16 %v4669, %v4667
      %v4684 = vpack.c.bf16 %v4672, %v4670
      %v4685 = vpack.c.bf16 %v4673, %v4671
      %v4686 = vpack.c.bf16 %v4676, %v4674
      %v4687 = vpack.c.bf16 %v4677, %v4675
      %v4688 = vpack.c.bf16 %v4680, %v4678
      %v4689 = vpack.c.bf16 %v4681, %v4679
      %s4690 = scalar_lea.vmem %s13, 128
      %v4691 = vld [vmem:[%s4690] sm:$0xf]
      %v4692 = vld [vmem:[%s4690 + $0x4] sm:$0xf]
      %v4693 = vld [vmem:[%s4690 + $0x8] sm:$0xf]
      %v4694 = vld [vmem:[%s4690 + $0xc] sm:$0xf]
      %v4695 = vld [vmem:[%s4690 + $0x10] sm:$0xf]
      %v4696 = vld [vmem:[%s4690 + $0x14] sm:$0xf]
      %v4697 = vld [vmem:[%s4690 + $0x18] sm:$0xf]
      %v4698 = vld [vmem:[%s4690 + $0x1c] sm:$0xf]
      %v4699 = vld [vmem:[%s4690 + $0x20] sm:$0xf]
      %v4700 = vld [vmem:[%s4690 + $0x24] sm:$0xf]
      %v4701 = vld [vmem:[%s4690 + $0x28] sm:$0xf]
      %v4702 = vld [vmem:[%s4690 + $0x2c] sm:$0xf]
      %v4703 = vld [vmem:[%s4690 + $0x30] sm:$0xf]
      %v4704 = vld [vmem:[%s4690 + $0x34] sm:$0xf]
      %v4705 = vld [vmem:[%s4690 + $0x38] sm:$0xf]
      %v4706 = vld [vmem:[%s4690 + $0x3c] sm:$0xf]
      %v4707 = vld [vmem:[%s4690 + $0x40] sm:$0xf]
      %v4708 = vld [vmem:[%s4690 + $0x44] sm:$0xf]
      %v4709 = vld [vmem:[%s4690 + $0x48] sm:$0xf]
      %v4710 = vld [vmem:[%s4690 + $0x4c] sm:$0xf]
      %v4711 = vld [vmem:[%s4690 + $0x50] sm:$0xf]
      %v4712 = vld [vmem:[%s4690 + $0x54] sm:$0xf]
      %v4713 = vld [vmem:[%s4690 + $0x58] sm:$0xf]
      %v4714 = vld [vmem:[%s4690 + $0x5c] sm:$0xf]
      %v4715 = vld [vmem:[%s4690 + $0x60] sm:$0xf]
      %v4716 = vld [vmem:[%s4690 + $0x64] sm:$0xf]
      %v4717 = vld [vmem:[%s4690 + $0x68] sm:$0xf]
      %v4718 = vld [vmem:[%s4690 + $0x6c] sm:$0xf]
      %v4719 = vld [vmem:[%s4690 + $0x70] sm:$0xf]
      %v4720 = vld [vmem:[%s4690 + $0x74] sm:$0xf]
      %v4721 = vld [vmem:[%s4690 + $0x78] sm:$0xf]
      %v4722 = vld [vmem:[%s4690 + $0x7c] sm:$0xf]
      %s4723 = scalar_lea.vmem %s14, 1
      %v4724 = vld [vmem:[%s4723] sm:$0x1]
      %v4726 = vlaneseq
      %v4727 = vshrl.u32 %v4726, 7
      %v4728 = vsub.s32 0, %v4727
      %v4729 = vrot.slane %v4724, %v4728
      %v4763 = vunpack.c.l.b16 %v4691
      %v4764 = vunpack.c.l.b16 %v4692
      %v4765 = vunpack.c.l.b16 %v4693
      %v4766 = vunpack.c.l.b16 %v4694
      %v4767 = vunpack.c.l.b16 %v4695
      %v4768 = vunpack.c.l.b16 %v4696
      %v4769 = vunpack.c.l.b16 %v4697
      %v4770 = vunpack.c.l.b16 %v4698
      %v4771 = vunpack.c.l.b16 %v4699
      %v4772 = vunpack.c.l.b16 %v4700
      %v4773 = vunpack.c.l.b16 %v4701
      %v4774 = vunpack.c.l.b16 %v4702
      %v4775 = vunpack.c.l.b16 %v4703
      %v4776 = vunpack.c.l.b16 %v4704
      %v4777 = vunpack.c.l.b16 %v4705
      %v4778 = vunpack.c.l.b16 %v4706
      %v4779 = vunpack.c.l.b16 %v4707
      %v4780 = vunpack.c.l.b16 %v4708
      %v4781 = vunpack.c.l.b16 %v4709
      %v4782 = vunpack.c.l.b16 %v4710
      %v4783 = vunpack.c.l.b16 %v4711
      %v4784 = vunpack.c.l.b16 %v4712
      %v4785 = vunpack.c.l.b16 %v4713
      %v4786 = vunpack.c.l.b16 %v4714
      %v4787 = vunpack.c.l.b16 %v4715
      %v4788 = vunpack.c.l.b16 %v4716
      %v4789 = vunpack.c.l.b16 %v4717
      %v4790 = vunpack.c.l.b16 %v4718
      %v4791 = vunpack.c.l.b16 %v4719
      %v4792 = vunpack.c.l.b16 %v4720
      %v4793 = vunpack.c.l.b16 %v4721
      %v4794 = vunpack.c.l.b16 %v4722
      %v4795 = vpack.c.b16 %v4764, %v4763
      %v4796 = vpack.c.b16 %v4766, %v4765
      %v4797 = vpack.c.b16 %v4768, %v4767
      %v4798 = vpack.c.b16 %v4770, %v4769
      %v4799 = vpack.c.b16 %v4772, %v4771
      %v4800 = vpack.c.b16 %v4774, %v4773
      %v4801 = vpack.c.b16 %v4776, %v4775
      %v4802 = vpack.c.b16 %v4778, %v4777
      %v4803 = vpack.c.b16 %v4780, %v4779
      %v4804 = vpack.c.b16 %v4782, %v4781
      %v4805 = vpack.c.b16 %v4784, %v4783
      %v4806 = vpack.c.b16 %v4786, %v4785
      %v4807 = vpack.c.b16 %v4788, %v4787
      %v4808 = vpack.c.b16 %v4790, %v4789
      %v4809 = vpack.c.b16 %v4792, %v4791
      %v4810 = vpack.c.b16 %v4794, %v4793
      %4827 = vmatprep.subr.bf16.mxu0 0
      %4828 = vmatpush1.bf16.msra.mxu0 %v4795
      %4829 = vmatprep.subr.bf16.mxu0 0
      %4830 = vmatpush1.bf16.msra.mxu0 %v4796
      %4831 = vmatprep.subr.bf16.mxu0 0
      %4832 = vmatpush1.bf16.msra.mxu0 %v4797
      %4833 = vmatprep.subr.bf16.mxu0 0
      %4834 = vmatpush1.bf16.msra.mxu0 %v4798
      %4835 = vmatprep.subr.bf16.mxu0 0
      %4836 = vmatpush1.bf16.msra.mxu0 %v4799
      %4837 = vmatprep.subr.bf16.mxu0 0
      %4838 = vmatpush1.bf16.msra.mxu0 %v4800
      %4839 = vmatprep.subr.bf16.mxu0 0
      %4840 = vmatpush1.bf16.msra.mxu0 %v4801
      %4841 = vmatprep.subr.bf16.mxu0 0
      %4842 = vmatpush1.bf16.msra.mxu0 %v4802
      %4843 = vmatprep.subr.bf16.mxu0 0
      %4844 = vmatpush1.bf16.msra.mxu0 %v4803
      %4845 = vmatprep.subr.bf16.mxu0 0
      %4846 = vmatpush1.bf16.msra.mxu0 %v4804
      %4847 = vmatprep.subr.bf16.mxu0 0
      %4848 = vmatpush1.bf16.msra.mxu0 %v4805
      %4849 = vmatprep.subr.bf16.mxu0 0
      %4850 = vmatpush1.bf16.msra.mxu0 %v4806
      %4851 = vmatprep.subr.bf16.mxu0 0
      %4852 = vmatpush1.bf16.msra.mxu0 %v4807
      %4853 = vmatprep.subr.bf16.mxu0 0
      %4854 = vmatpush1.bf16.msra.mxu0 %v4808
      %4855 = vmatprep.subr.bf16.mxu0 0
      %4856 = vmatpush1.bf16.msra.mxu0 %v4809
      %4857 = vmatprep.subr.bf16.mxu0 0
      %4858 = vmatpush1.bf16.msra.mxu0 %v4810
      %4859 = vmatprep.mubr.bf16.mxu0 %v4683
      %4860 = vmatmul.mubr.bf16.gmra.mrb[0].mxu0 %v4682
      %v4861 = vpop.f32.mrb[0].mxu0
      %v4862 = vadd.f32 %v4729, %v4861
      %v4863 = vpop.f32.mrb[0].mxu0
      %v4864 = vpop.f32.mrb[0].mxu0
      %v4865 = vadd.f32 %v4729, %v4864
      %v4866 = vpop.f32.mrb[0].mxu0
      %4867 = vmatprep.mubr.bf16.mxu0 %v4685
      %4868 = vmatmul.mubr.bf16.gmra.mrb[0].mxu0 %v4684
      %v4869 = vpop.f32.mrb[0].mxu0
      %v4870 = vadd.f32 %v4729, %v4869
      %v4871 = vpop.f32.mrb[0].mxu0
      %v4872 = vpop.f32.mrb[0].mxu0
      %v4873 = vadd.f32 %v4729, %v4872
      %v4874 = vpop.f32.mrb[0].mxu0
      %4875 = vmatprep.mubr.bf16.mxu0 %v4687
      %4876 = vmatmul.mubr.bf16.gmra.mrb[0].mxu0 %v4686
      %v4877 = vpop.f32.mrb[0].mxu0
      %v4878 = vadd.f32 %v4729, %v4877
      %v4879 = vpop.f32.mrb[0].mxu0
      %v4880 = vpop.f32.mrb[0].mxu0
      %v4881 = vadd.f32 %v4729, %v4880
      %v4882 = vpop.f32.mrb[0].mxu0
      %4883 = vmatprep.mubr.bf16.mxu0 %v4689
      %4884 = vmatmul.mubr.bf16.gmra.mrb[0].mxu0 %v4688
      %v4885 = vpop.f32.mrb[0].mxu0
      %v4886 = vadd.f32 %v4729, %v4885
      %v4887 = vpop.f32.mrb[0].mxu0
      %v4888 = vpop.f32.mrb[0].mxu0
      %v4889 = vadd.f32 %v4729, %v4888
      %v4890 = vpop.f32.mrb[0].mxu0
      %4891 = vdwg.mxu0
      %v4892 = vadd.f32 %v4379, %v4862
      %v4893 = vadd.f32 %v4380, %v4865
      %v4894 = vadd.f32 %v4381, %v4870
      %v4895 = vadd.f32 %v4382, %v4873
      %v4896 = vadd.f32 %v4383, %v4878
      %v4897 = vadd.f32 %v4384, %v4881
      %v4898 = vadd.f32 %v4385, %v4886
      %v4899 = vadd.f32 %v4386, %v4889
      %s4900 = scalar_lea.vmem %s15, 1
      %v4901 = vld [vmem:[%s4900] sm:$0x1]
      %s4902 = scalar_lea.vmem %s16, 1
      %v4903 = vld [vmem:[%s4902] sm:$0x1]
      %v4904 = vsel %vm574, %v4892, 0.0
      %4905 = vadd.xlane.f32.xlu0 %v4904
      %v4906 = vpop.xlane.xlu0 %4905
      %v4907 = vsel %vm574, %v4893, 0.0
      %4908 = vadd.xlane.f32.xlu0 %v4907
      %v4909 = vpop.xlane.xlu0 %4908
      %v4910 = vsel %vm574, %v4894, 0.0
      %4911 = vadd.xlane.f32.xlu0 %v4910
      %v4912 = vpop.xlane.xlu0 %4911
      %v4913 = vsel %vm574, %v4895, 0.0
      %4914 = vadd.xlane.f32.xlu0 %v4913
      %v4915 = vpop.xlane.xlu0 %4914
      %v4916 = vsel %vm574, %v4896, 0.0
      %4917 = vadd.xlane.f32.xlu0 %v4916
      %v4918 = vpop.xlane.xlu0 %4917
      %v4919 = vsel %vm574, %v4897, 0.0
      %4920 = vadd.xlane.f32.xlu0 %v4919
      %v4921 = vpop.xlane.xlu0 %4920
      %v4922 = vsel %vm574, %v4898, 0.0
      %4923 = vadd.xlane.f32.xlu0 %v4922
      %v4924 = vpop.xlane.xlu0 %4923
      %v4925 = vsel %vm574, %v4899, 0.0
      %4926 = vadd.xlane.f32.xlu0 %v4925
      %v4927 = vpop.xlane.xlu0 %4926
      %v4928 = vmul.f32 %v4906, %v599
      %v4929 = vmul.f32 %v4909, %v599
      %v4930 = vmul.f32 %v4912, %v599
      %v4931 = vmul.f32 %v4915, %v599
      %v4932 = vmul.f32 %v4918, %v599
      %v4933 = vmul.f32 %v4921, %v599
      %v4934 = vmul.f32 %v4924, %v599
      %v4935 = vmul.f32 %v4927, %v599
      %v4936 = vsub.f32 %v4892, %v4928
      %v4937 = vsub.f32 %v4893, %v4929
      %v4938 = vsub.f32 %v4894, %v4930
      %v4939 = vsub.f32 %v4895, %v4931
      %v4940 = vsub.f32 %v4896, %v4932
      %v4941 = vsub.f32 %v4897, %v4933
      %v4942 = vsub.f32 %v4898, %v4934
      %v4943 = vsub.f32 %v4899, %v4935
      %v4944 = vmul.f32 %v4936, %v4936
      %v4945 = vmul.f32 %v4937, %v4937
      %v4946 = vmul.f32 %v4938, %v4938
      %v4947 = vmul.f32 %v4939, %v4939
      %v4948 = vmul.f32 %v4940, %v4940
      %v4949 = vmul.f32 %v4941, %v4941
      %v4950 = vmul.f32 %v4942, %v4942
      %v4951 = vmul.f32 %v4943, %v4943
      %v4952 = vsel %vm574, %v4944, 0.0
      %4953 = vadd.xlane.f32.xlu0 %v4952
      %v4954 = vpop.xlane.xlu0 %4953
      %v4955 = vsel %vm574, %v4945, 0.0
      %4956 = vadd.xlane.f32.xlu0 %v4955
      %v4957 = vpop.xlane.xlu0 %4956
      %v4958 = vsel %vm574, %v4946, 0.0
      %4959 = vadd.xlane.f32.xlu0 %v4958
      %v4960 = vpop.xlane.xlu0 %4959
      %v4961 = vsel %vm574, %v4947, 0.0
      %4962 = vadd.xlane.f32.xlu0 %v4961
      %v4963 = vpop.xlane.xlu0 %4962
      %v4964 = vsel %vm574, %v4948, 0.0
      %4965 = vadd.xlane.f32.xlu0 %v4964
      %v4966 = vpop.xlane.xlu0 %4965
      %v4967 = vsel %vm574, %v4949, 0.0
      %4968 = vadd.xlane.f32.xlu0 %v4967
      %v4969 = vpop.xlane.xlu0 %4968
      %v4970 = vsel %vm574, %v4950, 0.0
      %4971 = vadd.xlane.f32.xlu0 %v4970
      %v4972 = vpop.xlane.xlu0 %4971
      %v4973 = vsel %vm574, %v4951, 0.0
      %4974 = vadd.xlane.f32.xlu0 %v4973
      %v4975 = vpop.xlane.xlu0 %4974
      %v4976 = vmul.f32 %v4954, %v599
      %v4977 = vmul.f32 %v4957, %v599
      %v4978 = vmul.f32 %v4960, %v599
      %v4979 = vmul.f32 %v4963, %v599
      %v4980 = vmul.f32 %v4966, %v599
      %v4981 = vmul.f32 %v4969, %v599
      %v4982 = vmul.f32 %v4972, %v599
      %v4983 = vmul.f32 %v4975, %v599
      %v4984 = vadd.f32 %v4976, 1e-12
      %v4985 = vadd.f32 %v4977, 1e-12
      %v4986 = vadd.f32 %v4978, 1e-12
      %v4987 = vadd.f32 %v4979, 1e-12
      %v4988 = vadd.f32 %v4980, 1e-12
      %v4989 = vadd.f32 %v4981, 1e-12
      %v4990 = vadd.f32 %v4982, 1e-12
      %v4991 = vadd.f32 %v4983, 1e-12
      %v4992 = vrsqrt.pop %v4984
      %v4993 = vrsqrt.pop %v4985
      %v4994 = vrsqrt.pop %v4986
      %v4995 = vrsqrt.pop %v4987
      %v4996 = vrsqrt.pop %v4988
      %v4997 = vrsqrt.pop %v4989
      %v4998 = vrsqrt.pop %v4990
      %v4999 = vrsqrt.pop %v4991
      %v5000 = vmul.f32 %v4936, %v4992
      %v5001 = vmul.f32 %v4937, %v4993
      %v5002 = vmul.f32 %v4938, %v4994
      %v5003 = vmul.f32 %v4939, %v4995
      %v5004 = vmul.f32 %v4940, %v4996
      %v5005 = vmul.f32 %v4941, %v4997
      %v5006 = vmul.f32 %v4942, %v4998
      %v5007 = vmul.f32 %v4943, %v4999
      %v5009 = vlaneseq
      %v5010 = vshrl.u32 %v5009, 7
      %v5011 = vsub.s32 0, %v5010
      %v5012 = vrot.slane %v4901, %v5011
      %v5014 = vmul.f32 %v5000, %v5012
      %v5015 = vmul.f32 %v5001, %v5012
      %v5016 = vmul.f32 %v5002, %v5012
      %v5017 = vmul.f32 %v5003, %v5012
      %v5018 = vmul.f32 %v5004, %v5012
      %v5019 = vmul.f32 %v5005, %v5012
      %v5020 = vmul.f32 %v5006, %v5012
      %v5021 = vmul.f32 %v5007, %v5012
      %v5023 = vlaneseq
      %v5024 = vshrl.u32 %v5023, 7
      %v5025 = vsub.s32 0, %v5024
      %v5026 = vrot.slane %v4903, %v5025
      %v5028 = vadd.f32 %v5014, %v5026
      %v5029 = vadd.f32 %v5015, %v5026
      %v5030 = vadd.f32 %v5016, %v5026
      %v5031 = vadd.f32 %v5017, %v5026
      %v5032 = vadd.f32 %v5018, %v5026
      %v5033 = vadd.f32 %v5019, %v5026
      %v5034 = vadd.f32 %v5020, %v5026
      %v5035 = vadd.f32 %v5021, %v5026
      %5036 = vst.msk [vmem:[%s562] sm:$0xff] %vm574, %v5028
      %5037 = vst.msk [vmem:[%s562 + $0x8] sm:$0xff] %vm574, %v5029
      %5038 = vst.msk [vmem:[%s562 + $0x10] sm:$0xff] %vm574, %v5030
      %5039 = vst.msk [vmem:[%s562 + $0x18] sm:$0xff] %vm574, %v5031
      %5040 = vst.msk [vmem:[%s562 + $0x20] sm:$0xff] %vm574, %v5032
      %5041 = vst.msk [vmem:[%s562 + $0x28] sm:$0xff] %vm574, %v5033
      %5042 = vst.msk [vmem:[%s562 + $0x30] sm:$0xff] %vm574, %v5034
      %5043 = vst.msk [vmem:[%s562 + $0x38] sm:$0xff] %vm574, %v5035
      %p5044 = scmp.lt.s32.totalorder %s28, 1
      %s5045 = scalar_select %p5044, %s28, 1
      %s5046 = smul.addr %s5045, 8
      %s5047 = smul.addr %s5046, 8
      %s5048 = scalar_lea.vmem %s17, %s5047
      // Predicated region
      $region89: #{vanilla_bert_forward.1} parent=87 // pred_check
        %p5049 = pneg %p413
      $region90: #{vanilla_bert_forward.1} parent=87 // pred_check_branch
        %5051 = sbr.rel (%p5049) target = $region92
      $region91: #{vanilla_bert_forward.1} parent=87 // pred_region
        _
      $region92: #{vanilla_bert_forward.1} parent=87 // pred_fallthru
        _
    $region88: #{vanilla_bert_forward.1} parent=5 // pred_fallthru
      _
    %p5052 = scmp.le.s32.totalorder 2, %s23
    // Predicated region
    $region93: #{vanilla_bert_forward.1} parent=5 // pred_check
      %p5053 = pneg %p5052
    $region94: #{vanilla_bert_forward.1} parent=5 // pred_check_branch
      %5055 = sbr.rel (%p5053) target = $region96
    $region95: #{vanilla_bert_forward.1} parent=5 // pred_region
      %s5056 = ssub.s32 %s23, 2
      // Predicated region
      $region97: #{vanilla_bert_forward.1} parent=95 // pred_check
        %p5057 = pneg %p419
      $region98: #{vanilla_bert_forward.1} parent=95 // pred_check_branch
        %5059 = sbr.rel (%p5057) target = $region100
      $region99: #{vanilla_bert_forward.1} parent=95 // pred_region
        %p5060 = scmp.lt.s32.totalorder %s29, 1
        %s5061 = scalar_select %p5060, %s29, 1
        %s5062 = smul.addr %s5061, 8
        %s5063 = smul.addr %s5062, 8
        %s5064 = scalar_lea.vmem %s17, %s5063
      $region100: #{vanilla_bert_forward.1} parent=95 // pred_fallthru
        _
    $region96: #{vanilla_bert_forward.1} parent=5 // pred_fallthru
      _
  $region6: #{vanilla_bert_forward.1} parent=0 // loop_footer
    %s27 = sadd.s32 1, %s23
  $region7: #{vanilla_bert_forward.1} parent=0 // loop_footer_branch
    %22 = sbr.rel target = $region3
  $region8: #{vanilla_bert_forward.1} parent=0 // loop_exit
    _

</llo_original>
